<compile_context>
chip_gen: v7x
topology: tpu7x:2x2x1
jax: 0.10.0
libtpu: 0.0.40
codegen_flags: <defaults>
</compile_context>

<pallas_src>
import functools

import jax
import jax.numpy as jnp
from jax import lax
from jax.experimental import pallas as pl
from jax.experimental.pallas import tpu as pltpu


def _round_up(x, m):
    return (x + m - 1) // m * m


# ----------------------------- Pallas kernel --------------------------------
def _make_wavefront_gru_kernel(n_layer, T, Bp, Hp, compute_dtype):
    """Fused multi-layer GRU, single invocation, in-kernel wavefront over (layer, time).

    Kernel ref layout (inputs, then output):
      gi0 : (T, Bp, 3*Hp) f32   layer-0 input projections (XLA pre-pass), gates packed
      wh  : (L, Hp, 3*Hp)       recurrent weights, gate g in cols [g*Hp, g*Hp+H)
      bgh : (L, 1, 3*Hp)  f32   [0 | 0 | b_hn]           (added to h @ wh)
      wi  : (L-1, Hp, 3*Hp)     input weights for layers >= 1          (if L > 1)
      bgi : (L-1, 1, 3*Hp) f32  [b_ir+b_hr | b_iz+b_hz | b_in]         (if L > 1)
      out : (Bp, Hp)      f32   final hidden state of the last layer == o1[-1]
    """
    L = n_layer
    G = 3 * Hp

    def kernel(*refs):
        gi0_ref, wh_ref, bgh_ref = refs[0], refs[1], refs[2]
        if L > 1:
            wi_ref, bgi_ref = refs[3], refs[4]
            out_ref = refs[5]
        else:
            out_ref = refs[3]

        def gru_cell(gi, h, layer):
            # ONE fused lane-dense recurrent matmul (vs. three 32-lane dots):
            # bf16 (or f32) operands, f32 accumulate.  Gate slices below are all
            # 128-lane aligned -> pure VPU/EUP, no cross-lane shuffles.
            gh = jnp.dot(h.astype(compute_dtype), wh_ref[layer],
                         preferred_element_type=jnp.float32) + bgh_ref[layer]
            rz = jax.nn.sigmoid(gi[:, :2 * Hp] + gh[:, :2 * Hp])
            r = rz[:, :Hp]
            z = rz[:, Hp:]
            n = jnp.tanh(gi[:, 2 * Hp:] + r * gh[:, 2 * Hp:])   # b_hn lives in gh
            return (1.0 - z) * n + z * h

        def next_proj(h_new, layer):
            # Fused 3-gate input projection feeding GRU layer `layer + 1`.
            # Computed one wavefront step before it is consumed -> off that
            # layer's serial matmul chain.
            return jnp.dot(h_new.astype(compute_dtype), wi_ref[layer],
                           preferred_element_type=jnp.float32) + bgi_ref[layer]

        def wavefront_step(w, hs, pend, active):
            # Layer l runs its time step t = w - l.  All reads come from the
            # previous wavefront's *values* (no in-place scratch reuse -> no
            # RAW/WAR hazard for any L).
            new_hs = list(hs)
            new_pend = list(pend)
            for l in active:
                t = w - l
                gi = gi0_ref[t] if l == 0 else pend[l - 1]
                h_new = gru_cell(gi, hs[l], l)
                new_hs[l] = h_new
                if l + 1 < L:
                    new_pend[l] = next_proj(h_new, l)
            return new_hs, new_pend

        hs = [jnp.zeros((Bp, Hp), jnp.float32) for _ in range(L)]      # h_0 = 0
        pend = [jnp.zeros((Bp, G), jnp.float32) for _ in range(L - 1)]

        W = T + L - 1   # total wavefront steps

        def active_at(w):
            return [l for l in range(L) if 0 <= w - l < T]

        # Prologue (static): fill the wavefront.
        for w in range(min(L - 1, W)):
            hs, pend = wavefront_step(w, hs, pend, active_at(w))

        # Steady state: all L layers live each wavefront step; their recurrent
        # matmuls are mutually independent, so the dependent-matmul chain is
        # T + L - 1 long instead of L * T.
        if T > L - 1:
            def steady_body(w, carry):
                chs, cpend = carry
                nhs, npend = wavefront_step(w, list(chs), list(cpend),
                                            list(range(L)))
                return (tuple(nhs), tuple(npend))

            # Trip count T - L + 1 is tiny here -> full unroll for LLO
            # visibility; cap the unroll factor (e.g. unroll=8) if T grows.
            carry = lax.fori_loop(L - 1, T, steady_body,
                                  (tuple(hs), tuple(pend)), unroll=True)
            hs, pend = list(carry[0]), list(carry[1])

        # Epilogue (static): drain the deeper layers.
        for w in range(max(T, L - 1), W):
            hs, pend = wavefront_step(w, hs, pend, active_at(w))

        out_ref[...] = hs[L - 1]        # o1[-1]; single full-lane (Bp,Hp) store

    return kernel


# ------------------------------ weight packing --------------------------------
def _pack_layer_params(p, H, Hp, pad_in):
    """PyTorch GRU layout -> lane-dense packed weights/biases.

    Returns:
      wi : (Din_p, 3*Hp)  input-projection weight, gate g in cols [g*Hp, g*Hp+H)
      wh : (Hp,    3*Hp)  recurrent weight, same column layout
      bgi: (1, 3*Hp)      [b_ir+b_hr | b_iz+b_hz | b_in]   (added to input proj)
      bgh: (1, 3*Hp)      [    0     |     0     | b_hn]   (added to h @ wh)
    Padded rows/columns are zero, so padded lanes of h stay exactly zero.
    """
    w_ih = jnp.asarray(p["w_ih"], jnp.float32)                 # (3H, Din)
    w_hh = jnp.asarray(p["w_hh"], jnp.float32)                 # (3H, H)
    b_ih = jnp.asarray(p["b_ih"], jnp.float32).reshape(3, H)
    b_hh = jnp.asarray(p["b_hh"], jnp.float32).reshape(3, H)
    d_in = w_ih.shape[1]
    d_in_p = Hp if pad_in else d_in

    def pack_w(w, din, din_p):
        wt = jnp.transpose(w.reshape(3, H, din), (0, 2, 1))     # (3, din, H)
        out = jnp.zeros((din_p, 3 * Hp), jnp.float32)
        for g in range(3):
            out = out.at[:din, g * Hp:g * Hp + H].set(wt[g])
        return out

    def pack_b(rows):
        out = jnp.zeros((1, 3 * Hp), jnp.float32)
        for g, row in enumerate(rows):
            if row is not None:
                out = out.at[0, g * Hp:g * Hp + H].set(row)
        return out

    wi = pack_w(w_ih, d_in, d_in_p)
    wh = pack_w(w_hh, H, Hp)
    bgi = pack_b([b_ih[0] + b_hh[0], b_ih[1] + b_hh[1], b_ih[2]])
    bgh = pack_b([None, None, b_hh[2]])
    return wi, wh, bgi, bgh


# ------------------------------ wrapper --------------------------------------
def net_forward(x, gru_params, compute_dtype=jnp.bfloat16):
    """x: (T, B, n_input) -> (B, n_hidden)  ==  o1[-1] of torch GRU (h_0 = 0)."""
    x = jnp.asarray(x, jnp.float32)
    T, B, _ = x.shape
    L = len(gru_params)
    H = gru_params[0]["w_hh"].shape[1]

    # Lane/sublane-dense padded sizes (feedback: pad gates to full 128-lane
    # blocks, keep batch on full 8-sublane tiles).
    Hp = max(_round_up(H, 128), 128)
    Bp = max(_round_up(B, 8), 8)

    packed = [_pack_layer_params(p, H, Hp, pad_in=(l > 0))
              for l, p in enumerate(gru_params)]

    wh_all = jnp.stack([pk[1] for pk in packed]).astype(compute_dtype)  # (L,Hp,3Hp)
    bgh_all = jnp.stack([pk[3] for pk in packed])                       # (L,1,3Hp) f32

    # Layer-0 input projection for all T steps: no h dependence -> hoisted off
    # the serial path as one batched XLA pre-pass (f32, exact).  Laid out as a
    # single (T, Bp, 3Hp) slab -> one full-lane load per recurrence step.
    x_p = jnp.zeros((T, Bp, x.shape[2]), jnp.float32).at[:, :B, :].set(x)
    gi0 = jnp.einsum("tbd,dg->tbg", x_p, packed[0][0]) + packed[0][2]

    inputs = [gi0, wh_all, bgh_all]
    if L > 1:
        wi_all = jnp.stack([pk[0] for pk in packed[1:]]).astype(compute_dtype)
        bgi_all = jnp.stack([pk[2] for pk in packed[1:]])
        inputs += [wi_all, bgi_all]

    kernel = _make_wavefront_gru_kernel(L, T, Bp, Hp, compute_dtype)

    # NOTE: at realistic batch sizes, add a batch-parallel grid axis
    # (dimension_semantics=("parallel",)) so v7x's second TensorCore is used,
    # and time-chunk gi0 if T*Bp*3Hp outgrows VMEM.  Not worth it at B=2.
    out = pl.pallas_call(
        kernel,
        out_shape=jax.ShapeDtypeStruct((Bp, Hp), jnp.float32),
        in_specs=[pl.BlockSpec(memory_space=pltpu.MemorySpace.VMEM)] * len(inputs),
        out_specs=pl.BlockSpec(memory_space=pltpu.MemorySpace.VMEM),
        compiler_params=pltpu.CompilerParams(vmem_limit_bytes=32 * 1024 * 1024),
    )(*inputs)

    return out[:B, :H]      # drop lane/sublane padding


# ------------------------------ param init -----------------------------------
def init_params(key, n_input, n_hidden, n_layer):
    """Deterministic param init matching PyTorch GRU shapes (uniform +-1/sqrt(H))."""
    params = []
    k = 1.0 / jnp.sqrt(jnp.float32(n_hidden))
    for layer in range(n_layer):
        d_in = n_input if layer == 0 else n_hidden
        key, k1, k2, k3, k4 = jax.random.split(key, 5)
        params.append(dict(
            w_ih=jax.random.uniform(k1, (3 * n_hidden, d_in), jnp.float32, -k, k),
            w_hh=jax.random.uniform(k2, (3 * n_hidden, n_hidden), jnp.float32, -k, k),
            b_ih=jax.random.uniform(k3, (3 * n_hidden,), jnp.float32, -k, k),
            b_hh=jax.random.uniform(k4, (3 * n_hidden,), jnp.float32, -k, k),
        ))
    # W2 = Linear(n_hidden, 2) exists in Net.__init__ but is unused in forward().
    key, k5, k6 = jax.random.split(key, 3)
    linear = dict(
        w=jax.random.uniform(k5, (2, n_hidden), jnp.float32, -k, k),
        b=jax.random.uniform(k6, (2,), jnp.float32, -k, k),
    )
    return params, linear


# --------------------------- pure-JAX reference -------------------------------
def gru_layer_ref(x_seq, w_ih, w_hh, b_ih, b_hh):
    H = w_ih.shape[0] // 3
    B = x_seq.shape[1]

    def step(h, x):
        gi = x @ w_ih.T + b_ih
        gh = h @ w_hh.T + b_hh
        i_r, i_z, i_n = gi[:, :H], gi[:, H:2 * H], gi[:, 2 * H:]
        h_r, h_z, h_n = gh[:, :H], gh[:, H:2 * H], gh[:, 2 * H:]
        r = jax.nn.sigmoid(i_r + h_r)
        z = jax.nn.sigmoid(i_z + h_z)
        n = jnp.tanh(i_n + r * h_n)
        h_new = (1.0 - z) * n + z * h
        return h_new, h_new

    h0 = jnp.zeros((B, H), jnp.float32)
    _, out = lax.scan(step, h0, x_seq)
    return out


def net_forward_ref(x, gru_params):
    h_seq = x
    for p in gru_params:
        h_seq = gru_layer_ref(h_seq, p["w_ih"], p["w_hh"], p["b_ih"], p["b_hh"])
    return h_seq[-1]


# ----------------------------------- main -------------------------------------
if __name__ == "__main__":
    n_input, n_hidden, n_layer = 4, 32, 2
    seq_len, batch = 8, 2

    key = jax.random.PRNGKey(0)
    key, kx = jax.random.split(key)
    x = jax.random.normal(kx, (seq_len, batch, n_input), jnp.float32)

    gru_params, _linear_unused = init_params(key, n_input, n_hidden, n_layer)

    ref = net_forward_ref(x, gru_params)

    # f32 mode: strict structural/numerical check against the PyTorch-equivalent ref.
    out_f32 = jax.jit(functools.partial(net_forward, compute_dtype=jnp.float32))(
        x, gru_params)
    out_f32 = jax.block_until_ready(out_f32)
    assert out_f32.shape == (batch, n_hidden)
    assert jnp.allclose(out_f32, ref, atol=1e-4, rtol=1e-4), "f32 mismatch vs reference"

    # bf16-MXU mode (default): matmul operands in bf16, f32 accumulate; small
    # accumulated rounding over T steps is expected -> looser tolerance.
    out_bf16 = jax.jit(functools.partial(net_forward, compute_dtype=jnp.bfloat16))(
        x, gru_params)
    out_bf16 = jax.block_until_ready(out_bf16)
    assert out_bf16.shape == (batch, n_hidden)
    assert jnp.allclose(out_bf16, ref, atol=5e-2, rtol=5e-2), "bf16 mismatch vs reference"

    print("KERNEL_OK")
</pallas_src>

<mosaic_0001>
module attributes {stable_mosaic.version = 11 : i64} {
  func.func @kernel(%arg0: memref<8x8x384xf32, #tpu.memory_space<vmem>>, %arg1: memref<2x128x384xf32, #tpu.memory_space<vmem>>, %arg2: memref<2x1x384xf32, #tpu.memory_space<vmem>>, %arg3: memref<1x128x384xf32, #tpu.memory_space<vmem>>, %arg4: memref<1x1x384xf32, #tpu.memory_space<vmem>>, %arg5: memref<8x128xf32, #tpu.memory_space<vmem>>) attributes {dimension_semantics = [], scalar_prefetch = 0 : i64, scratch_operands = 0 : i64, tpu.core_type = #tpu.core_type<tc>} {
    %cst = arith.constant 0.000000e+00 : f32
    %0 = vector.broadcast %cst : f32 to vector<8x128xf32>
    %cst_0 = arith.constant 0.000000e+00 : f32
    %1 = vector.broadcast %cst_0 : f32 to vector<8x128xf32>
    %c0 = arith.constant 0 : index
    %c0_1 = arith.constant 0 : index
    %c0_2 = arith.constant 0 : index
    %2 = vector.load %arg0[%c0, %c0_1, %c0_2] : memref<8x8x384xf32, #tpu.memory_space<vmem>>, vector<1x8x384xf32>
    %3 = vector.shape_cast %2 : vector<1x8x384xf32> to vector<8x384xf32>
    %c0_3 = arith.constant 0 : index
    %c0_4 = arith.constant 0 : index
    %c0_5 = arith.constant 0 : index
    %4 = vector.load %arg1[%c0_3, %c0_4, %c0_5] : memref<2x128x384xf32, #tpu.memory_space<vmem>>, vector<1x128x384xf32>
    %5 = vector.shape_cast %4 : vector<1x128x384xf32> to vector<128x384xf32>
    %cst_6 = arith.constant dense<0.000000e+00> : vector<8x384xf32>
    %6 = tpu.matmul %0, %5, %cst_6 {dimension_numbers = #tpu.dot_dimension_numbers<[1], [0], [0], [1], [0, 0, 1, 1], [], []>} : vector<8x128xf32>, vector<128x384xf32>, vector<8x384xf32> -> vector<8x384xf32>
    %c0_7 = arith.constant 0 : index
    %c0_8 = arith.constant 0 : index
    %c0_9 = arith.constant 0 : index
    %7 = vector.load %arg2[%c0_7, %c0_8, %c0_9] : memref<2x1x384xf32, #tpu.memory_space<vmem>>, vector<1x1x384xf32>
    %8 = vector.shape_cast %7 : vector<1x1x384xf32> to vector<1x384xf32>
    %9 = vector.broadcast %8 : vector<1x384xf32> to vector<8x384xf32>
    %10 = arith.addf %6, %9 : vector<8x384xf32>
    %11 = vector.extract_strided_slice %3 {offsets = [0, 0], sizes = [8, 256], strides = [1, 1]} : vector<8x384xf32> to vector<8x256xf32>
    %12 = vector.extract_strided_slice %10 {offsets = [0, 0], sizes = [8, 256], strides = [1, 1]} : vector<8x384xf32> to vector<8x256xf32>
    %13 = arith.addf %11, %12 : vector<8x256xf32>
    %14 = arith.negf %13 : vector<8x256xf32>
    %15 = math.exp %14 : vector<8x256xf32>
    %cst_10 = arith.constant 1.000000e+00 : f32
    %16 = vector.broadcast %cst_10 : f32 to vector<8x256xf32>
    %17 = arith.addf %16, %15 : vector<8x256xf32>
    %18 = arith.divf %16, %17 : vector<8x256xf32>
    %19 = vector.extract_strided_slice %18 {offsets = [0, 0], sizes = [8, 128], strides = [1, 1]} : vector<8x256xf32> to vector<8x128xf32>
    %20 = vector.extract_strided_slice %18 {offsets = [0, 128], sizes = [8, 128], strides = [1, 1]} : vector<8x256xf32> to vector<8x128xf32>
    %21 = vector.extract_strided_slice %3 {offsets = [0, 256], sizes = [8, 128], strides = [1, 1]} : vector<8x384xf32> to vector<8x128xf32>
    %22 = vector.extract_strided_slice %10 {offsets = [0, 256], sizes = [8, 128], strides = [1, 1]} : vector<8x384xf32> to vector<8x128xf32>
    %23 = arith.mulf %19, %22 : vector<8x128xf32>
    %24 = arith.addf %21, %23 : vector<8x128xf32>
    %25 = math.tanh %24 : vector<8x128xf32>
    %cst_11 = arith.constant 1.000000e+00 : f32
    %26 = vector.broadcast %cst_11 : f32 to vector<8x128xf32>
    %27 = arith.subf %26, %20 : vector<8x128xf32>
    %28 = arith.mulf %27, %25 : vector<8x128xf32>
    %29 = arith.mulf %20, %0 : vector<8x128xf32>
    %30 = arith.addf %28, %29 : vector<8x128xf32>
    %c0_12 = arith.constant 0 : index
    %c0_13 = arith.constant 0 : index
    %c0_14 = arith.constant 0 : index
    %31 = vector.load %arg3[%c0_12, %c0_13, %c0_14] : memref<1x128x384xf32, #tpu.memory_space<vmem>>, vector<1x128x384xf32>
    %32 = vector.shape_cast %31 : vector<1x128x384xf32> to vector<128x384xf32>
    %cst_15 = arith.constant dense<0.000000e+00> : vector<8x384xf32>
    %33 = tpu.matmul %30, %32, %cst_15 {dimension_numbers = #tpu.dot_dimension_numbers<[1], [0], [0], [1], [0, 0, 1, 1], [], []>} : vector<8x128xf32>, vector<128x384xf32>, vector<8x384xf32> -> vector<8x384xf32>
    %c0_16 = arith.constant 0 : index
    %c0_17 = arith.constant 0 : index
    %c0_18 = arith.constant 0 : index
    %34 = vector.load %arg4[%c0_16, %c0_17, %c0_18] : memref<1x1x384xf32, #tpu.memory_space<vmem>>, vector<1x1x384xf32>
    %35 = vector.shape_cast %34 : vector<1x1x384xf32> to vector<1x384xf32>
    %36 = vector.broadcast %35 : vector<1x384xf32> to vector<8x384xf32>
    %37 = arith.addf %33, %36 : vector<8x384xf32>
    %c1_i32 = arith.constant 1 : i32
    %c0_i32 = arith.constant 0 : i32
    %38 = arith.subi %c1_i32, %c0_i32 : i32
    %39 = arith.index_cast %38 : i32 to index
    %c0_19 = arith.constant 0 : index
    %c0_20 = arith.constant 0 : index
    %40 = vector.load %arg0[%39, %c0_19, %c0_20] : memref<8x8x384xf32, #tpu.memory_space<vmem>>, vector<1x8x384xf32>
    %41 = vector.shape_cast %40 : vector<1x8x384xf32> to vector<8x384xf32>
    %c0_21 = arith.constant 0 : index
    %c0_22 = arith.constant 0 : index
    %c0_23 = arith.constant 0 : index
    %42 = vector.load %arg1[%c0_21, %c0_22, %c0_23] : memref<2x128x384xf32, #tpu.memory_space<vmem>>, vector<1x128x384xf32>
    %43 = vector.shape_cast %42 : vector<1x128x384xf32> to vector<128x384xf32>
    %cst_24 = arith.constant dense<0.000000e+00> : vector<8x384xf32>
    %44 = tpu.matmul %30, %43, %cst_24 {dimension_numbers = #tpu.dot_dimension_numbers<[1], [0], [0], [1], [0, 0, 1, 1], [], []>} : vector<8x128xf32>, vector<128x384xf32>, vector<8x384xf32> -> vector<8x384xf32>
    %c0_25 = arith.constant 0 : index
    %c0_26 = arith.constant 0 : index
    %c0_27 = arith.constant 0 : index
    %45 = vector.load %arg2[%c0_25, %c0_26, %c0_27] : memref<2x1x384xf32, #tpu.memory_space<vmem>>, vector<1x1x384xf32>
    %46 = vector.shape_cast %45 : vector<1x1x384xf32> to vector<1x384xf32>
    %47 = vector.broadcast %46 : vector<1x384xf32> to vector<8x384xf32>
    %48 = arith.addf %44, %47 : vector<8x384xf32>
    %49 = vector.extract_strided_slice %41 {offsets = [0, 0], sizes = [8, 256], strides = [1, 1]} : vector<8x384xf32> to vector<8x256xf32>
    %50 = vector.extract_strided_slice %48 {offsets = [0, 0], sizes = [8, 256], strides = [1, 1]} : vector<8x384xf32> to vector<8x256xf32>
    %51 = arith.addf %49, %50 : vector<8x256xf32>
    %52 = arith.negf %51 : vector<8x256xf32>
    %53 = math.exp %52 : vector<8x256xf32>
    %cst_28 = arith.constant 1.000000e+00 : f32
    %54 = vector.broadcast %cst_28 : f32 to vector<8x256xf32>
    %55 = arith.addf %54, %53 : vector<8x256xf32>
    %56 = arith.divf %54, %55 : vector<8x256xf32>
    %57 = vector.extract_strided_slice %56 {offsets = [0, 0], sizes = [8, 128], strides = [1, 1]} : vector<8x256xf32> to vector<8x128xf32>
    %58 = vector.extract_strided_slice %56 {offsets = [0, 128], sizes = [8, 128], strides = [1, 1]} : vector<8x256xf32> to vector<8x128xf32>
    %59 = vector.extract_strided_slice %41 {offsets = [0, 256], sizes = [8, 128], strides = [1, 1]} : vector<8x384xf32> to vector<8x128xf32>
    %60 = vector.extract_strided_slice %48 {offsets = [0, 256], sizes = [8, 128], strides = [1, 1]} : vector<8x384xf32> to vector<8x128xf32>
    %61 = arith.mulf %57, %60 : vector<8x128xf32>
    %62 = arith.addf %59, %61 : vector<8x128xf32>
    %63 = math.tanh %62 : vector<8x128xf32>
    %cst_29 = arith.constant 1.000000e+00 : f32
    %64 = vector.broadcast %cst_29 : f32 to vector<8x128xf32>
    %65 = arith.subf %64, %58 : vector<8x128xf32>
    %66 = arith.mulf %65, %63 : vector<8x128xf32>
    %67 = arith.mulf %58, %30 : vector<8x128xf32>
    %68 = arith.addf %66, %67 : vector<8x128xf32>
    %c0_30 = arith.constant 0 : index
    %c0_31 = arith.constant 0 : index
    %c0_32 = arith.constant 0 : index
    %69 = vector.load %arg3[%c0_30, %c0_31, %c0_32] : memref<1x128x384xf32, #tpu.memory_space<vmem>>, vector<1x128x384xf32>
    %70 = vector.shape_cast %69 : vector<1x128x384xf32> to vector<128x384xf32>
    %cst_33 = arith.constant dense<0.000000e+00> : vector<8x384xf32>
    %71 = tpu.matmul %68, %70, %cst_33 {dimension_numbers = #tpu.dot_dimension_numbers<[1], [0], [0], [1], [0, 0, 1, 1], [], []>} : vector<8x128xf32>, vector<128x384xf32>, vector<8x384xf32> -> vector<8x384xf32>
    %c0_34 = arith.constant 0 : index
    %c0_35 = arith.constant 0 : index
    %c0_36 = arith.constant 0 : index
    %72 = vector.load %arg4[%c0_34, %c0_35, %c0_36] : memref<1x1x384xf32, #tpu.memory_space<vmem>>, vector<1x1x384xf32>
    %73 = vector.shape_cast %72 : vector<1x1x384xf32> to vector<1x384xf32>
    %74 = vector.broadcast %73 : vector<1x384xf32> to vector<8x384xf32>
    %75 = arith.addf %71, %74 : vector<8x384xf32>
    %c1 = arith.constant 1 : index
    %c0_37 = arith.constant 0 : index
    %c0_38 = arith.constant 0 : index
    %76 = vector.load %arg1[%c1, %c0_37, %c0_38] : memref<2x128x384xf32, #tpu.memory_space<vmem>>, vector<1x128x384xf32>
    %77 = vector.shape_cast %76 : vector<1x128x384xf32> to vector<128x384xf32>
    %cst_39 = arith.constant dense<0.000000e+00> : vector<8x384xf32>
    %78 = tpu.matmul %1, %77, %cst_39 {dimension_numbers = #tpu.dot_dimension_numbers<[1], [0], [0], [1], [0, 0, 1, 1], [], []>} : vector<8x128xf32>, vector<128x384xf32>, vector<8x384xf32> -> vector<8x384xf32>
    %c1_40 = arith.constant 1 : index
    %c0_41 = arith.constant 0 : index
    %c0_42 = arith.constant 0 : index
    %79 = vector.load %arg2[%c1_40, %c0_41, %c0_42] : memref<2x1x384xf32, #tpu.memory_space<vmem>>, vector<1x1x384xf32>
    %80 = vector.shape_cast %79 : vector<1x1x384xf32> to vector<1x384xf32>
    %81 = vector.broadcast %80 : vector<1x384xf32> to vector<8x384xf32>
    %82 = arith.addf %78, %81 : vector<8x384xf32>
    %83 = vector.extract_strided_slice %37 {offsets = [0, 0], sizes = [8, 256], strides = [1, 1]} : vector<8x384xf32> to vector<8x256xf32>
    %84 = vector.extract_strided_slice %82 {offsets = [0, 0], sizes = [8, 256], strides = [1, 1]} : vector<8x384xf32> to vector<8x256xf32>
    %85 = arith.addf %83, %84 : vector<8x256xf32>
    %86 = arith.negf %85 : vector<8x256xf32>
    %87 = math.exp %86 : vector<8x256xf32>
    %cst_43 = arith.constant 1.000000e+00 : f32
    %88 = vector.broadcast %cst_43 : f32 to vector<8x256xf32>
    %89 = arith.addf %88, %87 : vector<8x256xf32>
    %90 = arith.divf %88, %89 : vector<8x256xf32>
    %91 = vector.extract_strided_slice %90 {offsets = [0, 0], sizes = [8, 128], strides = [1, 1]} : vector<8x256xf32> to vector<8x128xf32>
    %92 = vector.extract_strided_slice %90 {offsets = [0, 128], sizes = [8, 128], strides = [1, 1]} : vector<8x256xf32> to vector<8x128xf32>
    %93 = vector.extract_strided_slice %37 {offsets = [0, 256], sizes = [8, 128], strides = [1, 1]} : vector<8x384xf32> to vector<8x128xf32>
    %94 = vector.extract_strided_slice %82 {offsets = [0, 256], sizes = [8, 128], strides = [1, 1]} : vector<8x384xf32> to vector<8x128xf32>
    %95 = arith.mulf %91, %94 : vector<8x128xf32>
    %96 = arith.addf %93, %95 : vector<8x128xf32>
    %97 = math.tanh %96 : vector<8x128xf32>
    %cst_44 = arith.constant 1.000000e+00 : f32
    %98 = vector.broadcast %cst_44 : f32 to vector<8x128xf32>
    %99 = arith.subf %98, %92 : vector<8x128xf32>
    %100 = arith.mulf %99, %97 : vector<8x128xf32>
    %101 = arith.mulf %92, %1 : vector<8x128xf32>
    %102 = arith.addf %100, %101 : vector<8x128xf32>
    %c2_i32 = arith.constant 2 : i32
    %c0_i32_45 = arith.constant 0 : i32
    %103 = arith.subi %c2_i32, %c0_i32_45 : i32
    %104 = arith.index_cast %103 : i32 to index
    %c0_46 = arith.constant 0 : index
    %c0_47 = arith.constant 0 : index
    %105 = vector.load %arg0[%104, %c0_46, %c0_47] : memref<8x8x384xf32, #tpu.memory_space<vmem>>, vector<1x8x384xf32>
    %106 = vector.shape_cast %105 : vector<1x8x384xf32> to vector<8x384xf32>
    %c0_48 = arith.constant 0 : index
    %c0_49 = arith.constant 0 : index
    %c0_50 = arith.constant 0 : index
    %107 = vector.load %arg1[%c0_48, %c0_49, %c0_50] : memref<2x128x384xf32, #tpu.memory_space<vmem>>, vector<1x128x384xf32>
    %108 = vector.shape_cast %107 : vector<1x128x384xf32> to vector<128x384xf32>
    %cst_51 = arith.constant dense<0.000000e+00> : vector<8x384xf32>
    %109 = tpu.matmul %68, %108, %cst_51 {dimension_numbers = #tpu.dot_dimension_numbers<[1], [0], [0], [1], [0, 0, 1, 1], [], []>} : vector<8x128xf32>, vector<128x384xf32>, vector<8x384xf32> -> vector<8x384xf32>
    %c0_52 = arith.constant 0 : index
    %c0_53 = arith.constant 0 : index
    %c0_54 = arith.constant 0 : index
    %110 = vector.load %arg2[%c0_52, %c0_53, %c0_54] : memref<2x1x384xf32, #tpu.memory_space<vmem>>, vector<1x1x384xf32>
    %111 = vector.shape_cast %110 : vector<1x1x384xf32> to vector<1x384xf32>
    %112 = vector.broadcast %111 : vector<1x384xf32> to vector<8x384xf32>
    %113 = arith.addf %109, %112 : vector<8x384xf32>
    %114 = vector.extract_strided_slice %106 {offsets = [0, 0], sizes = [8, 256], strides = [1, 1]} : vector<8x384xf32> to vector<8x256xf32>
    %115 = vector.extract_strided_slice %113 {offsets = [0, 0], sizes = [8, 256], strides = [1, 1]} : vector<8x384xf32> to vector<8x256xf32>
    %116 = arith.addf %114, %115 : vector<8x256xf32>
    %117 = arith.negf %116 : vector<8x256xf32>
    %118 = math.exp %117 : vector<8x256xf32>
    %cst_55 = arith.constant 1.000000e+00 : f32
    %119 = vector.broadcast %cst_55 : f32 to vector<8x256xf32>
    %120 = arith.addf %119, %118 : vector<8x256xf32>
    %121 = arith.divf %119, %120 : vector<8x256xf32>
    %122 = vector.extract_strided_slice %121 {offsets = [0, 0], sizes = [8, 128], strides = [1, 1]} : vector<8x256xf32> to vector<8x128xf32>
    %123 = vector.extract_strided_slice %121 {offsets = [0, 128], sizes = [8, 128], strides = [1, 1]} : vector<8x256xf32> to vector<8x128xf32>
    %124 = vector.extract_strided_slice %106 {offsets = [0, 256], sizes = [8, 128], strides = [1, 1]} : vector<8x384xf32> to vector<8x128xf32>
    %125 = vector.extract_strided_slice %113 {offsets = [0, 256], sizes = [8, 128], strides = [1, 1]} : vector<8x384xf32> to vector<8x128xf32>
    %126 = arith.mulf %122, %125 : vector<8x128xf32>
    %127 = arith.addf %124, %126 : vector<8x128xf32>
    %128 = math.tanh %127 : vector<8x128xf32>
    %cst_56 = arith.constant 1.000000e+00 : f32
    %129 = vector.broadcast %cst_56 : f32 to vector<8x128xf32>
    %130 = arith.subf %129, %123 : vector<8x128xf32>
    %131 = arith.mulf %130, %128 : vector<8x128xf32>
    %132 = arith.mulf %123, %68 : vector<8x128xf32>
    %133 = arith.addf %131, %132 : vector<8x128xf32>
    %c0_57 = arith.constant 0 : index
    %c0_58 = arith.constant 0 : index
    %c0_59 = arith.constant 0 : index
    %134 = vector.load %arg3[%c0_57, %c0_58, %c0_59] : memref<1x128x384xf32, #tpu.memory_space<vmem>>, vector<1x128x384xf32>
    %135 = vector.shape_cast %134 : vector<1x128x384xf32> to vector<128x384xf32>
    %cst_60 = arith.constant dense<0.000000e+00> : vector<8x384xf32>
    %136 = tpu.matmul %133, %135, %cst_60 {dimension_numbers = #tpu.dot_dimension_numbers<[1], [0], [0], [1], [0, 0, 1, 1], [], []>} : vector<8x128xf32>, vector<128x384xf32>, vector<8x384xf32> -> vector<8x384xf32>
    %c0_61 = arith.constant 0 : index
    %c0_62 = arith.constant 0 : index
    %c0_63 = arith.constant 0 : index
    %137 = vector.load %arg4[%c0_61, %c0_62, %c0_63] : memref<1x1x384xf32, #tpu.memory_space<vmem>>, vector<1x1x384xf32>
    %138 = vector.shape_cast %137 : vector<1x1x384xf32> to vector<1x384xf32>
    %139 = vector.broadcast %138 : vector<1x384xf32> to vector<8x384xf32>
    %140 = arith.addf %136, %139 : vector<8x384xf32>
    %c1_64 = arith.constant 1 : index
    %c0_65 = arith.constant 0 : index
    %c0_66 = arith.constant 0 : index
    %141 = vector.load %arg1[%c1_64, %c0_65, %c0_66] : memref<2x128x384xf32, #tpu.memory_space<vmem>>, vector<1x128x384xf32>
    %142 = vector.shape_cast %141 : vector<1x128x384xf32> to vector<128x384xf32>
    %cst_67 = arith.constant dense<0.000000e+00> : vector<8x384xf32>
    %143 = tpu.matmul %102, %142, %cst_67 {dimension_numbers = #tpu.dot_dimension_numbers<[1], [0], [0], [1], [0, 0, 1, 1], [], []>} : vector<8x128xf32>, vector<128x384xf32>, vector<8x384xf32> -> vector<8x384xf32>
    %c1_68 = arith.constant 1 : index
    %c0_69 = arith.constant 0 : index
    %c0_70 = arith.constant 0 : index
    %144 = vector.load %arg2[%c1_68, %c0_69, %c0_70] : memref<2x1x384xf32, #tpu.memory_space<vmem>>, vector<1x1x384xf32>
    %145 = vector.shape_cast %144 : vector<1x1x384xf32> to vector<1x384xf32>
    %146 = vector.broadcast %145 : vector<1x384xf32> to vector<8x384xf32>
    %147 = arith.addf %143, %146 : vector<8x384xf32>
    %148 = vector.extract_strided_slice %75 {offsets = [0, 0], sizes = [8, 256], strides = [1, 1]} : vector<8x384xf32> to vector<8x256xf32>
    %149 = vector.extract_strided_slice %147 {offsets = [0, 0], sizes = [8, 256], strides = [1, 1]} : vector<8x384xf32> to vector<8x256xf32>
    %150 = arith.addf %148, %149 : vector<8x256xf32>
    %151 = arith.negf %150 : vector<8x256xf32>
    %152 = math.exp %151 : vector<8x256xf32>
    %cst_71 = arith.constant 1.000000e+00 : f32
    %153 = vector.broadcast %cst_71 : f32 to vector<8x256xf32>
    %154 = arith.addf %153, %152 : vector<8x256xf32>
    %155 = arith.divf %153, %154 : vector<8x256xf32>
    %156 = vector.extract_strided_slice %155 {offsets = [0, 0], sizes = [8, 128], strides = [1, 1]} : vector<8x256xf32> to vector<8x128xf32>
    %157 = vector.extract_strided_slice %155 {offsets = [0, 128], sizes = [8, 128], strides = [1, 1]} : vector<8x256xf32> to vector<8x128xf32>
    %158 = vector.extract_strided_slice %75 {offsets = [0, 256], sizes = [8, 128], strides = [1, 1]} : vector<8x384xf32> to vector<8x128xf32>
    %159 = vector.extract_strided_slice %147 {offsets = [0, 256], sizes = [8, 128], strides = [1, 1]} : vector<8x384xf32> to vector<8x128xf32>
    %160 = arith.mulf %156, %159 : vector<8x128xf32>
    %161 = arith.addf %158, %160 : vector<8x128xf32>
    %162 = math.tanh %161 : vector<8x128xf32>
    %cst_72 = arith.constant 1.000000e+00 : f32
    %163 = vector.broadcast %cst_72 : f32 to vector<8x128xf32>
    %164 = arith.subf %163, %157 : vector<8x128xf32>
    %165 = arith.mulf %164, %162 : vector<8x128xf32>
    %166 = arith.mulf %157, %102 : vector<8x128xf32>
    %167 = arith.addf %165, %166 : vector<8x128xf32>
    %c3_i32 = arith.constant 3 : i32
    %c0_i32_73 = arith.constant 0 : i32
    %168 = arith.subi %c3_i32, %c0_i32_73 : i32
    %169 = arith.index_cast %168 : i32 to index
    %c0_74 = arith.constant 0 : index
    %c0_75 = arith.constant 0 : index
    %170 = vector.load %arg0[%169, %c0_74, %c0_75] : memref<8x8x384xf32, #tpu.memory_space<vmem>>, vector<1x8x384xf32>
    %171 = vector.shape_cast %170 : vector<1x8x384xf32> to vector<8x384xf32>
    %c0_76 = arith.constant 0 : index
    %c0_77 = arith.constant 0 : index
    %c0_78 = arith.constant 0 : index
    %172 = vector.load %arg1[%c0_76, %c0_77, %c0_78] : memref<2x128x384xf32, #tpu.memory_space<vmem>>, vector<1x128x384xf32>
    %173 = vector.shape_cast %172 : vector<1x128x384xf32> to vector<128x384xf32>
    %cst_79 = arith.constant dense<0.000000e+00> : vector<8x384xf32>
    %174 = tpu.matmul %133, %173, %cst_79 {dimension_numbers = #tpu.dot_dimension_numbers<[1], [0], [0], [1], [0, 0, 1, 1], [], []>} : vector<8x128xf32>, vector<128x384xf32>, vector<8x384xf32> -> vector<8x384xf32>
    %c0_80 = arith.constant 0 : index
    %c0_81 = arith.constant 0 : index
    %c0_82 = arith.constant 0 : index
    %175 = vector.load %arg2[%c0_80, %c0_81, %c0_82] : memref<2x1x384xf32, #tpu.memory_space<vmem>>, vector<1x1x384xf32>
    %176 = vector.shape_cast %175 : vector<1x1x384xf32> to vector<1x384xf32>
    %177 = vector.broadcast %176 : vector<1x384xf32> to vector<8x384xf32>
    %178 = arith.addf %174, %177 : vector<8x384xf32>
    %179 = vector.extract_strided_slice %171 {offsets = [0, 0], sizes = [8, 256], strides = [1, 1]} : vector<8x384xf32> to vector<8x256xf32>
    %180 = vector.extract_strided_slice %178 {offsets = [0, 0], sizes = [8, 256], strides = [1, 1]} : vector<8x384xf32> to vector<8x256xf32>
    %181 = arith.addf %179, %180 : vector<8x256xf32>
    %182 = arith.negf %181 : vector<8x256xf32>
    %183 = math.exp %182 : vector<8x256xf32>
    %cst_83 = arith.constant 1.000000e+00 : f32
    %184 = vector.broadcast %cst_83 : f32 to vector<8x256xf32>
    %185 = arith.addf %184, %183 : vector<8x256xf32>
    %186 = arith.divf %184, %185 : vector<8x256xf32>
    %187 = vector.extract_strided_slice %186 {offsets = [0, 0], sizes = [8, 128], strides = [1, 1]} : vector<8x256xf32> to vector<8x128xf32>
    %188 = vector.extract_strided_slice %186 {offsets = [0, 128], sizes = [8, 128], strides = [1, 1]} : vector<8x256xf32> to vector<8x128xf32>
    %189 = vector.extract_strided_slice %171 {offsets = [0, 256], sizes = [8, 128], strides = [1, 1]} : vector<8x384xf32> to vector<8x128xf32>
    %190 = vector.extract_strided_slice %178 {offsets = [0, 256], sizes = [8, 128], strides = [1, 1]} : vector<8x384xf32> to vector<8x128xf32>
    %191 = arith.mulf %187, %190 : vector<8x128xf32>
    %192 = arith.addf %189, %191 : vector<8x128xf32>
    %193 = math.tanh %192 : vector<8x128xf32>
    %cst_84 = arith.constant 1.000000e+00 : f32
    %194 = vector.broadcast %cst_84 : f32 to vector<8x128xf32>
    %195 = arith.subf %194, %188 : vector<8x128xf32>
    %196 = arith.mulf %195, %193 : vector<8x128xf32>
    %197 = arith.mulf %188, %133 : vector<8x128xf32>
    %198 = arith.addf %196, %197 : vector<8x128xf32>
    %c0_85 = arith.constant 0 : index
    %c0_86 = arith.constant 0 : index
    %c0_87 = arith.constant 0 : index
    %199 = vector.load %arg3[%c0_85, %c0_86, %c0_87] : memref<1x128x384xf32, #tpu.memory_space<vmem>>, vector<1x128x384xf32>
    %200 = vector.shape_cast %199 : vector<1x128x384xf32> to vector<128x384xf32>
    %cst_88 = arith.constant dense<0.000000e+00> : vector<8x384xf32>
    %201 = tpu.matmul %198, %200, %cst_88 {dimension_numbers = #tpu.dot_dimension_numbers<[1], [0], [0], [1], [0, 0, 1, 1], [], []>} : vector<8x128xf32>, vector<128x384xf32>, vector<8x384xf32> -> vector<8x384xf32>
    %c0_89 = arith.constant 0 : index
    %c0_90 = arith.constant 0 : index
    %c0_91 = arith.constant 0 : index
    %202 = vector.load %arg4[%c0_89, %c0_90, %c0_91] : memref<1x1x384xf32, #tpu.memory_space<vmem>>, vector<1x1x384xf32>
    %203 = vector.shape_cast %202 : vector<1x1x384xf32> to vector<1x384xf32>
    %204 = vector.broadcast %203 : vector<1x384xf32> to vector<8x384xf32>
    %205 = arith.addf %201, %204 : vector<8x384xf32>
    %c1_92 = arith.constant 1 : index
    %c0_93 = arith.constant 0 : index
    %c0_94 = arith.constant 0 : index
    %206 = vector.load %arg1[%c1_92, %c0_93, %c0_94] : memref<2x128x384xf32, #tpu.memory_space<vmem>>, vector<1x128x384xf32>
    %207 = vector.shape_cast %206 : vector<1x128x384xf32> to vector<128x384xf32>
    %cst_95 = arith.constant dense<0.000000e+00> : vector<8x384xf32>
    %208 = tpu.matmul %167, %207, %cst_95 {dimension_numbers = #tpu.dot_dimension_numbers<[1], [0], [0], [1], [0, 0, 1, 1], [], []>} : vector<8x128xf32>, vector<128x384xf32>, vector<8x384xf32> -> vector<8x384xf32>
    %c1_96 = arith.constant 1 : index
    %c0_97 = arith.constant 0 : index
    %c0_98 = arith.constant 0 : index
    %209 = vector.load %arg2[%c1_96, %c0_97, %c0_98] : memref<2x1x384xf32, #tpu.memory_space<vmem>>, vector<1x1x384xf32>
    %210 = vector.shape_cast %209 : vector<1x1x384xf32> to vector<1x384xf32>
    %211 = vector.broadcast %210 : vector<1x384xf32> to vector<8x384xf32>
    %212 = arith.addf %208, %211 : vector<8x384xf32>
    %213 = vector.extract_strided_slice %140 {offsets = [0, 0], sizes = [8, 256], strides = [1, 1]} : vector<8x384xf32> to vector<8x256xf32>
    %214 = vector.extract_strided_slice %212 {offsets = [0, 0], sizes = [8, 256], strides = [1, 1]} : vector<8x384xf32> to vector<8x256xf32>
    %215 = arith.addf %213, %214 : vector<8x256xf32>
    %216 = arith.negf %215 : vector<8x256xf32>
    %217 = math.exp %216 : vector<8x256xf32>
    %cst_99 = arith.constant 1.000000e+00 : f32
    %218 = vector.broadcast %cst_99 : f32 to vector<8x256xf32>
    %219 = arith.addf %218, %217 : vector<8x256xf32>
    %220 = arith.divf %218, %219 : vector<8x256xf32>
    %221 = vector.extract_strided_slice %220 {offsets = [0, 0], sizes = [8, 128], strides = [1, 1]} : vector<8x256xf32> to vector<8x128xf32>
    %222 = vector.extract_strided_slice %220 {offsets = [0, 128], sizes = [8, 128], strides = [1, 1]} : vector<8x256xf32> to vector<8x128xf32>
    %223 = vector.extract_strided_slice %140 {offsets = [0, 256], sizes = [8, 128], strides = [1, 1]} : vector<8x384xf32> to vector<8x128xf32>
    %224 = vector.extract_strided_slice %212 {offsets = [0, 256], sizes = [8, 128], strides = [1, 1]} : vector<8x384xf32> to vector<8x128xf32>
    %225 = arith.mulf %221, %224 : vector<8x128xf32>
    %226 = arith.addf %223, %225 : vector<8x128xf32>
    %227 = math.tanh %226 : vector<8x128xf32>
    %cst_100 = arith.constant 1.000000e+00 : f32
    %228 = vector.broadcast %cst_100 : f32 to vector<8x128xf32>
    %229 = arith.subf %228, %222 : vector<8x128xf32>
    %230 = arith.mulf %229, %227 : vector<8x128xf32>
    %231 = arith.mulf %222, %167 : vector<8x128xf32>
    %232 = arith.addf %230, %231 : vector<8x128xf32>
    %c4_i32 = arith.constant 4 : i32
    %c0_i32_101 = arith.constant 0 : i32
    %233 = arith.subi %c4_i32, %c0_i32_101 : i32
    %234 = arith.index_cast %233 : i32 to index
    %c0_102 = arith.constant 0 : index
    %c0_103 = arith.constant 0 : index
    %235 = vector.load %arg0[%234, %c0_102, %c0_103] : memref<8x8x384xf32, #tpu.memory_space<vmem>>, vector<1x8x384xf32>
    %236 = vector.shape_cast %235 : vector<1x8x384xf32> to vector<8x384xf32>
    %c0_104 = arith.constant 0 : index
    %c0_105 = arith.constant 0 : index
    %c0_106 = arith.constant 0 : index
    %237 = vector.load %arg1[%c0_104, %c0_105, %c0_106] : memref<2x128x384xf32, #tpu.memory_space<vmem>>, vector<1x128x384xf32>
    %238 = vector.shape_cast %237 : vector<1x128x384xf32> to vector<128x384xf32>
    %cst_107 = arith.constant dense<0.000000e+00> : vector<8x384xf32>
    %239 = tpu.matmul %198, %238, %cst_107 {dimension_numbers = #tpu.dot_dimension_numbers<[1], [0], [0], [1], [0, 0, 1, 1], [], []>} : vector<8x128xf32>, vector<128x384xf32>, vector<8x384xf32> -> vector<8x384xf32>
    %c0_108 = arith.constant 0 : index
    %c0_109 = arith.constant 0 : index
    %c0_110 = arith.constant 0 : index
    %240 = vector.load %arg2[%c0_108, %c0_109, %c0_110] : memref<2x1x384xf32, #tpu.memory_space<vmem>>, vector<1x1x384xf32>
    %241 = vector.shape_cast %240 : vector<1x1x384xf32> to vector<1x384xf32>
    %242 = vector.broadcast %241 : vector<1x384xf32> to vector<8x384xf32>
    %243 = arith.addf %239, %242 : vector<8x384xf32>
    %244 = vector.extract_strided_slice %236 {offsets = [0, 0], sizes = [8, 256], strides = [1, 1]} : vector<8x384xf32> to vector<8x256xf32>
    %245 = vector.extract_strided_slice %243 {offsets = [0, 0], sizes = [8, 256], strides = [1, 1]} : vector<8x384xf32> to vector<8x256xf32>
    %246 = arith.addf %244, %245 : vector<8x256xf32>
    %247 = arith.negf %246 : vector<8x256xf32>
    %248 = math.exp %247 : vector<8x256xf32>
    %cst_111 = arith.constant 1.000000e+00 : f32
    %249 = vector.broadcast %cst_111 : f32 to vector<8x256xf32>
    %250 = arith.addf %249, %248 : vector<8x256xf32>
    %251 = arith.divf %249, %250 : vector<8x256xf32>
    %252 = vector.extract_strided_slice %251 {offsets = [0, 0], sizes = [8, 128], strides = [1, 1]} : vector<8x256xf32> to vector<8x128xf32>
    %253 = vector.extract_strided_slice %251 {offsets = [0, 128], sizes = [8, 128], strides = [1, 1]} : vector<8x256xf32> to vector<8x128xf32>
    %254 = vector.extract_strided_slice %236 {offsets = [0, 256], sizes = [8, 128], strides = [1, 1]} : vector<8x384xf32> to vector<8x128xf32>
    %255 = vector.extract_strided_slice %243 {offsets = [0, 256], sizes = [8, 128], strides = [1, 1]} : vector<8x384xf32> to vector<8x128xf32>
    %256 = arith.mulf %252, %255 : vector<8x128xf32>
    %257 = arith.addf %254, %256 : vector<8x128xf32>
    %258 = math.tanh %257 : vector<8x128xf32>
    %cst_112 = arith.constant 1.000000e+00 : f32
    %259 = vector.broadcast %cst_112 : f32 to vector<8x128xf32>
    %260 = arith.subf %259, %253 : vector<8x128xf32>
    %261 = arith.mulf %260, %258 : vector<8x128xf32>
    %262 = arith.mulf %253, %198 : vector<8x128xf32>
    %263 = arith.addf %261, %262 : vector<8x128xf32>
    %c0_113 = arith.constant 0 : index
    %c0_114 = arith.constant 0 : index
    %c0_115 = arith.constant 0 : index
    %264 = vector.load %arg3[%c0_113, %c0_114, %c0_115] : memref<1x128x384xf32, #tpu.memory_space<vmem>>, vector<1x128x384xf32>
    %265 = vector.shape_cast %264 : vector<1x128x384xf32> to vector<128x384xf32>
    %cst_116 = arith.constant dense<0.000000e+00> : vector<8x384xf32>
    %266 = tpu.matmul %263, %265, %cst_116 {dimension_numbers = #tpu.dot_dimension_numbers<[1], [0], [0], [1], [0, 0, 1, 1], [], []>} : vector<8x128xf32>, vector<128x384xf32>, vector<8x384xf32> -> vector<8x384xf32>
    %c0_117 = arith.constant 0 : index
    %c0_118 = arith.constant 0 : index
    %c0_119 = arith.constant 0 : index
    %267 = vector.load %arg4[%c0_117, %c0_118, %c0_119] : memref<1x1x384xf32, #tpu.memory_space<vmem>>, vector<1x1x384xf32>
    %268 = vector.shape_cast %267 : vector<1x1x384xf32> to vector<1x384xf32>
    %269 = vector.broadcast %268 : vector<1x384xf32> to vector<8x384xf32>
    %270 = arith.addf %266, %269 : vector<8x384xf32>
    %c1_120 = arith.constant 1 : index
    %c0_121 = arith.constant 0 : index
    %c0_122 = arith.constant 0 : index
    %271 = vector.load %arg1[%c1_120, %c0_121, %c0_122] : memref<2x128x384xf32, #tpu.memory_space<vmem>>, vector<1x128x384xf32>
    %272 = vector.shape_cast %271 : vector<1x128x384xf32> to vector<128x384xf32>
    %cst_123 = arith.constant dense<0.000000e+00> : vector<8x384xf32>
    %273 = tpu.matmul %232, %272, %cst_123 {dimension_numbers = #tpu.dot_dimension_numbers<[1], [0], [0], [1], [0, 0, 1, 1], [], []>} : vector<8x128xf32>, vector<128x384xf32>, vector<8x384xf32> -> vector<8x384xf32>
    %c1_124 = arith.constant 1 : index
    %c0_125 = arith.constant 0 : index
    %c0_126 = arith.constant 0 : index
    %274 = vector.load %arg2[%c1_124, %c0_125, %c0_126] : memref<2x1x384xf32, #tpu.memory_space<vmem>>, vector<1x1x384xf32>
    %275 = vector.shape_cast %274 : vector<1x1x384xf32> to vector<1x384xf32>
    %276 = vector.broadcast %275 : vector<1x384xf32> to vector<8x384xf32>
    %277 = arith.addf %273, %276 : vector<8x384xf32>
    %278 = vector.extract_strided_slice %205 {offsets = [0, 0], sizes = [8, 256], strides = [1, 1]} : vector<8x384xf32> to vector<8x256xf32>
    %279 = vector.extract_strided_slice %277 {offsets = [0, 0], sizes = [8, 256], strides = [1, 1]} : vector<8x384xf32> to vector<8x256xf32>
    %280 = arith.addf %278, %279 : vector<8x256xf32>
    %281 = arith.negf %280 : vector<8x256xf32>
    %282 = math.exp %281 : vector<8x256xf32>
    %cst_127 = arith.constant 1.000000e+00 : f32
    %283 = vector.broadcast %cst_127 : f32 to vector<8x256xf32>
    %284 = arith.addf %283, %282 : vector<8x256xf32>
    %285 = arith.divf %283, %284 : vector<8x256xf32>
    %286 = vector.extract_strided_slice %285 {offsets = [0, 0], sizes = [8, 128], strides = [1, 1]} : vector<8x256xf32> to vector<8x128xf32>
    %287 = vector.extract_strided_slice %285 {offsets = [0, 128], sizes = [8, 128], strides = [1, 1]} : vector<8x256xf32> to vector<8x128xf32>
    %288 = vector.extract_strided_slice %205 {offsets = [0, 256], sizes = [8, 128], strides = [1, 1]} : vector<8x384xf32> to vector<8x128xf32>
    %289 = vector.extract_strided_slice %277 {offsets = [0, 256], sizes = [8, 128], strides = [1, 1]} : vector<8x384xf32> to vector<8x128xf32>
    %290 = arith.mulf %286, %289 : vector<8x128xf32>
    %291 = arith.addf %288, %290 : vector<8x128xf32>
    %292 = math.tanh %291 : vector<8x128xf32>
    %cst_128 = arith.constant 1.000000e+00 : f32
    %293 = vector.broadcast %cst_128 : f32 to vector<8x128xf32>
    %294 = arith.subf %293, %287 : vector<8x128xf32>
    %295 = arith.mulf %294, %292 : vector<8x128xf32>
    %296 = arith.mulf %287, %232 : vector<8x128xf32>
    %297 = arith.addf %295, %296 : vector<8x128xf32>
    %c5_i32 = arith.constant 5 : i32
    %c0_i32_129 = arith.constant 0 : i32
    %298 = arith.subi %c5_i32, %c0_i32_129 : i32
    %299 = arith.index_cast %298 : i32 to index
    %c0_130 = arith.constant 0 : index
    %c0_131 = arith.constant 0 : index
    %300 = vector.load %arg0[%299, %c0_130, %c0_131] : memref<8x8x384xf32, #tpu.memory_space<vmem>>, vector<1x8x384xf32>
    %301 = vector.shape_cast %300 : vector<1x8x384xf32> to vector<8x384xf32>
    %c0_132 = arith.constant 0 : index
    %c0_133 = arith.constant 0 : index
    %c0_134 = arith.constant 0 : index
    %302 = vector.load %arg1[%c0_132, %c0_133, %c0_134] : memref<2x128x384xf32, #tpu.memory_space<vmem>>, vector<1x128x384xf32>
    %303 = vector.shape_cast %302 : vector<1x128x384xf32> to vector<128x384xf32>
    %cst_135 = arith.constant dense<0.000000e+00> : vector<8x384xf32>
    %304 = tpu.matmul %263, %303, %cst_135 {dimension_numbers = #tpu.dot_dimension_numbers<[1], [0], [0], [1], [0, 0, 1, 1], [], []>} : vector<8x128xf32>, vector<128x384xf32>, vector<8x384xf32> -> vector<8x384xf32>
    %c0_136 = arith.constant 0 : index
    %c0_137 = arith.constant 0 : index
    %c0_138 = arith.constant 0 : index
    %305 = vector.load %arg2[%c0_136, %c0_137, %c0_138] : memref<2x1x384xf32, #tpu.memory_space<vmem>>, vector<1x1x384xf32>
    %306 = vector.shape_cast %305 : vector<1x1x384xf32> to vector<1x384xf32>
    %307 = vector.broadcast %306 : vector<1x384xf32> to vector<8x384xf32>
    %308 = arith.addf %304, %307 : vector<8x384xf32>
    %309 = vector.extract_strided_slice %301 {offsets = [0, 0], sizes = [8, 256], strides = [1, 1]} : vector<8x384xf32> to vector<8x256xf32>
    %310 = vector.extract_strided_slice %308 {offsets = [0, 0], sizes = [8, 256], strides = [1, 1]} : vector<8x384xf32> to vector<8x256xf32>
    %311 = arith.addf %309, %310 : vector<8x256xf32>
    %312 = arith.negf %311 : vector<8x256xf32>
    %313 = math.exp %312 : vector<8x256xf32>
    %cst_139 = arith.constant 1.000000e+00 : f32
    %314 = vector.broadcast %cst_139 : f32 to vector<8x256xf32>
    %315 = arith.addf %314, %313 : vector<8x256xf32>
    %316 = arith.divf %314, %315 : vector<8x256xf32>
    %317 = vector.extract_strided_slice %316 {offsets = [0, 0], sizes = [8, 128], strides = [1, 1]} : vector<8x256xf32> to vector<8x128xf32>
    %318 = vector.extract_strided_slice %316 {offsets = [0, 128], sizes = [8, 128], strides = [1, 1]} : vector<8x256xf32> to vector<8x128xf32>
    %319 = vector.extract_strided_slice %301 {offsets = [0, 256], sizes = [8, 128], strides = [1, 1]} : vector<8x384xf32> to vector<8x128xf32>
    %320 = vector.extract_strided_slice %308 {offsets = [0, 256], sizes = [8, 128], strides = [1, 1]} : vector<8x384xf32> to vector<8x128xf32>
    %321 = arith.mulf %317, %320 : vector<8x128xf32>
    %322 = arith.addf %319, %321 : vector<8x128xf32>
    %323 = math.tanh %322 : vector<8x128xf32>
    %cst_140 = arith.constant 1.000000e+00 : f32
    %324 = vector.broadcast %cst_140 : f32 to vector<8x128xf32>
    %325 = arith.subf %324, %318 : vector<8x128xf32>
    %326 = arith.mulf %325, %323 : vector<8x128xf32>
    %327 = arith.mulf %318, %263 : vector<8x128xf32>
    %328 = arith.addf %326, %327 : vector<8x128xf32>
    %c0_141 = arith.constant 0 : index
    %c0_142 = arith.constant 0 : index
    %c0_143 = arith.constant 0 : index
    %329 = vector.load %arg3[%c0_141, %c0_142, %c0_143] : memref<1x128x384xf32, #tpu.memory_space<vmem>>, vector<1x128x384xf32>
    %330 = vector.shape_cast %329 : vector<1x128x384xf32> to vector<128x384xf32>
    %cst_144 = arith.constant dense<0.000000e+00> : vector<8x384xf32>
    %331 = tpu.matmul %328, %330, %cst_144 {dimension_numbers = #tpu.dot_dimension_numbers<[1], [0], [0], [1], [0, 0, 1, 1], [], []>} : vector<8x128xf32>, vector<128x384xf32>, vector<8x384xf32> -> vector<8x384xf32>
    %c0_145 = arith.constant 0 : index
    %c0_146 = arith.constant 0 : index
    %c0_147 = arith.constant 0 : index
    %332 = vector.load %arg4[%c0_145, %c0_146, %c0_147] : memref<1x1x384xf32, #tpu.memory_space<vmem>>, vector<1x1x384xf32>
    %333 = vector.shape_cast %332 : vector<1x1x384xf32> to vector<1x384xf32>
    %334 = vector.broadcast %333 : vector<1x384xf32> to vector<8x384xf32>
    %335 = arith.addf %331, %334 : vector<8x384xf32>
    %c1_148 = arith.constant 1 : index
    %c0_149 = arith.constant 0 : index
    %c0_150 = arith.constant 0 : index
    %336 = vector.load %arg1[%c1_148, %c0_149, %c0_150] : memref<2x128x384xf32, #tpu.memory_space<vmem>>, vector<1x128x384xf32>
    %337 = vector.shape_cast %336 : vector<1x128x384xf32> to vector<128x384xf32>
    %cst_151 = arith.constant dense<0.000000e+00> : vector<8x384xf32>
    %338 = tpu.matmul %297, %337, %cst_151 {dimension_numbers = #tpu.dot_dimension_numbers<[1], [0], [0], [1], [0, 0, 1, 1], [], []>} : vector<8x128xf32>, vector<128x384xf32>, vector<8x384xf32> -> vector<8x384xf32>
    %c1_152 = arith.constant 1 : index
    %c0_153 = arith.constant 0 : index
    %c0_154 = arith.constant 0 : index
    %339 = vector.load %arg2[%c1_152, %c0_153, %c0_154] : memref<2x1x384xf32, #tpu.memory_space<vmem>>, vector<1x1x384xf32>
    %340 = vector.shape_cast %339 : vector<1x1x384xf32> to vector<1x384xf32>
    %341 = vector.broadcast %340 : vector<1x384xf32> to vector<8x384xf32>
    %342 = arith.addf %338, %341 : vector<8x384xf32>
    %343 = vector.extract_strided_slice %270 {offsets = [0, 0], sizes = [8, 256], strides = [1, 1]} : vector<8x384xf32> to vector<8x256xf32>
    %344 = vector.extract_strided_slice %342 {offsets = [0, 0], sizes = [8, 256], strides = [1, 1]} : vector<8x384xf32> to vector<8x256xf32>
    %345 = arith.addf %343, %344 : vector<8x256xf32>
    %346 = arith.negf %345 : vector<8x256xf32>
    %347 = math.exp %346 : vector<8x256xf32>
    %cst_155 = arith.constant 1.000000e+00 : f32
    %348 = vector.broadcast %cst_155 : f32 to vector<8x256xf32>
    %349 = arith.addf %348, %347 : vector<8x256xf32>
    %350 = arith.divf %348, %349 : vector<8x256xf32>
    %351 = vector.extract_strided_slice %350 {offsets = [0, 0], sizes = [8, 128], strides = [1, 1]} : vector<8x256xf32> to vector<8x128xf32>
    %352 = vector.extract_strided_slice %350 {offsets = [0, 128], sizes = [8, 128], strides = [1, 1]} : vector<8x256xf32> to vector<8x128xf32>
    %353 = vector.extract_strided_slice %270 {offsets = [0, 256], sizes = [8, 128], strides = [1, 1]} : vector<8x384xf32> to vector<8x128xf32>
    %354 = vector.extract_strided_slice %342 {offsets = [0, 256], sizes = [8, 128], strides = [1, 1]} : vector<8x384xf32> to vector<8x128xf32>
    %355 = arith.mulf %351, %354 : vector<8x128xf32>
    %356 = arith.addf %353, %355 : vector<8x128xf32>
    %357 = math.tanh %356 : vector<8x128xf32>
    %cst_156 = arith.constant 1.000000e+00 : f32
    %358 = vector.broadcast %cst_156 : f32 to vector<8x128xf32>
    %359 = arith.subf %358, %352 : vector<8x128xf32>
    %360 = arith.mulf %359, %357 : vector<8x128xf32>
    %361 = arith.mulf %352, %297 : vector<8x128xf32>
    %362 = arith.addf %360, %361 : vector<8x128xf32>
    %c6_i32 = arith.constant 6 : i32
    %c0_i32_157 = arith.constant 0 : i32
    %363 = arith.subi %c6_i32, %c0_i32_157 : i32
    %364 = arith.index_cast %363 : i32 to index
    %c0_158 = arith.constant 0 : index
    %c0_159 = arith.constant 0 : index
    %365 = vector.load %arg0[%364, %c0_158, %c0_159] : memref<8x8x384xf32, #tpu.memory_space<vmem>>, vector<1x8x384xf32>
    %366 = vector.shape_cast %365 : vector<1x8x384xf32> to vector<8x384xf32>
    %c0_160 = arith.constant 0 : index
    %c0_161 = arith.constant 0 : index
    %c0_162 = arith.constant 0 : index
    %367 = vector.load %arg1[%c0_160, %c0_161, %c0_162] : memref<2x128x384xf32, #tpu.memory_space<vmem>>, vector<1x128x384xf32>
    %368 = vector.shape_cast %367 : vector<1x128x384xf32> to vector<128x384xf32>
    %cst_163 = arith.constant dense<0.000000e+00> : vector<8x384xf32>
    %369 = tpu.matmul %328, %368, %cst_163 {dimension_numbers = #tpu.dot_dimension_numbers<[1], [0], [0], [1], [0, 0, 1, 1], [], []>} : vector<8x128xf32>, vector<128x384xf32>, vector<8x384xf32> -> vector<8x384xf32>
    %c0_164 = arith.constant 0 : index
    %c0_165 = arith.constant 0 : index
    %c0_166 = arith.constant 0 : index
    %370 = vector.load %arg2[%c0_164, %c0_165, %c0_166] : memref<2x1x384xf32, #tpu.memory_space<vmem>>, vector<1x1x384xf32>
    %371 = vector.shape_cast %370 : vector<1x1x384xf32> to vector<1x384xf32>
    %372 = vector.broadcast %371 : vector<1x384xf32> to vector<8x384xf32>
    %373 = arith.addf %369, %372 : vector<8x384xf32>
    %374 = vector.extract_strided_slice %366 {offsets = [0, 0], sizes = [8, 256], strides = [1, 1]} : vector<8x384xf32> to vector<8x256xf32>
    %375 = vector.extract_strided_slice %373 {offsets = [0, 0], sizes = [8, 256], strides = [1, 1]} : vector<8x384xf32> to vector<8x256xf32>
    %376 = arith.addf %374, %375 : vector<8x256xf32>
    %377 = arith.negf %376 : vector<8x256xf32>
    %378 = math.exp %377 : vector<8x256xf32>
    %cst_167 = arith.constant 1.000000e+00 : f32
    %379 = vector.broadcast %cst_167 : f32 to vector<8x256xf32>
    %380 = arith.addf %379, %378 : vector<8x256xf32>
    %381 = arith.divf %379, %380 : vector<8x256xf32>
    %382 = vector.extract_strided_slice %381 {offsets = [0, 0], sizes = [8, 128], strides = [1, 1]} : vector<8x256xf32> to vector<8x128xf32>
    %383 = vector.extract_strided_slice %381 {offsets = [0, 128], sizes = [8, 128], strides = [1, 1]} : vector<8x256xf32> to vector<8x128xf32>
    %384 = vector.extract_strided_slice %366 {offsets = [0, 256], sizes = [8, 128], strides = [1, 1]} : vector<8x384xf32> to vector<8x128xf32>
    %385 = vector.extract_strided_slice %373 {offsets = [0, 256], sizes = [8, 128], strides = [1, 1]} : vector<8x384xf32> to vector<8x128xf32>
    %386 = arith.mulf %382, %385 : vector<8x128xf32>
    %387 = arith.addf %384, %386 : vector<8x128xf32>
    %388 = math.tanh %387 : vector<8x128xf32>
    %cst_168 = arith.constant 1.000000e+00 : f32
    %389 = vector.broadcast %cst_168 : f32 to vector<8x128xf32>
    %390 = arith.subf %389, %383 : vector<8x128xf32>
    %391 = arith.mulf %390, %388 : vector<8x128xf32>
    %392 = arith.mulf %383, %328 : vector<8x128xf32>
    %393 = arith.addf %391, %392 : vector<8x128xf32>
    %c0_169 = arith.constant 0 : index
    %c0_170 = arith.constant 0 : index
    %c0_171 = arith.constant 0 : index
    %394 = vector.load %arg3[%c0_169, %c0_170, %c0_171] : memref<1x128x384xf32, #tpu.memory_space<vmem>>, vector<1x128x384xf32>
    %395 = vector.shape_cast %394 : vector<1x128x384xf32> to vector<128x384xf32>
    %cst_172 = arith.constant dense<0.000000e+00> : vector<8x384xf32>
    %396 = tpu.matmul %393, %395, %cst_172 {dimension_numbers = #tpu.dot_dimension_numbers<[1], [0], [0], [1], [0, 0, 1, 1], [], []>} : vector<8x128xf32>, vector<128x384xf32>, vector<8x384xf32> -> vector<8x384xf32>
    %c0_173 = arith.constant 0 : index
    %c0_174 = arith.constant 0 : index
    %c0_175 = arith.constant 0 : index
    %397 = vector.load %arg4[%c0_173, %c0_174, %c0_175] : memref<1x1x384xf32, #tpu.memory_space<vmem>>, vector<1x1x384xf32>
    %398 = vector.shape_cast %397 : vector<1x1x384xf32> to vector<1x384xf32>
    %399 = vector.broadcast %398 : vector<1x384xf32> to vector<8x384xf32>
    %400 = arith.addf %396, %399 : vector<8x384xf32>
    %c1_176 = arith.constant 1 : index
    %c0_177 = arith.constant 0 : index
    %c0_178 = arith.constant 0 : index
    %401 = vector.load %arg1[%c1_176, %c0_177, %c0_178] : memref<2x128x384xf32, #tpu.memory_space<vmem>>, vector<1x128x384xf32>
    %402 = vector.shape_cast %401 : vector<1x128x384xf32> to vector<128x384xf32>
    %cst_179 = arith.constant dense<0.000000e+00> : vector<8x384xf32>
    %403 = tpu.matmul %362, %402, %cst_179 {dimension_numbers = #tpu.dot_dimension_numbers<[1], [0], [0], [1], [0, 0, 1, 1], [], []>} : vector<8x128xf32>, vector<128x384xf32>, vector<8x384xf32> -> vector<8x384xf32>
    %c1_180 = arith.constant 1 : index
    %c0_181 = arith.constant 0 : index
    %c0_182 = arith.constant 0 : index
    %404 = vector.load %arg2[%c1_180, %c0_181, %c0_182] : memref<2x1x384xf32, #tpu.memory_space<vmem>>, vector<1x1x384xf32>
    %405 = vector.shape_cast %404 : vector<1x1x384xf32> to vector<1x384xf32>
    %406 = vector.broadcast %405 : vector<1x384xf32> to vector<8x384xf32>
    %407 = arith.addf %403, %406 : vector<8x384xf32>
    %408 = vector.extract_strided_slice %335 {offsets = [0, 0], sizes = [8, 256], strides = [1, 1]} : vector<8x384xf32> to vector<8x256xf32>
    %409 = vector.extract_strided_slice %407 {offsets = [0, 0], sizes = [8, 256], strides = [1, 1]} : vector<8x384xf32> to vector<8x256xf32>
    %410 = arith.addf %408, %409 : vector<8x256xf32>
    %411 = arith.negf %410 : vector<8x256xf32>
    %412 = math.exp %411 : vector<8x256xf32>
    %cst_183 = arith.constant 1.000000e+00 : f32
    %413 = vector.broadcast %cst_183 : f32 to vector<8x256xf32>
    %414 = arith.addf %413, %412 : vector<8x256xf32>
    %415 = arith.divf %413, %414 : vector<8x256xf32>
    %416 = vector.extract_strided_slice %415 {offsets = [0, 0], sizes = [8, 128], strides = [1, 1]} : vector<8x256xf32> to vector<8x128xf32>
    %417 = vector.extract_strided_slice %415 {offsets = [0, 128], sizes = [8, 128], strides = [1, 1]} : vector<8x256xf32> to vector<8x128xf32>
    %418 = vector.extract_strided_slice %335 {offsets = [0, 256], sizes = [8, 128], strides = [1, 1]} : vector<8x384xf32> to vector<8x128xf32>
    %419 = vector.extract_strided_slice %407 {offsets = [0, 256], sizes = [8, 128], strides = [1, 1]} : vector<8x384xf32> to vector<8x128xf32>
    %420 = arith.mulf %416, %419 : vector<8x128xf32>
    %421 = arith.addf %418, %420 : vector<8x128xf32>
    %422 = math.tanh %421 : vector<8x128xf32>
    %cst_184 = arith.constant 1.000000e+00 : f32
    %423 = vector.broadcast %cst_184 : f32 to vector<8x128xf32>
    %424 = arith.subf %423, %417 : vector<8x128xf32>
    %425 = arith.mulf %424, %422 : vector<8x128xf32>
    %426 = arith.mulf %417, %362 : vector<8x128xf32>
    %427 = arith.addf %425, %426 : vector<8x128xf32>
    %c7_i32 = arith.constant 7 : i32
    %c0_i32_185 = arith.constant 0 : i32
    %428 = arith.subi %c7_i32, %c0_i32_185 : i32
    %429 = arith.index_cast %428 : i32 to index
    %c0_186 = arith.constant 0 : index
    %c0_187 = arith.constant 0 : index
    %430 = vector.load %arg0[%429, %c0_186, %c0_187] : memref<8x8x384xf32, #tpu.memory_space<vmem>>, vector<1x8x384xf32>
    %431 = vector.shape_cast %430 : vector<1x8x384xf32> to vector<8x384xf32>
    %c0_188 = arith.constant 0 : index
    %c0_189 = arith.constant 0 : index
    %c0_190 = arith.constant 0 : index
    %432 = vector.load %arg1[%c0_188, %c0_189, %c0_190] : memref<2x128x384xf32, #tpu.memory_space<vmem>>, vector<1x128x384xf32>
    %433 = vector.shape_cast %432 : vector<1x128x384xf32> to vector<128x384xf32>
    %cst_191 = arith.constant dense<0.000000e+00> : vector<8x384xf32>
    %434 = tpu.matmul %393, %433, %cst_191 {dimension_numbers = #tpu.dot_dimension_numbers<[1], [0], [0], [1], [0, 0, 1, 1], [], []>} : vector<8x128xf32>, vector<128x384xf32>, vector<8x384xf32> -> vector<8x384xf32>
    %c0_192 = arith.constant 0 : index
    %c0_193 = arith.constant 0 : index
    %c0_194 = arith.constant 0 : index
    %435 = vector.load %arg2[%c0_192, %c0_193, %c0_194] : memref<2x1x384xf32, #tpu.memory_space<vmem>>, vector<1x1x384xf32>
    %436 = vector.shape_cast %435 : vector<1x1x384xf32> to vector<1x384xf32>
    %437 = vector.broadcast %436 : vector<1x384xf32> to vector<8x384xf32>
    %438 = arith.addf %434, %437 : vector<8x384xf32>
    %439 = vector.extract_strided_slice %431 {offsets = [0, 0], sizes = [8, 256], strides = [1, 1]} : vector<8x384xf32> to vector<8x256xf32>
    %440 = vector.extract_strided_slice %438 {offsets = [0, 0], sizes = [8, 256], strides = [1, 1]} : vector<8x384xf32> to vector<8x256xf32>
    %441 = arith.addf %439, %440 : vector<8x256xf32>
    %442 = arith.negf %441 : vector<8x256xf32>
    %443 = math.exp %442 : vector<8x256xf32>
    %cst_195 = arith.constant 1.000000e+00 : f32
    %444 = vector.broadcast %cst_195 : f32 to vector<8x256xf32>
    %445 = arith.addf %444, %443 : vector<8x256xf32>
    %446 = arith.divf %444, %445 : vector<8x256xf32>
    %447 = vector.extract_strided_slice %446 {offsets = [0, 0], sizes = [8, 128], strides = [1, 1]} : vector<8x256xf32> to vector<8x128xf32>
    %448 = vector.extract_strided_slice %446 {offsets = [0, 128], sizes = [8, 128], strides = [1, 1]} : vector<8x256xf32> to vector<8x128xf32>
    %449 = vector.extract_strided_slice %431 {offsets = [0, 256], sizes = [8, 128], strides = [1, 1]} : vector<8x384xf32> to vector<8x128xf32>
    %450 = vector.extract_strided_slice %438 {offsets = [0, 256], sizes = [8, 128], strides = [1, 1]} : vector<8x384xf32> to vector<8x128xf32>
    %451 = arith.mulf %447, %450 : vector<8x128xf32>
    %452 = arith.addf %449, %451 : vector<8x128xf32>
    %453 = math.tanh %452 : vector<8x128xf32>
    %cst_196 = arith.constant 1.000000e+00 : f32
    %454 = vector.broadcast %cst_196 : f32 to vector<8x128xf32>
    %455 = arith.subf %454, %448 : vector<8x128xf32>
    %456 = arith.mulf %455, %453 : vector<8x128xf32>
    %457 = arith.mulf %448, %393 : vector<8x128xf32>
    %458 = arith.addf %456, %457 : vector<8x128xf32>
    %c0_197 = arith.constant 0 : index
    %c0_198 = arith.constant 0 : index
    %c0_199 = arith.constant 0 : index
    %459 = vector.load %arg3[%c0_197, %c0_198, %c0_199] : memref<1x128x384xf32, #tpu.memory_space<vmem>>, vector<1x128x384xf32>
    %460 = vector.shape_cast %459 : vector<1x128x384xf32> to vector<128x384xf32>
    %cst_200 = arith.constant dense<0.000000e+00> : vector<8x384xf32>
    %461 = tpu.matmul %458, %460, %cst_200 {dimension_numbers = #tpu.dot_dimension_numbers<[1], [0], [0], [1], [0, 0, 1, 1], [], []>} : vector<8x128xf32>, vector<128x384xf32>, vector<8x384xf32> -> vector<8x384xf32>
    %c0_201 = arith.constant 0 : index
    %c0_202 = arith.constant 0 : index
    %c0_203 = arith.constant 0 : index
    %462 = vector.load %arg4[%c0_201, %c0_202, %c0_203] : memref<1x1x384xf32, #tpu.memory_space<vmem>>, vector<1x1x384xf32>
    %463 = vector.shape_cast %462 : vector<1x1x384xf32> to vector<1x384xf32>
    %464 = vector.broadcast %463 : vector<1x384xf32> to vector<8x384xf32>
    %465 = arith.addf %461, %464 : vector<8x384xf32>
    %c1_204 = arith.constant 1 : index
    %c0_205 = arith.constant 0 : index
    %c0_206 = arith.constant 0 : index
    %466 = vector.load %arg1[%c1_204, %c0_205, %c0_206] : memref<2x128x384xf32, #tpu.memory_space<vmem>>, vector<1x128x384xf32>
    %467 = vector.shape_cast %466 : vector<1x128x384xf32> to vector<128x384xf32>
    %cst_207 = arith.constant dense<0.000000e+00> : vector<8x384xf32>
    %468 = tpu.matmul %427, %467, %cst_207 {dimension_numbers = #tpu.dot_dimension_numbers<[1], [0], [0], [1], [0, 0, 1, 1], [], []>} : vector<8x128xf32>, vector<128x384xf32>, vector<8x384xf32> -> vector<8x384xf32>
    %c1_208 = arith.constant 1 : index
    %c0_209 = arith.constant 0 : index
    %c0_210 = arith.constant 0 : index
    %469 = vector.load %arg2[%c1_208, %c0_209, %c0_210] : memref<2x1x384xf32, #tpu.memory_space<vmem>>, vector<1x1x384xf32>
    %470 = vector.shape_cast %469 : vector<1x1x384xf32> to vector<1x384xf32>
    %471 = vector.broadcast %470 : vector<1x384xf32> to vector<8x384xf32>
    %472 = arith.addf %468, %471 : vector<8x384xf32>
    %473 = vector.extract_strided_slice %400 {offsets = [0, 0], sizes = [8, 256], strides = [1, 1]} : vector<8x384xf32> to vector<8x256xf32>
    %474 = vector.extract_strided_slice %472 {offsets = [0, 0], sizes = [8, 256], strides = [1, 1]} : vector<8x384xf32> to vector<8x256xf32>
    %475 = arith.addf %473, %474 : vector<8x256xf32>
    %476 = arith.negf %475 : vector<8x256xf32>
    %477 = math.exp %476 : vector<8x256xf32>
    %cst_211 = arith.constant 1.000000e+00 : f32
    %478 = vector.broadcast %cst_211 : f32 to vector<8x256xf32>
    %479 = arith.addf %478, %477 : vector<8x256xf32>
    %480 = arith.divf %478, %479 : vector<8x256xf32>
    %481 = vector.extract_strided_slice %480 {offsets = [0, 0], sizes = [8, 128], strides = [1, 1]} : vector<8x256xf32> to vector<8x128xf32>
    %482 = vector.extract_strided_slice %480 {offsets = [0, 128], sizes = [8, 128], strides = [1, 1]} : vector<8x256xf32> to vector<8x128xf32>
    %483 = vector.extract_strided_slice %400 {offsets = [0, 256], sizes = [8, 128], strides = [1, 1]} : vector<8x384xf32> to vector<8x128xf32>
    %484 = vector.extract_strided_slice %472 {offsets = [0, 256], sizes = [8, 128], strides = [1, 1]} : vector<8x384xf32> to vector<8x128xf32>
    %485 = arith.mulf %481, %484 : vector<8x128xf32>
    %486 = arith.addf %483, %485 : vector<8x128xf32>
    %487 = math.tanh %486 : vector<8x128xf32>
    %cst_212 = arith.constant 1.000000e+00 : f32
    %488 = vector.broadcast %cst_212 : f32 to vector<8x128xf32>
    %489 = arith.subf %488, %482 : vector<8x128xf32>
    %490 = arith.mulf %489, %487 : vector<8x128xf32>
    %491 = arith.mulf %482, %427 : vector<8x128xf32>
    %492 = arith.addf %490, %491 : vector<8x128xf32>
    %c7_i32_213 = arith.constant 7 : i32
    %c1_214 = arith.constant 1 : index
    %c0_215 = arith.constant 0 : index
    %c0_216 = arith.constant 0 : index
    %493 = vector.load %arg1[%c1_214, %c0_215, %c0_216] : memref<2x128x384xf32, #tpu.memory_space<vmem>>, vector<1x128x384xf32>
    %494 = vector.shape_cast %493 : vector<1x128x384xf32> to vector<128x384xf32>
    %cst_217 = arith.constant dense<0.000000e+00> : vector<8x384xf32>
    %495 = tpu.matmul %492, %494, %cst_217 {dimension_numbers = #tpu.dot_dimension_numbers<[1], [0], [0], [1], [0, 0, 1, 1], [], []>} : vector<8x128xf32>, vector<128x384xf32>, vector<8x384xf32> -> vector<8x384xf32>
    %c1_218 = arith.constant 1 : index
    %c0_219 = arith.constant 0 : index
    %c0_220 = arith.constant 0 : index
    %496 = vector.load %arg2[%c1_218, %c0_219, %c0_220] : memref<2x1x384xf32, #tpu.memory_space<vmem>>, vector<1x1x384xf32>
    %497 = vector.shape_cast %496 : vector<1x1x384xf32> to vector<1x384xf32>
    %498 = vector.broadcast %497 : vector<1x384xf32> to vector<8x384xf32>
    %499 = arith.addf %495, %498 : vector<8x384xf32>
    %500 = vector.extract_strided_slice %465 {offsets = [0, 0], sizes = [8, 256], strides = [1, 1]} : vector<8x384xf32> to vector<8x256xf32>
    %501 = vector.extract_strided_slice %499 {offsets = [0, 0], sizes = [8, 256], strides = [1, 1]} : vector<8x384xf32> to vector<8x256xf32>
    %502 = arith.addf %500, %501 : vector<8x256xf32>
    %503 = arith.negf %502 : vector<8x256xf32>
    %504 = math.exp %503 : vector<8x256xf32>
    %cst_221 = arith.constant 1.000000e+00 : f32
    %505 = vector.broadcast %cst_221 : f32 to vector<8x256xf32>
    %506 = arith.addf %505, %504 : vector<8x256xf32>
    %507 = arith.divf %505, %506 : vector<8x256xf32>
    %508 = vector.extract_strided_slice %507 {offsets = [0, 0], sizes = [8, 128], strides = [1, 1]} : vector<8x256xf32> to vector<8x128xf32>
    %509 = vector.extract_strided_slice %507 {offsets = [0, 128], sizes = [8, 128], strides = [1, 1]} : vector<8x256xf32> to vector<8x128xf32>
    %510 = vector.extract_strided_slice %465 {offsets = [0, 256], sizes = [8, 128], strides = [1, 1]} : vector<8x384xf32> to vector<8x128xf32>
    %511 = vector.extract_strided_slice %499 {offsets = [0, 256], sizes = [8, 128], strides = [1, 1]} : vector<8x384xf32> to vector<8x128xf32>
    %512 = arith.mulf %508, %511 : vector<8x128xf32>
    %513 = arith.addf %510, %512 : vector<8x128xf32>
    %514 = math.tanh %513 : vector<8x128xf32>
    %cst_222 = arith.constant 1.000000e+00 : f32
    %515 = vector.broadcast %cst_222 : f32 to vector<8x128xf32>
    %516 = arith.subf %515, %509 : vector<8x128xf32>
    %517 = arith.mulf %516, %514 : vector<8x128xf32>
    %518 = arith.mulf %509, %492 : vector<8x128xf32>
    %519 = arith.addf %517, %518 : vector<8x128xf32>
    %c0_223 = arith.constant 0 : index
    %c0_224 = arith.constant 0 : index
    %520 = vector.load %arg5[%c0_223, %c0_224] : memref<8x128xf32, #tpu.memory_space<vmem>>, vector<8x128xf32>
    tpu.vector_store %arg5[%c0_223, %c0_224], %519 {strides = array<i32>} : memref<8x128xf32, #tpu.memory_space<vmem>>, vector<8x128xf32>,
    return
  }
}

</mosaic_0001>

<llo_original>
// kernel: net_forward.1
$region0: #{net_forward.1}
  #allocation0 [shape = 'u32[]', space=smem, size = 0x4, offset = 0x4, fixed_abs, tag = 'smem constant byte address 0x4 - core index']
  #allocation1 [shape = 'u32[144,128]{1,0:T(1,128)}', space=vmem, size = 0x12000, scoped, tag = 'internal scratch']
  %s0 = inlined_call_operand.vmem [shape: f32[8,8,384], index: 0, kind: input, shape index: {}]
  %s1 = inlined_call_operand.vmem [shape: f32[2,128,384], index: 1, kind: input, shape index: {}]
  %s2 = inlined_call_operand.vmem [shape: f32[2,1,384], index: 2, kind: input, shape index: {}]
  %s3 = inlined_call_operand.vmem [shape: f32[1,128,384], index: 3, kind: input, shape index: {}]
  %s4 = inlined_call_operand.vmem [shape: f32[1,1,384], index: 4, kind: input, shape index: {}]
  %s5 = inlined_call_operand.vmem [shape: f32[8,128], index: 5, kind: output, shape index: {}]
  %s6 = sld [smem:[#allocation0]]
  $region30: #{net_forward.1} parent=0
    _
  %s8 = ssub.s32 1, %s6
  %s9 = scalar_select 0, %s8, %s6
  // Predicated region
  $region2: #{net_forward.1} parent=0 // pred_check
    _
  $region3: #{net_forward.1} parent=0 // pred_check_branch
    %11 = sbr.rel (0) target = $region5
  $region4: #{net_forward.1} parent=0 // pred_region
    _
  $region5: #{net_forward.1} parent=0 // pred_fallthru
    _
  // Predicated region
  $region6: #{net_forward.1} parent=0 // pred_check
    _
  $region7: #{net_forward.1} parent=0 // pred_check_branch
    %13 = sbr.rel (0) target = $region9
  $region8: #{net_forward.1} parent=0 // pred_region
    _
  $region9: #{net_forward.1} parent=0 // pred_fallthru
    _
  // Predicated region
  $region10: #{net_forward.1} parent=0 // pred_check
    _
  $region11: #{net_forward.1} parent=0 // pred_check_branch
    %15 = sbr.rel (0) target = $region13
  $region12: #{net_forward.1} parent=0 // pred_region
    _
  $region13: #{net_forward.1} parent=0 // pred_fallthru
    _
  // Predicated region
  $region14: #{net_forward.1} parent=0 // pred_check
    _
  $region15: #{net_forward.1} parent=0 // pred_check_branch
    %17 = sbr.rel (0) target = $region17
  $region16: #{net_forward.1} parent=0 // pred_region
    _
  $region17: #{net_forward.1} parent=0 // pred_fallthru
    _
  // Predicated region
  $region18: #{net_forward.1} parent=0 // pred_check
    _
  $region19: #{net_forward.1} parent=0 // pred_check_branch
    %19 = sbr.rel (0) target = $region21
  $region20: #{net_forward.1} parent=0 // pred_region
    _
  $region21: #{net_forward.1} parent=0 // pred_fallthru
    _
  %v20 = vld [vmem:[%s0] sm:$0xff]
  %v21 = vld [vmem:[%s0 + $0x8] sm:$0xff]
  %v22 = vld [vmem:[%s0 + $0x10] sm:$0xff]
  %v23 = vld [vmem:[%s1] sm:$0xff]
  %v24 = vld [vmem:[%s1 + $0x8] sm:$0xff]
  %v25 = vld [vmem:[%s1 + $0x10] sm:$0xff]
  %v26 = vld [vmem:[%s1 + $0x18] sm:$0xff]
  %v27 = vld [vmem:[%s1 + $0x20] sm:$0xff]
  %v28 = vld [vmem:[%s1 + $0x28] sm:$0xff]
  %v29 = vld [vmem:[%s1 + $0x30] sm:$0xff]
  %v30 = vld [vmem:[%s1 + $0x38] sm:$0xff]
  %v31 = vld [vmem:[%s1 + $0x40] sm:$0xff]
  %v32 = vld [vmem:[%s1 + $0x48] sm:$0xff]
  %v33 = vld [vmem:[%s1 + $0x50] sm:$0xff]
  %v34 = vld [vmem:[%s1 + $0x58] sm:$0xff]
  %v35 = vld [vmem:[%s1 + $0x60] sm:$0xff]
  %v36 = vld [vmem:[%s1 + $0x68] sm:$0xff]
  %v37 = vld [vmem:[%s1 + $0x70] sm:$0xff]
  %v38 = vld [vmem:[%s1 + $0x78] sm:$0xff]
  %v39 = vld [vmem:[%s1 + $0x80] sm:$0xff]
  %v40 = vld [vmem:[%s1 + $0x88] sm:$0xff]
  %v41 = vld [vmem:[%s1 + $0x90] sm:$0xff]
  %v42 = vld [vmem:[%s1 + $0x98] sm:$0xff]
  %v43 = vld [vmem:[%s1 + $0xa0] sm:$0xff]
  %v44 = vld [vmem:[%s1 + $0xa8] sm:$0xff]
  %v45 = vld [vmem:[%s1 + $0xb0] sm:$0xff]
  %v46 = vld [vmem:[%s1 + $0xb8] sm:$0xff]
  %v47 = vld [vmem:[%s1 + $0xc0] sm:$0xff]
  %v48 = vld [vmem:[%s1 + $0xc8] sm:$0xff]
  %v49 = vld [vmem:[%s1 + $0xd0] sm:$0xff]
  %v50 = vld [vmem:[%s1 + $0xd8] sm:$0xff]
  %v51 = vld [vmem:[%s1 + $0xe0] sm:$0xff]
  %v52 = vld [vmem:[%s1 + $0xe8] sm:$0xff]
  %v53 = vld [vmem:[%s1 + $0xf0] sm:$0xff]
  %v54 = vld [vmem:[%s1 + $0xf8] sm:$0xff]
  %v55 = vld [vmem:[%s1 + $0x100] sm:$0xff]
  %v56 = vld [vmem:[%s1 + $0x108] sm:$0xff]
  %v57 = vld [vmem:[%s1 + $0x110] sm:$0xff]
  %v58 = vld [vmem:[%s1 + $0x118] sm:$0xff]
  %v59 = vld [vmem:[%s1 + $0x120] sm:$0xff]
  %v60 = vld [vmem:[%s1 + $0x128] sm:$0xff]
  %v61 = vld [vmem:[%s1 + $0x130] sm:$0xff]
  %v62 = vld [vmem:[%s1 + $0x138] sm:$0xff]
  %v63 = vld [vmem:[%s1 + $0x140] sm:$0xff]
  %v64 = vld [vmem:[%s1 + $0x148] sm:$0xff]
  %v65 = vld [vmem:[%s1 + $0x150] sm:$0xff]
  %v66 = vld [vmem:[%s1 + $0x158] sm:$0xff]
  %v67 = vld [vmem:[%s1 + $0x160] sm:$0xff]
  %v68 = vld [vmem:[%s1 + $0x168] sm:$0xff]
  %v69 = vld [vmem:[%s1 + $0x170] sm:$0xff]
  %v70 = vld [vmem:[%s1 + $0x178] sm:$0xff]
  %v71 = vld [vmem:[%s2] sm:$0x7]
  %v73 = vlaneseq
  %v74 = vshrl.u32 %v73, 7
  %v75 = vsub.s32 0, %v74
  %v76 = vrot.slane %v71, %v75
  %v77 = vlaneseq
  %v78 = vshrl.u32 %v77, 7
  %v79 = vsub.s32 1, %v78
  %v80 = vrot.slane %v71, %v79
  %v81 = vlaneseq
  %v82 = vshrl.u32 %v81, 7
  %v83 = vsub.s32 2, %v82
  %v84 = vrot.slane %v71, %v83
  %88 = vmatprep.subr.mxu0 %v24
  %89 = vmatpush1.msra.mxu0 %v23
  %90 = vmatprep.subr.mxu0 %v27
  %91 = vmatpush1.msra.mxu0 %v26
  %92 = vmatprep.subr.mxu0 %v30
  %93 = vmatpush1.msra.mxu0 %v29
  %94 = vmatprep.subr.mxu0 %v33
  %95 = vmatpush1.msra.mxu0 %v32
  %96 = vmatprep.subr.mxu0 %v36
  %97 = vmatpush1.msra.mxu0 %v35
  %98 = vmatprep.subr.mxu0 %v39
  %99 = vmatpush1.msra.mxu0 %v38
  %100 = vmatprep.subr.mxu0 %v42
  %101 = vmatpush1.msra.mxu0 %v41
  %102 = vmatprep.subr.mxu0 %v45
  %103 = vmatpush1.msra.mxu0 %v44
  %104 = vmatprep.subr.mxu0 %v48
  %105 = vmatpush1.msra.mxu0 %v47
  %106 = vmatprep.subr.mxu0 %v51
  %107 = vmatpush1.msra.mxu0 %v50
  %108 = vmatprep.subr.mxu0 %v54
  %109 = vmatpush1.msra.mxu0 %v53
  %110 = vmatprep.subr.mxu0 %v57
  %111 = vmatpush1.msra.mxu0 %v56
  %112 = vmatprep.subr.mxu0 %v60
  %113 = vmatpush1.msra.mxu0 %v59
  %114 = vmatprep.subr.mxu0 %v63
  %115 = vmatpush1.msra.mxu0 %v62
  %116 = vmatprep.subr.mxu0 %v66
  %117 = vmatpush1.msra.mxu0 %v65
  %118 = vmatprep.subr.mxu0 %v69
  %119 = vmatpush1.msra.mxu0 %v68
  %120 = vmatprep.subr.mxu0 0.0
  %121 = vmatpush1.msra.mxu0 0.0
  %122 = vmatprep.subr.mxu0 0.0
  %123 = vmatpush1.msra.mxu0 0.0
  %124 = vmatprep.subr.mxu0 0.0
  %125 = vmatpush1.msra.mxu0 0.0
  %126 = vmatprep.subr.mxu0 0.0
  %127 = vmatpush1.msra.mxu0 0.0
  %128 = vmatprep.subr.mxu0 0.0
  %129 = vmatpush1.msra.mxu0 0.0
  %130 = vmatprep.subr.mxu0 0.0
  %131 = vmatpush1.msra.mxu0 0.0
  %132 = vmatprep.subr.mxu0 0.0
  %133 = vmatpush1.msra.mxu0 0.0
  %134 = vmatprep.subr.mxu0 0.0
  %135 = vmatpush1.msra.mxu0 0.0
  %136 = vmatprep.subr.mxu0 0.0
  %137 = vmatpush1.msra.mxu0 0.0
  %138 = vmatprep.subr.mxu0 0.0
  %139 = vmatpush1.msra.mxu0 0.0
  %140 = vmatprep.subr.mxu0 0.0
  %141 = vmatpush1.msra.mxu0 0.0
  %142 = vmatprep.subr.mxu0 0.0
  %143 = vmatpush1.msra.mxu0 0.0
  %144 = vmatprep.subr.mxu0 0.0
  %145 = vmatpush1.msra.mxu0 0.0
  %146 = vmatprep.subr.mxu0 0.0
  %147 = vmatpush1.msra.mxu0 0.0
  %148 = vmatprep.subr.mxu0 0.0
  %149 = vmatpush1.msra.mxu0 0.0
  %150 = vmatprep.subr.mxu0 0.0
  %151 = vmatpush1.msra.mxu0 0.0
  %152 = vmatprep.mubr.f32.mxu0 0.0
  %153 = vmatmul.mubr.f32.gmra.mrb[0].mxu0 0.0
  %v154 = vpop.f32.mrb[0].mxu0
  %v155 = vadd.f32 %v76, %v154
  %v156 = vpop.f32.mrb[0].mxu0
  %v157 = vadd.f32 %v80, %v156
  %158 = vdwg.mxu0
  %159 = vmatprep.subr.mxu0 0.0
  %160 = vmatpush1.msra.mxu0 %v25
  %161 = vmatprep.subr.mxu0 0.0
  %162 = vmatpush1.msra.mxu0 %v28
  %163 = vmatprep.subr.mxu0 0.0
  %164 = vmatpush1.msra.mxu0 %v31
  %165 = vmatprep.subr.mxu0 0.0
  %166 = vmatpush1.msra.mxu0 %v34
  %167 = vmatprep.subr.mxu0 0.0
  %168 = vmatpush1.msra.mxu0 %v37
  %169 = vmatprep.subr.mxu0 0.0
  %170 = vmatpush1.msra.mxu0 %v40
  %171 = vmatprep.subr.mxu0 0.0
  %172 = vmatpush1.msra.mxu0 %v43
  %173 = vmatprep.subr.mxu0 0.0
  %174 = vmatpush1.msra.mxu0 %v46
  %175 = vmatprep.subr.mxu0 0.0
  %176 = vmatpush1.msra.mxu0 %v49
  %177 = vmatprep.subr.mxu0 0.0
  %178 = vmatpush1.msra.mxu0 %v52
  %179 = vmatprep.subr.mxu0 0.0
  %180 = vmatpush1.msra.mxu0 %v55
  %181 = vmatprep.subr.mxu0 0.0
  %182 = vmatpush1.msra.mxu0 %v58
  %183 = vmatprep.subr.mxu0 0.0
  %184 = vmatpush1.msra.mxu0 %v61
  %185 = vmatprep.subr.mxu0 0.0
  %186 = vmatpush1.msra.mxu0 %v64
  %187 = vmatprep.subr.mxu0 0.0
  %188 = vmatpush1.msra.mxu0 %v67
  %189 = vmatprep.subr.mxu0 0.0
  %190 = vmatpush1.msra.mxu0 %v70
  %191 = vmatprep.subr.mxu0 0.0
  %192 = vmatpush1.msra.mxu0 0.0
  %193 = vmatprep.subr.mxu0 0.0
  %194 = vmatpush1.msra.mxu0 0.0
  %195 = vmatprep.subr.mxu0 0.0
  %196 = vmatpush1.msra.mxu0 0.0
  %197 = vmatprep.subr.mxu0 0.0
  %198 = vmatpush1.msra.mxu0 0.0
  %199 = vmatprep.subr.mxu0 0.0
  %200 = vmatpush1.msra.mxu0 0.0
  %201 = vmatprep.subr.mxu0 0.0
  %202 = vmatpush1.msra.mxu0 0.0
  %203 = vmatprep.subr.mxu0 0.0
  %204 = vmatpush1.msra.mxu0 0.0
  %205 = vmatprep.subr.mxu0 0.0
  %206 = vmatpush1.msra.mxu0 0.0
  %207 = vmatprep.subr.mxu0 0.0
  %208 = vmatpush1.msra.mxu0 0.0
  %209 = vmatprep.subr.mxu0 0.0
  %210 = vmatpush1.msra.mxu0 0.0
  %211 = vmatprep.subr.mxu0 0.0
  %212 = vmatpush1.msra.mxu0 0.0
  %213 = vmatprep.subr.mxu0 0.0
  %214 = vmatpush1.msra.mxu0 0.0
  %215 = vmatprep.subr.mxu0 0.0
  %216 = vmatpush1.msra.mxu0 0.0
  %217 = vmatprep.subr.mxu0 0.0
  %218 = vmatpush1.msra.mxu0 0.0
  %219 = vmatprep.subr.mxu0 0.0
  %220 = vmatpush1.msra.mxu0 0.0
  %221 = vmatprep.subr.mxu0 0.0
  %222 = vmatpush1.msra.mxu0 0.0
  %223 = vmatprep.mubr.f32.mxu0 0.0
  %224 = vmatmul.mubr.f32.gmra.mrb[0].mxu0 0.0
  %v225 = vpop.f32.mrb[0].mxu0
  %v226 = vadd.f32 %v84, %v225
  %v227 = vpop.f32.mrb[0].mxu0
  %228 = vdwg.mxu0
  %v229 = vadd.f32 %v20, %v155
  %v230 = vadd.f32 %v21, %v157
  %v231 = vxor.u32 %v229, 2147483648
  %v232 = vxor.u32 %v230, 2147483648
  %v233 = vmul.f32 %v231, 1.442695
  %v234 = vpow.pop %v233
  %v235 = vmul.f32 %v232, 1.442695
  %v236 = vpow.pop %v235
  %v237 = vadd.f32 %v234, 1.0
  %v238 = vadd.f32 %v236, 1.0
  %v239 = vrcp.pop %v237
  %v240 = vmul.f32 1.0, %v239
  %v241 = vrcp.pop %v238
  %v242 = vmul.f32 1.0, %v241
  %v243 = vmul.f32 %v240, %v226
  %v244 = vadd.f32 %v22, %v243
  %v245 = vtanh.pop %v244
  %v246 = vsub.f32 1.0, %v242
  %v247 = vmul.f32 %v246, %v245
  %v248 = vmul.f32 %v242, 0.0
  %v249 = vadd.f32 %v247, %v248
  %v250 = vld [vmem:[%s3] sm:$0xff]
  %v251 = vld [vmem:[%s3 + $0x8] sm:$0xff]
  %v252 = vld [vmem:[%s3 + $0x10] sm:$0xff]
  %v253 = vld [vmem:[%s3 + $0x18] sm:$0xff]
  %v254 = vld [vmem:[%s3 + $0x20] sm:$0xff]
  %v255 = vld [vmem:[%s3 + $0x28] sm:$0xff]
  %v256 = vld [vmem:[%s3 + $0x30] sm:$0xff]
  %v257 = vld [vmem:[%s3 + $0x38] sm:$0xff]
  %v258 = vld [vmem:[%s3 + $0x40] sm:$0xff]
  %v259 = vld [vmem:[%s3 + $0x48] sm:$0xff]
  %v260 = vld [vmem:[%s3 + $0x50] sm:$0xff]
  %v261 = vld [vmem:[%s3 + $0x58] sm:$0xff]
  %v262 = vld [vmem:[%s3 + $0x60] sm:$0xff]
  %v263 = vld [vmem:[%s3 + $0x68] sm:$0xff]
  %v264 = vld [vmem:[%s3 + $0x70] sm:$0xff]
  %v265 = vld [vmem:[%s3 + $0x78] sm:$0xff]
  %v266 = vld [vmem:[%s3 + $0x80] sm:$0xff]
  %v267 = vld [vmem:[%s3 + $0x88] sm:$0xff]
  %v268 = vld [vmem:[%s3 + $0x90] sm:$0xff]
  %v269 = vld [vmem:[%s3 + $0x98] sm:$0xff]
  %v270 = vld [vmem:[%s3 + $0xa0] sm:$0xff]
  %v271 = vld [vmem:[%s3 + $0xa8] sm:$0xff]
  %v272 = vld [vmem:[%s3 + $0xb0] sm:$0xff]
  %v273 = vld [vmem:[%s3 + $0xb8] sm:$0xff]
  %v274 = vld [vmem:[%s3 + $0xc0] sm:$0xff]
  %v275 = vld [vmem:[%s3 + $0xc8] sm:$0xff]
  %v276 = vld [vmem:[%s3 + $0xd0] sm:$0xff]
  %v277 = vld [vmem:[%s3 + $0xd8] sm:$0xff]
  %v278 = vld [vmem:[%s3 + $0xe0] sm:$0xff]
  %v279 = vld [vmem:[%s3 + $0xe8] sm:$0xff]
  %v280 = vld [vmem:[%s3 + $0xf0] sm:$0xff]
  %v281 = vld [vmem:[%s3 + $0xf8] sm:$0xff]
  %v282 = vld [vmem:[%s3 + $0x100] sm:$0xff]
  %v283 = vld [vmem:[%s3 + $0x108] sm:$0xff]
  %v284 = vld [vmem:[%s3 + $0x110] sm:$0xff]
  %v285 = vld [vmem:[%s3 + $0x118] sm:$0xff]
  %v286 = vld [vmem:[%s3 + $0x120] sm:$0xff]
  %v287 = vld [vmem:[%s3 + $0x128] sm:$0xff]
  %v288 = vld [vmem:[%s3 + $0x130] sm:$0xff]
  %v289 = vld [vmem:[%s3 + $0x138] sm:$0xff]
  %v290 = vld [vmem:[%s3 + $0x140] sm:$0xff]
  %v291 = vld [vmem:[%s3 + $0x148] sm:$0xff]
  %v292 = vld [vmem:[%s3 + $0x150] sm:$0xff]
  %v293 = vld [vmem:[%s3 + $0x158] sm:$0xff]
  %v294 = vld [vmem:[%s3 + $0x160] sm:$0xff]
  %v295 = vld [vmem:[%s3 + $0x168] sm:$0xff]
  %v296 = vld [vmem:[%s3 + $0x170] sm:$0xff]
  %v297 = vld [vmem:[%s3 + $0x178] sm:$0xff]
  %v298 = vld [vmem:[%s4] sm:$0x7]
  %v300 = vlaneseq
  %v301 = vshrl.u32 %v300, 7
  %v302 = vsub.s32 0, %v301
  %v303 = vrot.slane %v298, %v302
  %v304 = vlaneseq
  %v305 = vshrl.u32 %v304, 7
  %v306 = vsub.s32 1, %v305
  %v307 = vrot.slane %v298, %v306
  %v308 = vlaneseq
  %v309 = vshrl.u32 %v308, 7
  %v310 = vsub.s32 2, %v309
  %v311 = vrot.slane %v298, %v310
  %315 = vmatprep.subr.mxu0 %v251
  %316 = vmatpush1.msra.mxu0 %v250
  %317 = vmatprep.subr.mxu0 %v254
  %318 = vmatpush1.msra.mxu0 %v253
  %319 = vmatprep.subr.mxu0 %v257
  %320 = vmatpush1.msra.mxu0 %v256
  %321 = vmatprep.subr.mxu0 %v260
  %322 = vmatpush1.msra.mxu0 %v259
  %323 = vmatprep.subr.mxu0 %v263
  %324 = vmatpush1.msra.mxu0 %v262
  %325 = vmatprep.subr.mxu0 %v266
  %326 = vmatpush1.msra.mxu0 %v265
  %327 = vmatprep.subr.mxu0 %v269
  %328 = vmatpush1.msra.mxu0 %v268
  %329 = vmatprep.subr.mxu0 %v272
  %330 = vmatpush1.msra.mxu0 %v271
  %331 = vmatprep.subr.mxu0 %v275
  %332 = vmatpush1.msra.mxu0 %v274
  %333 = vmatprep.subr.mxu0 %v278
  %334 = vmatpush1.msra.mxu0 %v277
  %335 = vmatprep.subr.mxu0 %v281
  %336 = vmatpush1.msra.mxu0 %v280
  %337 = vmatprep.subr.mxu0 %v284
  %338 = vmatpush1.msra.mxu0 %v283
  %339 = vmatprep.subr.mxu0 %v287
  %340 = vmatpush1.msra.mxu0 %v286
  %341 = vmatprep.subr.mxu0 %v290
  %342 = vmatpush1.msra.mxu0 %v289
  %343 = vmatprep.subr.mxu0 %v293
  %344 = vmatpush1.msra.mxu0 %v292
  %345 = vmatprep.subr.mxu0 %v296
  %346 = vmatpush1.msra.mxu0 %v295
  %347 = vmatprep.subr.mxu0 0.0
  %348 = vmatpush1.msra.mxu0 0.0
  %349 = vmatprep.subr.mxu0 0.0
  %350 = vmatpush1.msra.mxu0 0.0
  %351 = vmatprep.subr.mxu0 0.0
  %352 = vmatpush1.msra.mxu0 0.0
  %353 = vmatprep.subr.mxu0 0.0
  %354 = vmatpush1.msra.mxu0 0.0
  %355 = vmatprep.subr.mxu0 0.0
  %356 = vmatpush1.msra.mxu0 0.0
  %357 = vmatprep.subr.mxu0 0.0
  %358 = vmatpush1.msra.mxu0 0.0
  %359 = vmatprep.subr.mxu0 0.0
  %360 = vmatpush1.msra.mxu0 0.0
  %361 = vmatprep.subr.mxu0 0.0
  %362 = vmatpush1.msra.mxu0 0.0
  %363 = vmatprep.subr.mxu0 0.0
  %364 = vmatpush1.msra.mxu0 0.0
  %365 = vmatprep.subr.mxu0 0.0
  %366 = vmatpush1.msra.mxu0 0.0
  %367 = vmatprep.subr.mxu0 0.0
  %368 = vmatpush1.msra.mxu0 0.0
  %369 = vmatprep.subr.mxu0 0.0
  %370 = vmatpush1.msra.mxu0 0.0
  %371 = vmatprep.subr.mxu0 0.0
  %372 = vmatpush1.msra.mxu0 0.0
  %373 = vmatprep.subr.mxu0 0.0
  %374 = vmatpush1.msra.mxu0 0.0
  %375 = vmatprep.subr.mxu0 0.0
  %376 = vmatpush1.msra.mxu0 0.0
  %377 = vmatprep.subr.mxu0 0.0
  %378 = vmatpush1.msra.mxu0 0.0
  %379 = vmatprep.mubr.f32.mxu0 0.0
  %380 = vmatmul.mubr.f32.gmra.mrb[0].mxu0 %v249
  %v381 = vpop.f32.mrb[0].mxu0
  %v382 = vadd.f32 %v303, %v381
  %v383 = vpop.f32.mrb[0].mxu0
  %v384 = vadd.f32 %v307, %v383
  %385 = vdwg.mxu0
  %386 = vmatprep.subr.mxu0 0.0
  %387 = vmatpush1.msra.mxu0 %v252
  %388 = vmatprep.subr.mxu0 0.0
  %389 = vmatpush1.msra.mxu0 %v255
  %390 = vmatprep.subr.mxu0 0.0
  %391 = vmatpush1.msra.mxu0 %v258
  %392 = vmatprep.subr.mxu0 0.0
  %393 = vmatpush1.msra.mxu0 %v261
  %394 = vmatprep.subr.mxu0 0.0
  %395 = vmatpush1.msra.mxu0 %v264
  %396 = vmatprep.subr.mxu0 0.0
  %397 = vmatpush1.msra.mxu0 %v267
  %398 = vmatprep.subr.mxu0 0.0
  %399 = vmatpush1.msra.mxu0 %v270
  %400 = vmatprep.subr.mxu0 0.0
  %401 = vmatpush1.msra.mxu0 %v273
  %402 = vmatprep.subr.mxu0 0.0
  %403 = vmatpush1.msra.mxu0 %v276
  %404 = vmatprep.subr.mxu0 0.0
  %405 = vmatpush1.msra.mxu0 %v279
  %406 = vmatprep.subr.mxu0 0.0
  %407 = vmatpush1.msra.mxu0 %v282
  %408 = vmatprep.subr.mxu0 0.0
  %409 = vmatpush1.msra.mxu0 %v285
  %410 = vmatprep.subr.mxu0 0.0
  %411 = vmatpush1.msra.mxu0 %v288
  %412 = vmatprep.subr.mxu0 0.0
  %413 = vmatpush1.msra.mxu0 %v291
  %414 = vmatprep.subr.mxu0 0.0
  %415 = vmatpush1.msra.mxu0 %v294
  %416 = vmatprep.subr.mxu0 0.0
  %417 = vmatpush1.msra.mxu0 %v297
  %418 = vmatprep.subr.mxu0 0.0
  %419 = vmatpush1.msra.mxu0 0.0
  %420 = vmatprep.subr.mxu0 0.0
  %421 = vmatpush1.msra.mxu0 0.0
  %422 = vmatprep.subr.mxu0 0.0
  %423 = vmatpush1.msra.mxu0 0.0
  %424 = vmatprep.subr.mxu0 0.0
  %425 = vmatpush1.msra.mxu0 0.0
  %426 = vmatprep.subr.mxu0 0.0
  %427 = vmatpush1.msra.mxu0 0.0
  %428 = vmatprep.subr.mxu0 0.0
  %429 = vmatpush1.msra.mxu0 0.0
  %430 = vmatprep.subr.mxu0 0.0
  %431 = vmatpush1.msra.mxu0 0.0
  %432 = vmatprep.subr.mxu0 0.0
  %433 = vmatpush1.msra.mxu0 0.0
  %434 = vmatprep.subr.mxu0 0.0
  %435 = vmatpush1.msra.mxu0 0.0
  %436 = vmatprep.subr.mxu0 0.0
  %437 = vmatpush1.msra.mxu0 0.0
  %438 = vmatprep.subr.mxu0 0.0
  %439 = vmatpush1.msra.mxu0 0.0
  %440 = vmatprep.subr.mxu0 0.0
  %441 = vmatpush1.msra.mxu0 0.0
  %442 = vmatprep.subr.mxu0 0.0
  %443 = vmatpush1.msra.mxu0 0.0
  %444 = vmatprep.subr.mxu0 0.0
  %445 = vmatpush1.msra.mxu0 0.0
  %446 = vmatprep.subr.mxu0 0.0
  %447 = vmatpush1.msra.mxu0 0.0
  %448 = vmatprep.subr.mxu0 0.0
  %449 = vmatpush1.msra.mxu0 0.0
  %450 = vmatprep.mubr.f32.mxu0 0.0
  %451 = vmatmul.mubr.f32.gmra.mrb[0].mxu0 %v249
  %v452 = vpop.f32.mrb[0].mxu0
  %v453 = vadd.f32 %v311, %v452
  %v454 = vpop.f32.mrb[0].mxu0
  %455 = vdwg.mxu0
  %s456 = scalar_lea.vmem %s0, 24
  %v457 = vld [vmem:[%s456] sm:$0xff]
  %v458 = vld [vmem:[%s456 + $0x8] sm:$0xff]
  %v459 = vld [vmem:[%s456 + $0x10] sm:$0xff]
  %460 = vmatprep.subr.mxu0 %v24
  %461 = vmatpush1.msra.mxu0 %v23
  %462 = vmatprep.subr.mxu0 %v27
  %463 = vmatpush1.msra.mxu0 %v26
  %464 = vmatprep.subr.mxu0 %v30
  %465 = vmatpush1.msra.mxu0 %v29
  %466 = vmatprep.subr.mxu0 %v33
  %467 = vmatpush1.msra.mxu0 %v32
  %468 = vmatprep.subr.mxu0 %v36
  %469 = vmatpush1.msra.mxu0 %v35
  %470 = vmatprep.subr.mxu0 %v39
  %471 = vmatpush1.msra.mxu0 %v38
  %472 = vmatprep.subr.mxu0 %v42
  %473 = vmatpush1.msra.mxu0 %v41
  %474 = vmatprep.subr.mxu0 %v45
  %475 = vmatpush1.msra.mxu0 %v44
  %476 = vmatprep.subr.mxu0 %v48
  %477 = vmatpush1.msra.mxu0 %v47
  %478 = vmatprep.subr.mxu0 %v51
  %479 = vmatpush1.msra.mxu0 %v50
  %480 = vmatprep.subr.mxu0 %v54
  %481 = vmatpush1.msra.mxu0 %v53
  %482 = vmatprep.subr.mxu0 %v57
  %483 = vmatpush1.msra.mxu0 %v56
  %484 = vmatprep.subr.mxu0 %v60
  %485 = vmatpush1.msra.mxu0 %v59
  %486 = vmatprep.subr.mxu0 %v63
  %487 = vmatpush1.msra.mxu0 %v62
  %488 = vmatprep.subr.mxu0 %v66
  %489 = vmatpush1.msra.mxu0 %v65
  %490 = vmatprep.subr.mxu0 %v69
  %491 = vmatpush1.msra.mxu0 %v68
  %492 = vmatprep.subr.mxu0 0.0
  %493 = vmatpush1.msra.mxu0 0.0
  %494 = vmatprep.subr.mxu0 0.0
  %495 = vmatpush1.msra.mxu0 0.0
  %496 = vmatprep.subr.mxu0 0.0
  %497 = vmatpush1.msra.mxu0 0.0
  %498 = vmatprep.subr.mxu0 0.0
  %499 = vmatpush1.msra.mxu0 0.0
  %500 = vmatprep.subr.mxu0 0.0
  %501 = vmatpush1.msra.mxu0 0.0
  %502 = vmatprep.subr.mxu0 0.0
  %503 = vmatpush1.msra.mxu0 0.0
  %504 = vmatprep.subr.mxu0 0.0
  %505 = vmatpush1.msra.mxu0 0.0
  %506 = vmatprep.subr.mxu0 0.0
  %507 = vmatpush1.msra.mxu0 0.0
  %508 = vmatprep.subr.mxu0 0.0
  %509 = vmatpush1.msra.mxu0 0.0
  %510 = vmatprep.subr.mxu0 0.0
  %511 = vmatpush1.msra.mxu0 0.0
  %512 = vmatprep.subr.mxu0 0.0
  %513 = vmatpush1.msra.mxu0 0.0
  %514 = vmatprep.subr.mxu0 0.0
  %515 = vmatpush1.msra.mxu0 0.0
  %516 = vmatprep.subr.mxu0 0.0
  %517 = vmatpush1.msra.mxu0 0.0
  %518 = vmatprep.subr.mxu0 0.0
  %519 = vmatpush1.msra.mxu0 0.0
  %520 = vmatprep.subr.mxu0 0.0
  %521 = vmatpush1.msra.mxu0 0.0
  %522 = vmatprep.subr.mxu0 0.0
  %523 = vmatpush1.msra.mxu0 0.0
  %524 = vmatprep.mubr.f32.mxu0 0.0
  %525 = vmatmul.mubr.f32.gmra.mrb[0].mxu0 %v249
  %v526 = vpop.f32.mrb[0].mxu0
  %v527 = vadd.f32 %v76, %v526
  %v528 = vpop.f32.mrb[0].mxu0
  %v529 = vadd.f32 %v80, %v528
  %530 = vdwg.mxu0
  %531 = vmatprep.subr.mxu0 0.0
  %532 = vmatpush1.msra.mxu0 %v25
  %533 = vmatprep.subr.mxu0 0.0
  %534 = vmatpush1.msra.mxu0 %v28
  %535 = vmatprep.subr.mxu0 0.0
  %536 = vmatpush1.msra.mxu0 %v31
  %537 = vmatprep.subr.mxu0 0.0
  %538 = vmatpush1.msra.mxu0 %v34
  %539 = vmatprep.subr.mxu0 0.0
  %540 = vmatpush1.msra.mxu0 %v37
  %541 = vmatprep.subr.mxu0 0.0
  %542 = vmatpush1.msra.mxu0 %v40
  %543 = vmatprep.subr.mxu0 0.0
  %544 = vmatpush1.msra.mxu0 %v43
  %545 = vmatprep.subr.mxu0 0.0
  %546 = vmatpush1.msra.mxu0 %v46
  %547 = vmatprep.subr.mxu0 0.0
  %548 = vmatpush1.msra.mxu0 %v49
  %549 = vmatprep.subr.mxu0 0.0
  %550 = vmatpush1.msra.mxu0 %v52
  %551 = vmatprep.subr.mxu0 0.0
  %552 = vmatpush1.msra.mxu0 %v55
  %553 = vmatprep.subr.mxu0 0.0
  %554 = vmatpush1.msra.mxu0 %v58
  %555 = vmatprep.subr.mxu0 0.0
  %556 = vmatpush1.msra.mxu0 %v61
  %557 = vmatprep.subr.mxu0 0.0
  %558 = vmatpush1.msra.mxu0 %v64
  %559 = vmatprep.subr.mxu0 0.0
  %560 = vmatpush1.msra.mxu0 %v67
  %561 = vmatprep.subr.mxu0 0.0
  %562 = vmatpush1.msra.mxu0 %v70
  %563 = vmatprep.subr.mxu0 0.0
  %564 = vmatpush1.msra.mxu0 0.0
  %565 = vmatprep.subr.mxu0 0.0
  %566 = vmatpush1.msra.mxu0 0.0
  %567 = vmatprep.subr.mxu0 0.0
  %568 = vmatpush1.msra.mxu0 0.0
  %569 = vmatprep.subr.mxu0 0.0
  %570 = vmatpush1.msra.mxu0 0.0
  %571 = vmatprep.subr.mxu0 0.0
  %572 = vmatpush1.msra.mxu0 0.0
  %573 = vmatprep.subr.mxu0 0.0
  %574 = vmatpush1.msra.mxu0 0.0
  %575 = vmatprep.subr.mxu0 0.0
  %576 = vmatpush1.msra.mxu0 0.0
  %577 = vmatprep.subr.mxu0 0.0
  %578 = vmatpush1.msra.mxu0 0.0
  %579 = vmatprep.subr.mxu0 0.0
  %580 = vmatpush1.msra.mxu0 0.0
  %581 = vmatprep.subr.mxu0 0.0
  %582 = vmatpush1.msra.mxu0 0.0
  %583 = vmatprep.subr.mxu0 0.0
  %584 = vmatpush1.msra.mxu0 0.0
  %585 = vmatprep.subr.mxu0 0.0
  %586 = vmatpush1.msra.mxu0 0.0
  %587 = vmatprep.subr.mxu0 0.0
  %588 = vmatpush1.msra.mxu0 0.0
  %589 = vmatprep.subr.mxu0 0.0
  %590 = vmatpush1.msra.mxu0 0.0
  %591 = vmatprep.subr.mxu0 0.0
  %592 = vmatpush1.msra.mxu0 0.0
  %593 = vmatprep.subr.mxu0 0.0
  %594 = vmatpush1.msra.mxu0 0.0
  %595 = vmatprep.mubr.f32.mxu0 0.0
  %596 = vmatmul.mubr.f32.gmra.mrb[0].mxu0 %v249
  %v597 = vpop.f32.mrb[0].mxu0
  %v598 = vadd.f32 %v84, %v597
  %v599 = vpop.f32.mrb[0].mxu0
  %600 = vdwg.mxu0
  %v601 = vadd.f32 %v457, %v527
  %v602 = vadd.f32 %v458, %v529
  %v603 = vxor.u32 %v601, 2147483648
  %v604 = vxor.u32 %v602, 2147483648
  %v605 = vmul.f32 %v603, 1.442695
  %v606 = vpow.pop %v605
  %v607 = vmul.f32 %v604, 1.442695
  %v608 = vpow.pop %v607
  %v609 = vadd.f32 %v606, 1.0
  %v610 = vadd.f32 %v608, 1.0
  %v611 = vrcp.pop %v609
  %v612 = vmul.f32 1.0, %v611
  %v613 = vrcp.pop %v610
  %v614 = vmul.f32 1.0, %v613
  %v615 = vmul.f32 %v612, %v598
  %v616 = vadd.f32 %v459, %v615
  %v617 = vtanh.pop %v616
  %v618 = vsub.f32 1.0, %v614
  %v619 = vmul.f32 %v618, %v617
  %v620 = vmul.f32 %v614, %v249
  %v621 = vadd.f32 %v619, %v620
  %622 = vmatprep.subr.mxu0 %v251
  %623 = vmatpush1.msra.mxu0 %v250
  %624 = vmatprep.subr.mxu0 %v254
  %625 = vmatpush1.msra.mxu0 %v253
  %626 = vmatprep.subr.mxu0 %v257
  %627 = vmatpush1.msra.mxu0 %v256
  %628 = vmatprep.subr.mxu0 %v260
  %629 = vmatpush1.msra.mxu0 %v259
  %630 = vmatprep.subr.mxu0 %v263
  %631 = vmatpush1.msra.mxu0 %v262
  %632 = vmatprep.subr.mxu0 %v266
  %633 = vmatpush1.msra.mxu0 %v265
  %634 = vmatprep.subr.mxu0 %v269
  %635 = vmatpush1.msra.mxu0 %v268
  %636 = vmatprep.subr.mxu0 %v272
  %637 = vmatpush1.msra.mxu0 %v271
  %638 = vmatprep.subr.mxu0 %v275
  %639 = vmatpush1.msra.mxu0 %v274
  %640 = vmatprep.subr.mxu0 %v278
  %641 = vmatpush1.msra.mxu0 %v277
  %642 = vmatprep.subr.mxu0 %v281
  %643 = vmatpush1.msra.mxu0 %v280
  %644 = vmatprep.subr.mxu0 %v284
  %645 = vmatpush1.msra.mxu0 %v283
  %646 = vmatprep.subr.mxu0 %v287
  %647 = vmatpush1.msra.mxu0 %v286
  %648 = vmatprep.subr.mxu0 %v290
  %649 = vmatpush1.msra.mxu0 %v289
  %650 = vmatprep.subr.mxu0 %v293
  %651 = vmatpush1.msra.mxu0 %v292
  %652 = vmatprep.subr.mxu0 %v296
  %653 = vmatpush1.msra.mxu0 %v295
  %654 = vmatprep.subr.mxu0 0.0
  %655 = vmatpush1.msra.mxu0 0.0
  %656 = vmatprep.subr.mxu0 0.0
  %657 = vmatpush1.msra.mxu0 0.0
  %658 = vmatprep.subr.mxu0 0.0
  %659 = vmatpush1.msra.mxu0 0.0
  %660 = vmatprep.subr.mxu0 0.0
  %661 = vmatpush1.msra.mxu0 0.0
  %662 = vmatprep.subr.mxu0 0.0
  %663 = vmatpush1.msra.mxu0 0.0
  %664 = vmatprep.subr.mxu0 0.0
  %665 = vmatpush1.msra.mxu0 0.0
  %666 = vmatprep.subr.mxu0 0.0
  %667 = vmatpush1.msra.mxu0 0.0
  %668 = vmatprep.subr.mxu0 0.0
  %669 = vmatpush1.msra.mxu0 0.0
  %670 = vmatprep.subr.mxu0 0.0
  %671 = vmatpush1.msra.mxu0 0.0
  %672 = vmatprep.subr.mxu0 0.0
  %673 = vmatpush1.msra.mxu0 0.0
  %674 = vmatprep.subr.mxu0 0.0
  %675 = vmatpush1.msra.mxu0 0.0
  %676 = vmatprep.subr.mxu0 0.0
  %677 = vmatpush1.msra.mxu0 0.0
  %678 = vmatprep.subr.mxu0 0.0
  %679 = vmatpush1.msra.mxu0 0.0
  %680 = vmatprep.subr.mxu0 0.0
  %681 = vmatpush1.msra.mxu0 0.0
  %682 = vmatprep.subr.mxu0 0.0
  %683 = vmatpush1.msra.mxu0 0.0
  %684 = vmatprep.subr.mxu0 0.0
  %685 = vmatpush1.msra.mxu0 0.0
  %686 = vmatprep.mubr.f32.mxu0 0.0
  %687 = vmatmul.mubr.f32.gmra.mrb[0].mxu0 %v621
  %v688 = vpop.f32.mrb[0].mxu0
  %v689 = vadd.f32 %v303, %v688
  %v690 = vpop.f32.mrb[0].mxu0
  %v691 = vadd.f32 %v307, %v690
  %692 = vdwg.mxu0
  %693 = vmatprep.subr.mxu0 0.0
  %694 = vmatpush1.msra.mxu0 %v252
  %695 = vmatprep.subr.mxu0 0.0
  %696 = vmatpush1.msra.mxu0 %v255
  %697 = vmatprep.subr.mxu0 0.0
  %698 = vmatpush1.msra.mxu0 %v258
  %699 = vmatprep.subr.mxu0 0.0
  %700 = vmatpush1.msra.mxu0 %v261
  %701 = vmatprep.subr.mxu0 0.0
  %702 = vmatpush1.msra.mxu0 %v264
  %703 = vmatprep.subr.mxu0 0.0
  %704 = vmatpush1.msra.mxu0 %v267
  %705 = vmatprep.subr.mxu0 0.0
  %706 = vmatpush1.msra.mxu0 %v270
  %707 = vmatprep.subr.mxu0 0.0
  %708 = vmatpush1.msra.mxu0 %v273
  %709 = vmatprep.subr.mxu0 0.0
  %710 = vmatpush1.msra.mxu0 %v276
  %711 = vmatprep.subr.mxu0 0.0
  %712 = vmatpush1.msra.mxu0 %v279
  %713 = vmatprep.subr.mxu0 0.0
  %714 = vmatpush1.msra.mxu0 %v282
  %715 = vmatprep.subr.mxu0 0.0
  %716 = vmatpush1.msra.mxu0 %v285
  %717 = vmatprep.subr.mxu0 0.0
  %718 = vmatpush1.msra.mxu0 %v288
  %719 = vmatprep.subr.mxu0 0.0
  %720 = vmatpush1.msra.mxu0 %v291
  %721 = vmatprep.subr.mxu0 0.0
  %722 = vmatpush1.msra.mxu0 %v294
  %723 = vmatprep.subr.mxu0 0.0
  %724 = vmatpush1.msra.mxu0 %v297
  %725 = vmatprep.subr.mxu0 0.0
  %726 = vmatpush1.msra.mxu0 0.0
  %727 = vmatprep.subr.mxu0 0.0
  %728 = vmatpush1.msra.mxu0 0.0
  %729 = vmatprep.subr.mxu0 0.0
  %730 = vmatpush1.msra.mxu0 0.0
  %731 = vmatprep.subr.mxu0 0.0
  %732 = vmatpush1.msra.mxu0 0.0
  %733 = vmatprep.subr.mxu0 0.0
  %734 = vmatpush1.msra.mxu0 0.0
  %735 = vmatprep.subr.mxu0 0.0
  %736 = vmatpush1.msra.mxu0 0.0
  %737 = vmatprep.subr.mxu0 0.0
  %738 = vmatpush1.msra.mxu0 0.0
  %739 = vmatprep.subr.mxu0 0.0
  %740 = vmatpush1.msra.mxu0 0.0
  %741 = vmatprep.subr.mxu0 0.0
  %742 = vmatpush1.msra.mxu0 0.0
  %743 = vmatprep.subr.mxu0 0.0
  %744 = vmatpush1.msra.mxu0 0.0
  %745 = vmatprep.subr.mxu0 0.0
  %746 = vmatpush1.msra.mxu0 0.0
  %747 = vmatprep.subr.mxu0 0.0
  %748 = vmatpush1.msra.mxu0 0.0
  %749 = vmatprep.subr.mxu0 0.0
  %750 = vmatpush1.msra.mxu0 0.0
  %751 = vmatprep.subr.mxu0 0.0
  %752 = vmatpush1.msra.mxu0 0.0
  %753 = vmatprep.subr.mxu0 0.0
  %754 = vmatpush1.msra.mxu0 0.0
  %755 = vmatprep.subr.mxu0 0.0
  %756 = vmatpush1.msra.mxu0 0.0
  %757 = vmatprep.mubr.f32.mxu0 0.0
  %758 = vmatmul.mubr.f32.gmra.mrb[0].mxu0 %v621
  %v759 = vpop.f32.mrb[0].mxu0
  %v760 = vadd.f32 %v311, %v759
  %v761 = vpop.f32.mrb[0].mxu0
  %762 = vdwg.mxu0
  %s763 = scalar_lea.vmem %s1, 384
  %v764 = vld [vmem:[%s763] sm:$0xff]
  %v765 = vld [vmem:[%s763 + $0x8] sm:$0xff]
  %v766 = vld [vmem:[%s763 + $0x10] sm:$0xff]
  %v767 = vld [vmem:[%s763 + $0x18] sm:$0xff]
  %v768 = vld [vmem:[%s763 + $0x20] sm:$0xff]
  %v769 = vld [vmem:[%s763 + $0x28] sm:$0xff]
  %v770 = vld [vmem:[%s763 + $0x30] sm:$0xff]
  %v771 = vld [vmem:[%s763 + $0x38] sm:$0xff]
  %v772 = vld [vmem:[%s763 + $0x40] sm:$0xff]
  %v773 = vld [vmem:[%s763 + $0x48] sm:$0xff]
  %v774 = vld [vmem:[%s763 + $0x50] sm:$0xff]
  %v775 = vld [vmem:[%s763 + $0x58] sm:$0xff]
  %v776 = vld [vmem:[%s763 + $0x60] sm:$0xff]
  %v777 = vld [vmem:[%s763 + $0x68] sm:$0xff]
  %v778 = vld [vmem:[%s763 + $0x70] sm:$0xff]
  %v779 = vld [vmem:[%s763 + $0x78] sm:$0xff]
  %v780 = vld [vmem:[%s763 + $0x80] sm:$0xff]
  %v781 = vld [vmem:[%s763 + $0x88] sm:$0xff]
  %v782 = vld [vmem:[%s763 + $0x90] sm:$0xff]
  %v783 = vld [vmem:[%s763 + $0x98] sm:$0xff]
  %v784 = vld [vmem:[%s763 + $0xa0] sm:$0xff]
  %v785 = vld [vmem:[%s763 + $0xa8] sm:$0xff]
  %v786 = vld [vmem:[%s763 + $0xb0] sm:$0xff]
  %v787 = vld [vmem:[%s763 + $0xb8] sm:$0xff]
  %v788 = vld [vmem:[%s763 + $0xc0] sm:$0xff]
  %v789 = vld [vmem:[%s763 + $0xc8] sm:$0xff]
  %v790 = vld [vmem:[%s763 + $0xd0] sm:$0xff]
  %v791 = vld [vmem:[%s763 + $0xd8] sm:$0xff]
  %v792 = vld [vmem:[%s763 + $0xe0] sm:$0xff]
  %v793 = vld [vmem:[%s763 + $0xe8] sm:$0xff]
  %v794 = vld [vmem:[%s763 + $0xf0] sm:$0xff]
  %v795 = vld [vmem:[%s763 + $0xf8] sm:$0xff]
  %v796 = vld [vmem:[%s763 + $0x100] sm:$0xff]
  %v797 = vld [vmem:[%s763 + $0x108] sm:$0xff]
  %v798 = vld [vmem:[%s763 + $0x110] sm:$0xff]
  %v799 = vld [vmem:[%s763 + $0x118] sm:$0xff]
  %v800 = vld [vmem:[%s763 + $0x120] sm:$0xff]
  %v801 = vld [vmem:[%s763 + $0x128] sm:$0xff]
  %v802 = vld [vmem:[%s763 + $0x130] sm:$0xff]
  %v803 = vld [vmem:[%s763 + $0x138] sm:$0xff]
  %v804 = vld [vmem:[%s763 + $0x140] sm:$0xff]
  %v805 = vld [vmem:[%s763 + $0x148] sm:$0xff]
  %v806 = vld [vmem:[%s763 + $0x150] sm:$0xff]
  %v807 = vld [vmem:[%s763 + $0x158] sm:$0xff]
  %v808 = vld [vmem:[%s763 + $0x160] sm:$0xff]
  %v809 = vld [vmem:[%s763 + $0x168] sm:$0xff]
  %v810 = vld [vmem:[%s763 + $0x170] sm:$0xff]
  %v811 = vld [vmem:[%s763 + $0x178] sm:$0xff]
  %s812 = scalar_lea.vmem %s2, 3
  %v813 = vld [vmem:[%s812] sm:$0x7]
  %v815 = vlaneseq
  %v816 = vshrl.u32 %v815, 7
  %v817 = vsub.s32 0, %v816
  %v818 = vrot.slane %v813, %v817
  %v819 = vlaneseq
  %v820 = vshrl.u32 %v819, 7
  %v821 = vsub.s32 1, %v820
  %v822 = vrot.slane %v813, %v821
  %v823 = vlaneseq
  %v824 = vshrl.u32 %v823, 7
  %v825 = vsub.s32 2, %v824
  %v826 = vrot.slane %v813, %v825
  %830 = vmatprep.subr.mxu0 %v765
  %831 = vmatpush1.msra.mxu0 %v764
  %832 = vmatprep.subr.mxu0 %v768
  %833 = vmatpush1.msra.mxu0 %v767
  %834 = vmatprep.subr.mxu0 %v771
  %835 = vmatpush1.msra.mxu0 %v770
  %836 = vmatprep.subr.mxu0 %v774
  %837 = vmatpush1.msra.mxu0 %v773
  %838 = vmatprep.subr.mxu0 %v777
  %839 = vmatpush1.msra.mxu0 %v776
  %840 = vmatprep.subr.mxu0 %v780
  %841 = vmatpush1.msra.mxu0 %v779
  %842 = vmatprep.subr.mxu0 %v783
  %843 = vmatpush1.msra.mxu0 %v782
  %844 = vmatprep.subr.mxu0 %v786
  %845 = vmatpush1.msra.mxu0 %v785
  %846 = vmatprep.subr.mxu0 %v789
  %847 = vmatpush1.msra.mxu0 %v788
  %848 = vmatprep.subr.mxu0 %v792
  %849 = vmatpush1.msra.mxu0 %v791
  %850 = vmatprep.subr.mxu0 %v795
  %851 = vmatpush1.msra.mxu0 %v794
  %852 = vmatprep.subr.mxu0 %v798
  %853 = vmatpush1.msra.mxu0 %v797
  %854 = vmatprep.subr.mxu0 %v801
  %855 = vmatpush1.msra.mxu0 %v800
  %856 = vmatprep.subr.mxu0 %v804
  %857 = vmatpush1.msra.mxu0 %v803
  %858 = vmatprep.subr.mxu0 %v807
  %859 = vmatpush1.msra.mxu0 %v806
  %860 = vmatprep.subr.mxu0 %v810
  %861 = vmatpush1.msra.mxu0 %v809
  %862 = vmatprep.subr.mxu0 0.0
  %863 = vmatpush1.msra.mxu0 0.0
  %864 = vmatprep.subr.mxu0 0.0
  %865 = vmatpush1.msra.mxu0 0.0
  %866 = vmatprep.subr.mxu0 0.0
  %867 = vmatpush1.msra.mxu0 0.0
  %868 = vmatprep.subr.mxu0 0.0
  %869 = vmatpush1.msra.mxu0 0.0
  %870 = vmatprep.subr.mxu0 0.0
  %871 = vmatpush1.msra.mxu0 0.0
  %872 = vmatprep.subr.mxu0 0.0
  %873 = vmatpush1.msra.mxu0 0.0
  %874 = vmatprep.subr.mxu0 0.0
  %875 = vmatpush1.msra.mxu0 0.0
  %876 = vmatprep.subr.mxu0 0.0
  %877 = vmatpush1.msra.mxu0 0.0
  %878 = vmatprep.subr.mxu0 0.0
  %879 = vmatpush1.msra.mxu0 0.0
  %880 = vmatprep.subr.mxu0 0.0
  %881 = vmatpush1.msra.mxu0 0.0
  %882 = vmatprep.subr.mxu0 0.0
  %883 = vmatpush1.msra.mxu0 0.0
  %884 = vmatprep.subr.mxu0 0.0
  %885 = vmatpush1.msra.mxu0 0.0
  %886 = vmatprep.subr.mxu0 0.0
  %887 = vmatpush1.msra.mxu0 0.0
  %888 = vmatprep.subr.mxu0 0.0
  %889 = vmatpush1.msra.mxu0 0.0
  %890 = vmatprep.subr.mxu0 0.0
  %891 = vmatpush1.msra.mxu0 0.0
  %892 = vmatprep.subr.mxu0 0.0
  %893 = vmatpush1.msra.mxu0 0.0
  %894 = vmatprep.mubr.f32.mxu0 0.0
  %895 = vmatmul.mubr.f32.gmra.mrb[0].mxu0 0.0
  %v896 = vpop.f32.mrb[0].mxu0
  %v897 = vadd.f32 %v818, %v896
  %v898 = vpop.f32.mrb[0].mxu0
  %v899 = vadd.f32 %v822, %v898
  %900 = vdwg.mxu0
  %901 = vmatprep.subr.mxu0 0.0
  %902 = vmatpush1.msra.mxu0 %v766
  %903 = vmatprep.subr.mxu0 0.0
  %904 = vmatpush1.msra.mxu0 %v769
  %905 = vmatprep.subr.mxu0 0.0
  %906 = vmatpush1.msra.mxu0 %v772
  %907 = vmatprep.subr.mxu0 0.0
  %908 = vmatpush1.msra.mxu0 %v775
  %909 = vmatprep.subr.mxu0 0.0
  %910 = vmatpush1.msra.mxu0 %v778
  %911 = vmatprep.subr.mxu0 0.0
  %912 = vmatpush1.msra.mxu0 %v781
  %913 = vmatprep.subr.mxu0 0.0
  %914 = vmatpush1.msra.mxu0 %v784
  %915 = vmatprep.subr.mxu0 0.0
  %916 = vmatpush1.msra.mxu0 %v787
  %917 = vmatprep.subr.mxu0 0.0
  %918 = vmatpush1.msra.mxu0 %v790
  %919 = vmatprep.subr.mxu0 0.0
  %920 = vmatpush1.msra.mxu0 %v793
  %921 = vmatprep.subr.mxu0 0.0
  %922 = vmatpush1.msra.mxu0 %v796
  %923 = vmatprep.subr.mxu0 0.0
  %924 = vmatpush1.msra.mxu0 %v799
  %925 = vmatprep.subr.mxu0 0.0
  %926 = vmatpush1.msra.mxu0 %v802
  %927 = vmatprep.subr.mxu0 0.0
  %928 = vmatpush1.msra.mxu0 %v805
  %929 = vmatprep.subr.mxu0 0.0
  %930 = vmatpush1.msra.mxu0 %v808
  %931 = vmatprep.subr.mxu0 0.0
  %932 = vmatpush1.msra.mxu0 %v811
  %933 = vmatprep.subr.mxu0 0.0
  %934 = vmatpush1.msra.mxu0 0.0
  %935 = vmatprep.subr.mxu0 0.0
  %936 = vmatpush1.msra.mxu0 0.0
  %937 = vmatprep.subr.mxu0 0.0
  %938 = vmatpush1.msra.mxu0 0.0
  %939 = vmatprep.subr.mxu0 0.0
  %940 = vmatpush1.msra.mxu0 0.0
  %941 = vmatprep.subr.mxu0 0.0
  %942 = vmatpush1.msra.mxu0 0.0
  %943 = vmatprep.subr.mxu0 0.0
  %944 = vmatpush1.msra.mxu0 0.0
  %945 = vmatprep.subr.mxu0 0.0
  %946 = vmatpush1.msra.mxu0 0.0
  %947 = vmatprep.subr.mxu0 0.0
  %948 = vmatpush1.msra.mxu0 0.0
  %949 = vmatprep.subr.mxu0 0.0
  %950 = vmatpush1.msra.mxu0 0.0
  %951 = vmatprep.subr.mxu0 0.0
  %952 = vmatpush1.msra.mxu0 0.0
  %953 = vmatprep.subr.mxu0 0.0
  %954 = vmatpush1.msra.mxu0 0.0
  %955 = vmatprep.subr.mxu0 0.0
  %956 = vmatpush1.msra.mxu0 0.0
  %957 = vmatprep.subr.mxu0 0.0
  %958 = vmatpush1.msra.mxu0 0.0
  %959 = vmatprep.subr.mxu0 0.0
  %960 = vmatpush1.msra.mxu0 0.0
  %961 = vmatprep.subr.mxu0 0.0
  %962 = vmatpush1.msra.mxu0 0.0
  %963 = vmatprep.subr.mxu0 0.0
  %964 = vmatpush1.msra.mxu0 0.0
  %965 = vmatprep.mubr.f32.mxu0 0.0
  %966 = vmatmul.mubr.f32.gmra.mrb[0].mxu0 0.0
  %v967 = vpop.f32.mrb[0].mxu0
  %v968 = vadd.f32 %v826, %v967
  %v969 = vpop.f32.mrb[0].mxu0
  %970 = vdwg.mxu0
  %v971 = vadd.f32 %v382, %v897
  %v972 = vadd.f32 %v384, %v899
  %v973 = vxor.u32 %v971, 2147483648
  %v974 = vxor.u32 %v972, 2147483648
  %v975 = vmul.f32 %v973, 1.442695
  %v976 = vpow.pop %v975
  %v977 = vmul.f32 %v974, 1.442695
  %v978 = vpow.pop %v977
  %v979 = vadd.f32 %v976, 1.0
  %v980 = vadd.f32 %v978, 1.0
  %v981 = vrcp.pop %v979
  %v982 = vmul.f32 1.0, %v981
  %v983 = vrcp.pop %v980
  %v984 = vmul.f32 1.0, %v983
  %v985 = vmul.f32 %v982, %v968
  %v986 = vadd.f32 %v453, %v985
  %v987 = vtanh.pop %v986
  %v988 = vsub.f32 1.0, %v984
  %v989 = vmul.f32 %v988, %v987
  %v990 = vmul.f32 %v984, 0.0
  %v991 = vadd.f32 %v989, %v990
  %s992 = scalar_lea.vmem %s0, 48
  %v993 = vld [vmem:[%s992] sm:$0xff]
  %v994 = vld [vmem:[%s992 + $0x8] sm:$0xff]
  %v995 = vld [vmem:[%s992 + $0x10] sm:$0xff]
  %996 = vmatprep.subr.mxu0 %v24
  %997 = vmatpush1.msra.mxu0 %v23
  %998 = vmatprep.subr.mxu0 %v27
  %999 = vmatpush1.msra.mxu0 %v26
  %1000 = vmatprep.subr.mxu0 %v30
  %1001 = vmatpush1.msra.mxu0 %v29
  %1002 = vmatprep.subr.mxu0 %v33
  %1003 = vmatpush1.msra.mxu0 %v32
  %1004 = vmatprep.subr.mxu0 %v36
  %1005 = vmatpush1.msra.mxu0 %v35
  %1006 = vmatprep.subr.mxu0 %v39
  %1007 = vmatpush1.msra.mxu0 %v38
  %1008 = vmatprep.subr.mxu0 %v42
  %1009 = vmatpush1.msra.mxu0 %v41
  %1010 = vmatprep.subr.mxu0 %v45
  %1011 = vmatpush1.msra.mxu0 %v44
  %1012 = vmatprep.subr.mxu0 %v48
  %1013 = vmatpush1.msra.mxu0 %v47
  %1014 = vmatprep.subr.mxu0 %v51
  %1015 = vmatpush1.msra.mxu0 %v50
  %1016 = vmatprep.subr.mxu0 %v54
  %1017 = vmatpush1.msra.mxu0 %v53
  %1018 = vmatprep.subr.mxu0 %v57
  %1019 = vmatpush1.msra.mxu0 %v56
  %1020 = vmatprep.subr.mxu0 %v60
  %1021 = vmatpush1.msra.mxu0 %v59
  %1022 = vmatprep.subr.mxu0 %v63
  %1023 = vmatpush1.msra.mxu0 %v62
  %1024 = vmatprep.subr.mxu0 %v66
  %1025 = vmatpush1.msra.mxu0 %v65
  %1026 = vmatprep.subr.mxu0 %v69
  %1027 = vmatpush1.msra.mxu0 %v68
  %1028 = vmatprep.subr.mxu0 0.0
  %1029 = vmatpush1.msra.mxu0 0.0
  %1030 = vmatprep.subr.mxu0 0.0
  %1031 = vmatpush1.msra.mxu0 0.0
  %1032 = vmatprep.subr.mxu0 0.0
  %1033 = vmatpush1.msra.mxu0 0.0
  %1034 = vmatprep.subr.mxu0 0.0
  %1035 = vmatpush1.msra.mxu0 0.0
  %1036 = vmatprep.subr.mxu0 0.0
  %1037 = vmatpush1.msra.mxu0 0.0
  %1038 = vmatprep.subr.mxu0 0.0
  %1039 = vmatpush1.msra.mxu0 0.0
  %1040 = vmatprep.subr.mxu0 0.0
  %1041 = vmatpush1.msra.mxu0 0.0
  %1042 = vmatprep.subr.mxu0 0.0
  %1043 = vmatpush1.msra.mxu0 0.0
  %1044 = vmatprep.subr.mxu0 0.0
  %1045 = vmatpush1.msra.mxu0 0.0
  %1046 = vmatprep.subr.mxu0 0.0
  %1047 = vmatpush1.msra.mxu0 0.0
  %1048 = vmatprep.subr.mxu0 0.0
  %1049 = vmatpush1.msra.mxu0 0.0
  %1050 = vmatprep.subr.mxu0 0.0
  %1051 = vmatpush1.msra.mxu0 0.0
  %1052 = vmatprep.subr.mxu0 0.0
  %1053 = vmatpush1.msra.mxu0 0.0
  %1054 = vmatprep.subr.mxu0 0.0
  %1055 = vmatpush1.msra.mxu0 0.0
  %1056 = vmatprep.subr.mxu0 0.0
  %1057 = vmatpush1.msra.mxu0 0.0
  %1058 = vmatprep.subr.mxu0 0.0
  %1059 = vmatpush1.msra.mxu0 0.0
  %1060 = vmatprep.mubr.f32.mxu0 0.0
  %1061 = vmatmul.mubr.f32.gmra.mrb[0].mxu0 %v621
  %v1062 = vpop.f32.mrb[0].mxu0
  %v1063 = vadd.f32 %v76, %v1062
  %v1064 = vpop.f32.mrb[0].mxu0
  %v1065 = vadd.f32 %v80, %v1064
  %1066 = vdwg.mxu0
  %1067 = vmatprep.subr.mxu0 0.0
  %1068 = vmatpush1.msra.mxu0 %v25
  %1069 = vmatprep.subr.mxu0 0.0
  %1070 = vmatpush1.msra.mxu0 %v28
  %1071 = vmatprep.subr.mxu0 0.0
  %1072 = vmatpush1.msra.mxu0 %v31
  %1073 = vmatprep.subr.mxu0 0.0
  %1074 = vmatpush1.msra.mxu0 %v34
  %1075 = vmatprep.subr.mxu0 0.0
  %1076 = vmatpush1.msra.mxu0 %v37
  %1077 = vmatprep.subr.mxu0 0.0
  %1078 = vmatpush1.msra.mxu0 %v40
  %1079 = vmatprep.subr.mxu0 0.0
  %1080 = vmatpush1.msra.mxu0 %v43
  %1081 = vmatprep.subr.mxu0 0.0
  %1082 = vmatpush1.msra.mxu0 %v46
  %1083 = vmatprep.subr.mxu0 0.0
  %1084 = vmatpush1.msra.mxu0 %v49
  %1085 = vmatprep.subr.mxu0 0.0
  %1086 = vmatpush1.msra.mxu0 %v52
  %1087 = vmatprep.subr.mxu0 0.0
  %1088 = vmatpush1.msra.mxu0 %v55
  %1089 = vmatprep.subr.mxu0 0.0
  %1090 = vmatpush1.msra.mxu0 %v58
  %1091 = vmatprep.subr.mxu0 0.0
  %1092 = vmatpush1.msra.mxu0 %v61
  %1093 = vmatprep.subr.mxu0 0.0
  %1094 = vmatpush1.msra.mxu0 %v64
  %1095 = vmatprep.subr.mxu0 0.0
  %1096 = vmatpush1.msra.mxu0 %v67
  %1097 = vmatprep.subr.mxu0 0.0
  %1098 = vmatpush1.msra.mxu0 %v70
  %1099 = vmatprep.subr.mxu0 0.0
  %1100 = vmatpush1.msra.mxu0 0.0
  %1101 = vmatprep.subr.mxu0 0.0
  %1102 = vmatpush1.msra.mxu0 0.0
  %1103 = vmatprep.subr.mxu0 0.0
  %1104 = vmatpush1.msra.mxu0 0.0
  %1105 = vmatprep.subr.mxu0 0.0
  %1106 = vmatpush1.msra.mxu0 0.0
  %1107 = vmatprep.subr.mxu0 0.0
  %1108 = vmatpush1.msra.mxu0 0.0
  %1109 = vmatprep.subr.mxu0 0.0
  %1110 = vmatpush1.msra.mxu0 0.0
  %1111 = vmatprep.subr.mxu0 0.0
  %1112 = vmatpush1.msra.mxu0 0.0
  %1113 = vmatprep.subr.mxu0 0.0
  %1114 = vmatpush1.msra.mxu0 0.0
  %1115 = vmatprep.subr.mxu0 0.0
  %1116 = vmatpush1.msra.mxu0 0.0
  %1117 = vmatprep.subr.mxu0 0.0
  %1118 = vmatpush1.msra.mxu0 0.0
  %1119 = vmatprep.subr.mxu0 0.0
  %1120 = vmatpush1.msra.mxu0 0.0
  %1121 = vmatprep.subr.mxu0 0.0
  %1122 = vmatpush1.msra.mxu0 0.0
  %1123 = vmatprep.subr.mxu0 0.0
  %1124 = vmatpush1.msra.mxu0 0.0
  %1125 = vmatprep.subr.mxu0 0.0
  %1126 = vmatpush1.msra.mxu0 0.0
  %1127 = vmatprep.subr.mxu0 0.0
  %1128 = vmatpush1.msra.mxu0 0.0
  %1129 = vmatprep.subr.mxu0 0.0
  %1130 = vmatpush1.msra.mxu0 0.0
  %1131 = vmatprep.mubr.f32.mxu0 0.0
  %1132 = vmatmul.mubr.f32.gmra.mrb[0].mxu0 %v621
  %v1133 = vpop.f32.mrb[0].mxu0
  %v1134 = vadd.f32 %v84, %v1133
  %v1135 = vpop.f32.mrb[0].mxu0
  %1136 = vdwg.mxu0
  %v1137 = vadd.f32 %v993, %v1063
  %v1138 = vadd.f32 %v994, %v1065
  %v1139 = vxor.u32 %v1137, 2147483648
  %v1140 = vxor.u32 %v1138, 2147483648
  %v1141 = vmul.f32 %v1139, 1.442695
  %v1142 = vpow.pop %v1141
  %v1143 = vmul.f32 %v1140, 1.442695
  %v1144 = vpow.pop %v1143
  %v1145 = vadd.f32 %v1142, 1.0
  %v1146 = vadd.f32 %v1144, 1.0
  %v1147 = vrcp.pop %v1145
  %v1148 = vmul.f32 1.0, %v1147
  %v1149 = vrcp.pop %v1146
  %v1150 = vmul.f32 1.0, %v1149
  %v1151 = vmul.f32 %v1148, %v1134
  %v1152 = vadd.f32 %v995, %v1151
  %v1153 = vtanh.pop %v1152
  %v1154 = vsub.f32 1.0, %v1150
  %v1155 = vmul.f32 %v1154, %v1153
  %v1156 = vmul.f32 %v1150, %v621
  %v1157 = vadd.f32 %v1155, %v1156
  %1158 = vmatprep.subr.mxu0 %v251
  %1159 = vmatpush1.msra.mxu0 %v250
  %1160 = vmatprep.subr.mxu0 %v254
  %1161 = vmatpush1.msra.mxu0 %v253
  %1162 = vmatprep.subr.mxu0 %v257
  %1163 = vmatpush1.msra.mxu0 %v256
  %1164 = vmatprep.subr.mxu0 %v260
  %1165 = vmatpush1.msra.mxu0 %v259
  %1166 = vmatprep.subr.mxu0 %v263
  %1167 = vmatpush1.msra.mxu0 %v262
  %1168 = vmatprep.subr.mxu0 %v266
  %1169 = vmatpush1.msra.mxu0 %v265
  %1170 = vmatprep.subr.mxu0 %v269
  %1171 = vmatpush1.msra.mxu0 %v268
  %1172 = vmatprep.subr.mxu0 %v272
  %1173 = vmatpush1.msra.mxu0 %v271
  %1174 = vmatprep.subr.mxu0 %v275
  %1175 = vmatpush1.msra.mxu0 %v274
  %1176 = vmatprep.subr.mxu0 %v278
  %1177 = vmatpush1.msra.mxu0 %v277
  %1178 = vmatprep.subr.mxu0 %v281
  %1179 = vmatpush1.msra.mxu0 %v280
  %1180 = vmatprep.subr.mxu0 %v284
  %1181 = vmatpush1.msra.mxu0 %v283
  %1182 = vmatprep.subr.mxu0 %v287
  %1183 = vmatpush1.msra.mxu0 %v286
  %1184 = vmatprep.subr.mxu0 %v290
  %1185 = vmatpush1.msra.mxu0 %v289
  %1186 = vmatprep.subr.mxu0 %v293
  %1187 = vmatpush1.msra.mxu0 %v292
  %1188 = vmatprep.subr.mxu0 %v296
  %1189 = vmatpush1.msra.mxu0 %v295
  %1190 = vmatprep.subr.mxu0 0.0
  %1191 = vmatpush1.msra.mxu0 0.0
  %1192 = vmatprep.subr.mxu0 0.0
  %1193 = vmatpush1.msra.mxu0 0.0
  %1194 = vmatprep.subr.mxu0 0.0
  %1195 = vmatpush1.msra.mxu0 0.0
  %1196 = vmatprep.subr.mxu0 0.0
  %1197 = vmatpush1.msra.mxu0 0.0
  %1198 = vmatprep.subr.mxu0 0.0
  %1199 = vmatpush1.msra.mxu0 0.0
  %1200 = vmatprep.subr.mxu0 0.0
  %1201 = vmatpush1.msra.mxu0 0.0
  %1202 = vmatprep.subr.mxu0 0.0
  %1203 = vmatpush1.msra.mxu0 0.0
  %1204 = vmatprep.subr.mxu0 0.0
  %1205 = vmatpush1.msra.mxu0 0.0
  %1206 = vmatprep.subr.mxu0 0.0
  %1207 = vmatpush1.msra.mxu0 0.0
  %1208 = vmatprep.subr.mxu0 0.0
  %1209 = vmatpush1.msra.mxu0 0.0
  %1210 = vmatprep.subr.mxu0 0.0
  %1211 = vmatpush1.msra.mxu0 0.0
  %1212 = vmatprep.subr.mxu0 0.0
  %1213 = vmatpush1.msra.mxu0 0.0
  %1214 = vmatprep.subr.mxu0 0.0
  %1215 = vmatpush1.msra.mxu0 0.0
  %1216 = vmatprep.subr.mxu0 0.0
  %1217 = vmatpush1.msra.mxu0 0.0
  %1218 = vmatprep.subr.mxu0 0.0
  %1219 = vmatpush1.msra.mxu0 0.0
  %1220 = vmatprep.subr.mxu0 0.0
  %1221 = vmatpush1.msra.mxu0 0.0
  %1222 = vmatprep.mubr.f32.mxu0 0.0
  %1223 = vmatmul.mubr.f32.gmra.mrb[0].mxu0 %v1157
  %v1224 = vpop.f32.mrb[0].mxu0
  %v1225 = vadd.f32 %v303, %v1224
  %v1226 = vpop.f32.mrb[0].mxu0
  %v1227 = vadd.f32 %v307, %v1226
  %1228 = vdwg.mxu0
  %1229 = vmatprep.subr.mxu0 0.0
  %1230 = vmatpush1.msra.mxu0 %v252
  %1231 = vmatprep.subr.mxu0 0.0
  %1232 = vmatpush1.msra.mxu0 %v255
  %1233 = vmatprep.subr.mxu0 0.0
  %1234 = vmatpush1.msra.mxu0 %v258
  %1235 = vmatprep.subr.mxu0 0.0
  %1236 = vmatpush1.msra.mxu0 %v261
  %1237 = vmatprep.subr.mxu0 0.0
  %1238 = vmatpush1.msra.mxu0 %v264
  %1239 = vmatprep.subr.mxu0 0.0
  %1240 = vmatpush1.msra.mxu0 %v267
  %1241 = vmatprep.subr.mxu0 0.0
  %1242 = vmatpush1.msra.mxu0 %v270
  %1243 = vmatprep.subr.mxu0 0.0
  %1244 = vmatpush1.msra.mxu0 %v273
  %1245 = vmatprep.subr.mxu0 0.0
  %1246 = vmatpush1.msra.mxu0 %v276
  %1247 = vmatprep.subr.mxu0 0.0
  %1248 = vmatpush1.msra.mxu0 %v279
  %1249 = vmatprep.subr.mxu0 0.0
  %1250 = vmatpush1.msra.mxu0 %v282
  %1251 = vmatprep.subr.mxu0 0.0
  %1252 = vmatpush1.msra.mxu0 %v285
  %1253 = vmatprep.subr.mxu0 0.0
  %1254 = vmatpush1.msra.mxu0 %v288
  %1255 = vmatprep.subr.mxu0 0.0
  %1256 = vmatpush1.msra.mxu0 %v291
  %1257 = vmatprep.subr.mxu0 0.0
  %1258 = vmatpush1.msra.mxu0 %v294
  %1259 = vmatprep.subr.mxu0 0.0
  %1260 = vmatpush1.msra.mxu0 %v297
  %1261 = vmatprep.subr.mxu0 0.0
  %1262 = vmatpush1.msra.mxu0 0.0
  %1263 = vmatprep.subr.mxu0 0.0
  %1264 = vmatpush1.msra.mxu0 0.0
  %1265 = vmatprep.subr.mxu0 0.0
  %1266 = vmatpush1.msra.mxu0 0.0
  %1267 = vmatprep.subr.mxu0 0.0
  %1268 = vmatpush1.msra.mxu0 0.0
  %1269 = vmatprep.subr.mxu0 0.0
  %1270 = vmatpush1.msra.mxu0 0.0
  %1271 = vmatprep.subr.mxu0 0.0
  %1272 = vmatpush1.msra.mxu0 0.0
  %1273 = vmatprep.subr.mxu0 0.0
  %1274 = vmatpush1.msra.mxu0 0.0
  %1275 = vmatprep.subr.mxu0 0.0
  %1276 = vmatpush1.msra.mxu0 0.0
  %1277 = vmatprep.subr.mxu0 0.0
  %1278 = vmatpush1.msra.mxu0 0.0
  %1279 = vmatprep.subr.mxu0 0.0
  %1280 = vmatpush1.msra.mxu0 0.0
  %1281 = vmatprep.subr.mxu0 0.0
  %1282 = vmatpush1.msra.mxu0 0.0
  %1283 = vmatprep.subr.mxu0 0.0
  %1284 = vmatpush1.msra.mxu0 0.0
  %1285 = vmatprep.subr.mxu0 0.0
  %1286 = vmatpush1.msra.mxu0 0.0
  %1287 = vmatprep.subr.mxu0 0.0
  %1288 = vmatpush1.msra.mxu0 0.0
  %1289 = vmatprep.subr.mxu0 0.0
  %1290 = vmatpush1.msra.mxu0 0.0
  %1291 = vmatprep.subr.mxu0 0.0
  %1292 = vmatpush1.msra.mxu0 0.0
  %1293 = vmatprep.mubr.f32.mxu0 0.0
  %1294 = vmatmul.mubr.f32.gmra.mrb[0].mxu0 %v1157
  %v1295 = vpop.f32.mrb[0].mxu0
  %v1296 = vadd.f32 %v311, %v1295
  %v1297 = vpop.f32.mrb[0].mxu0
  %1298 = vdwg.mxu0
  %1299 = vmatprep.subr.mxu0 %v765
  %1300 = vmatpush1.msra.mxu0 %v764
  %1301 = vmatprep.subr.mxu0 %v768
  %1302 = vmatpush1.msra.mxu0 %v767
  %1303 = vmatprep.subr.mxu0 %v771
  %1304 = vmatpush1.msra.mxu0 %v770
  %1305 = vmatprep.subr.mxu0 %v774
  %1306 = vmatpush1.msra.mxu0 %v773
  %1307 = vmatprep.subr.mxu0 %v777
  %1308 = vmatpush1.msra.mxu0 %v776
  %1309 = vmatprep.subr.mxu0 %v780
  %1310 = vmatpush1.msra.mxu0 %v779
  %1311 = vmatprep.subr.mxu0 %v783
  %1312 = vmatpush1.msra.mxu0 %v782
  %1313 = vmatprep.subr.mxu0 %v786
  %1314 = vmatpush1.msra.mxu0 %v785
  %1315 = vmatprep.subr.mxu0 %v789
  %1316 = vmatpush1.msra.mxu0 %v788
  %1317 = vmatprep.subr.mxu0 %v792
  %1318 = vmatpush1.msra.mxu0 %v791
  %1319 = vmatprep.subr.mxu0 %v795
  %1320 = vmatpush1.msra.mxu0 %v794
  %1321 = vmatprep.subr.mxu0 %v798
  %1322 = vmatpush1.msra.mxu0 %v797
  %1323 = vmatprep.subr.mxu0 %v801
  %1324 = vmatpush1.msra.mxu0 %v800
  %1325 = vmatprep.subr.mxu0 %v804
  %1326 = vmatpush1.msra.mxu0 %v803
  %1327 = vmatprep.subr.mxu0 %v807
  %1328 = vmatpush1.msra.mxu0 %v806
  %1329 = vmatprep.subr.mxu0 %v810
  %1330 = vmatpush1.msra.mxu0 %v809
  %1331 = vmatprep.subr.mxu0 0.0
  %1332 = vmatpush1.msra.mxu0 0.0
  %1333 = vmatprep.subr.mxu0 0.0
  %1334 = vmatpush1.msra.mxu0 0.0
  %1335 = vmatprep.subr.mxu0 0.0
  %1336 = vmatpush1.msra.mxu0 0.0
  %1337 = vmatprep.subr.mxu0 0.0
  %1338 = vmatpush1.msra.mxu0 0.0
  %1339 = vmatprep.subr.mxu0 0.0
  %1340 = vmatpush1.msra.mxu0 0.0
  %1341 = vmatprep.subr.mxu0 0.0
  %1342 = vmatpush1.msra.mxu0 0.0
  %1343 = vmatprep.subr.mxu0 0.0
  %1344 = vmatpush1.msra.mxu0 0.0
  %1345 = vmatprep.subr.mxu0 0.0
  %1346 = vmatpush1.msra.mxu0 0.0
  %1347 = vmatprep.subr.mxu0 0.0
  %1348 = vmatpush1.msra.mxu0 0.0
  %1349 = vmatprep.subr.mxu0 0.0
  %1350 = vmatpush1.msra.mxu0 0.0
  %1351 = vmatprep.subr.mxu0 0.0
  %1352 = vmatpush1.msra.mxu0 0.0
  %1353 = vmatprep.subr.mxu0 0.0
  %1354 = vmatpush1.msra.mxu0 0.0
  %1355 = vmatprep.subr.mxu0 0.0
  %1356 = vmatpush1.msra.mxu0 0.0
  %1357 = vmatprep.subr.mxu0 0.0
  %1358 = vmatpush1.msra.mxu0 0.0
  %1359 = vmatprep.subr.mxu0 0.0
  %1360 = vmatpush1.msra.mxu0 0.0
  %1361 = vmatprep.subr.mxu0 0.0
  %1362 = vmatpush1.msra.mxu0 0.0
  %1363 = vmatprep.mubr.f32.mxu0 0.0
  %1364 = vmatmul.mubr.f32.gmra.mrb[0].mxu0 %v991
  %v1365 = vpop.f32.mrb[0].mxu0
  %v1366 = vadd.f32 %v818, %v1365
  %v1367 = vpop.f32.mrb[0].mxu0
  %v1368 = vadd.f32 %v822, %v1367
  %1369 = vdwg.mxu0
  %1370 = vmatprep.subr.mxu0 0.0
  %1371 = vmatpush1.msra.mxu0 %v766
  %1372 = vmatprep.subr.mxu0 0.0
  %1373 = vmatpush1.msra.mxu0 %v769
  %1374 = vmatprep.subr.mxu0 0.0
  %1375 = vmatpush1.msra.mxu0 %v772
  %1376 = vmatprep.subr.mxu0 0.0
  %1377 = vmatpush1.msra.mxu0 %v775
  %1378 = vmatprep.subr.mxu0 0.0
  %1379 = vmatpush1.msra.mxu0 %v778
  %1380 = vmatprep.subr.mxu0 0.0
  %1381 = vmatpush1.msra.mxu0 %v781
  %1382 = vmatprep.subr.mxu0 0.0
  %1383 = vmatpush1.msra.mxu0 %v784
  %1384 = vmatprep.subr.mxu0 0.0
  %1385 = vmatpush1.msra.mxu0 %v787
  %1386 = vmatprep.subr.mxu0 0.0
  %1387 = vmatpush1.msra.mxu0 %v790
  %1388 = vmatprep.subr.mxu0 0.0
  %1389 = vmatpush1.msra.mxu0 %v793
  %1390 = vmatprep.subr.mxu0 0.0
  %1391 = vmatpush1.msra.mxu0 %v796
  %1392 = vmatprep.subr.mxu0 0.0
  %1393 = vmatpush1.msra.mxu0 %v799
  %1394 = vmatprep.subr.mxu0 0.0
  %1395 = vmatpush1.msra.mxu0 %v802
  %1396 = vmatprep.subr.mxu0 0.0
  %1397 = vmatpush1.msra.mxu0 %v805
  %1398 = vmatprep.subr.mxu0 0.0
  %1399 = vmatpush1.msra.mxu0 %v808
  %1400 = vmatprep.subr.mxu0 0.0
  %1401 = vmatpush1.msra.mxu0 %v811
  %1402 = vmatprep.subr.mxu0 0.0
  %1403 = vmatpush1.msra.mxu0 0.0
  %1404 = vmatprep.subr.mxu0 0.0
  %1405 = vmatpush1.msra.mxu0 0.0
  %1406 = vmatprep.subr.mxu0 0.0
  %1407 = vmatpush1.msra.mxu0 0.0
  %1408 = vmatprep.subr.mxu0 0.0
  %1409 = vmatpush1.msra.mxu0 0.0
  %1410 = vmatprep.subr.mxu0 0.0
  %1411 = vmatpush1.msra.mxu0 0.0
  %1412 = vmatprep.subr.mxu0 0.0
  %1413 = vmatpush1.msra.mxu0 0.0
  %1414 = vmatprep.subr.mxu0 0.0
  %1415 = vmatpush1.msra.mxu0 0.0
  %1416 = vmatprep.subr.mxu0 0.0
  %1417 = vmatpush1.msra.mxu0 0.0
  %1418 = vmatprep.subr.mxu0 0.0
  %1419 = vmatpush1.msra.mxu0 0.0
  %1420 = vmatprep.subr.mxu0 0.0
  %1421 = vmatpush1.msra.mxu0 0.0
  %1422 = vmatprep.subr.mxu0 0.0
  %1423 = vmatpush1.msra.mxu0 0.0
  %1424 = vmatprep.subr.mxu0 0.0
  %1425 = vmatpush1.msra.mxu0 0.0
  %1426 = vmatprep.subr.mxu0 0.0
  %1427 = vmatpush1.msra.mxu0 0.0
  %1428 = vmatprep.subr.mxu0 0.0
  %1429 = vmatpush1.msra.mxu0 0.0
  %1430 = vmatprep.subr.mxu0 0.0
  %1431 = vmatpush1.msra.mxu0 0.0
  %1432 = vmatprep.subr.mxu0 0.0
  %1433 = vmatpush1.msra.mxu0 0.0
  %1434 = vmatprep.mubr.f32.mxu0 0.0
  %1435 = vmatmul.mubr.f32.gmra.mrb[0].mxu0 %v991
  %v1436 = vpop.f32.mrb[0].mxu0
  %v1437 = vadd.f32 %v826, %v1436
  %v1438 = vpop.f32.mrb[0].mxu0
  %1439 = vdwg.mxu0
  %v1440 = vadd.f32 %v689, %v1366
  %v1441 = vadd.f32 %v691, %v1368
  %v1442 = vxor.u32 %v1440, 2147483648
  %v1443 = vxor.u32 %v1441, 2147483648
  %v1444 = vmul.f32 %v1442, 1.442695
  %v1445 = vpow.pop %v1444
  %v1446 = vmul.f32 %v1443, 1.442695
  %v1447 = vpow.pop %v1446
  %v1448 = vadd.f32 %v1445, 1.0
  %v1449 = vadd.f32 %v1447, 1.0
  %v1450 = vrcp.pop %v1448
  %v1451 = vmul.f32 1.0, %v1450
  %v1452 = vrcp.pop %v1449
  %v1453 = vmul.f32 1.0, %v1452
  %v1454 = vmul.f32 %v1451, %v1437
  %v1455 = vadd.f32 %v760, %v1454
  %v1456 = vtanh.pop %v1455
  %v1457 = vsub.f32 1.0, %v1453
  %v1458 = vmul.f32 %v1457, %v1456
  %v1459 = vmul.f32 %v1453, %v991
  %v1460 = vadd.f32 %v1458, %v1459
  %s1461 = scalar_lea.vmem %s0, 72
  %v1462 = vld [vmem:[%s1461] sm:$0xff]
  %v1463 = vld [vmem:[%s1461 + $0x8] sm:$0xff]
  %v1464 = vld [vmem:[%s1461 + $0x10] sm:$0xff]
  %1465 = vmatprep.subr.mxu0 %v24
  %1466 = vmatpush1.msra.mxu0 %v23
  %1467 = vmatprep.subr.mxu0 %v27
  %1468 = vmatpush1.msra.mxu0 %v26
  %1469 = vmatprep.subr.mxu0 %v30
  %1470 = vmatpush1.msra.mxu0 %v29
  %1471 = vmatprep.subr.mxu0 %v33
  %1472 = vmatpush1.msra.mxu0 %v32
  %1473 = vmatprep.subr.mxu0 %v36
  %1474 = vmatpush1.msra.mxu0 %v35
  %1475 = vmatprep.subr.mxu0 %v39
  %1476 = vmatpush1.msra.mxu0 %v38
  %1477 = vmatprep.subr.mxu0 %v42
  %1478 = vmatpush1.msra.mxu0 %v41
  %1479 = vmatprep.subr.mxu0 %v45
  %1480 = vmatpush1.msra.mxu0 %v44
  %1481 = vmatprep.subr.mxu0 %v48
  %1482 = vmatpush1.msra.mxu0 %v47
  %1483 = vmatprep.subr.mxu0 %v51
  %1484 = vmatpush1.msra.mxu0 %v50
  %1485 = vmatprep.subr.mxu0 %v54
  %1486 = vmatpush1.msra.mxu0 %v53
  %1487 = vmatprep.subr.mxu0 %v57
  %1488 = vmatpush1.msra.mxu0 %v56
  %1489 = vmatprep.subr.mxu0 %v60
  %1490 = vmatpush1.msra.mxu0 %v59
  %1491 = vmatprep.subr.mxu0 %v63
  %1492 = vmatpush1.msra.mxu0 %v62
  %1493 = vmatprep.subr.mxu0 %v66
  %1494 = vmatpush1.msra.mxu0 %v65
  %1495 = vmatprep.subr.mxu0 %v69
  %1496 = vmatpush1.msra.mxu0 %v68
  %1497 = vmatprep.subr.mxu0 0.0
  %1498 = vmatpush1.msra.mxu0 0.0
  %1499 = vmatprep.subr.mxu0 0.0
  %1500 = vmatpush1.msra.mxu0 0.0
  %1501 = vmatprep.subr.mxu0 0.0
  %1502 = vmatpush1.msra.mxu0 0.0
  %1503 = vmatprep.subr.mxu0 0.0
  %1504 = vmatpush1.msra.mxu0 0.0
  %1505 = vmatprep.subr.mxu0 0.0
  %1506 = vmatpush1.msra.mxu0 0.0
  %1507 = vmatprep.subr.mxu0 0.0
  %1508 = vmatpush1.msra.mxu0 0.0
  %1509 = vmatprep.subr.mxu0 0.0
  %1510 = vmatpush1.msra.mxu0 0.0
  %1511 = vmatprep.subr.mxu0 0.0
  %1512 = vmatpush1.msra.mxu0 0.0
  %1513 = vmatprep.subr.mxu0 0.0
  %1514 = vmatpush1.msra.mxu0 0.0
  %1515 = vmatprep.subr.mxu0 0.0
  %1516 = vmatpush1.msra.mxu0 0.0
  %1517 = vmatprep.subr.mxu0 0.0
  %1518 = vmatpush1.msra.mxu0 0.0
  %1519 = vmatprep.subr.mxu0 0.0
  %1520 = vmatpush1.msra.mxu0 0.0
  %1521 = vmatprep.subr.mxu0 0.0
  %1522 = vmatpush1.msra.mxu0 0.0
  %1523 = vmatprep.subr.mxu0 0.0
  %1524 = vmatpush1.msra.mxu0 0.0
  %1525 = vmatprep.subr.mxu0 0.0
  %1526 = vmatpush1.msra.mxu0 0.0
  %1527 = vmatprep.subr.mxu0 0.0
  %1528 = vmatpush1.msra.mxu0 0.0
  %1529 = vmatprep.mubr.f32.mxu0 0.0
  %1530 = vmatmul.mubr.f32.gmra.mrb[0].mxu0 %v1157
  %v1531 = vpop.f32.mrb[0].mxu0
  %v1532 = vadd.f32 %v76, %v1531
  %v1533 = vpop.f32.mrb[0].mxu0
  %v1534 = vadd.f32 %v80, %v1533
  %1535 = vdwg.mxu0
  %1536 = vmatprep.subr.mxu0 0.0
  %1537 = vmatpush1.msra.mxu0 %v25
  %1538 = vmatprep.subr.mxu0 0.0
  %1539 = vmatpush1.msra.mxu0 %v28
  %1540 = vmatprep.subr.mxu0 0.0
  %1541 = vmatpush1.msra.mxu0 %v31
  %1542 = vmatprep.subr.mxu0 0.0
  %1543 = vmatpush1.msra.mxu0 %v34
  %1544 = vmatprep.subr.mxu0 0.0
  %1545 = vmatpush1.msra.mxu0 %v37
  %1546 = vmatprep.subr.mxu0 0.0
  %1547 = vmatpush1.msra.mxu0 %v40
  %1548 = vmatprep.subr.mxu0 0.0
  %1549 = vmatpush1.msra.mxu0 %v43
  %1550 = vmatprep.subr.mxu0 0.0
  %1551 = vmatpush1.msra.mxu0 %v46
  %1552 = vmatprep.subr.mxu0 0.0
  %1553 = vmatpush1.msra.mxu0 %v49
  %1554 = vmatprep.subr.mxu0 0.0
  %1555 = vmatpush1.msra.mxu0 %v52
  %1556 = vmatprep.subr.mxu0 0.0
  %1557 = vmatpush1.msra.mxu0 %v55
  %1558 = vmatprep.subr.mxu0 0.0
  %1559 = vmatpush1.msra.mxu0 %v58
  %1560 = vmatprep.subr.mxu0 0.0
  %1561 = vmatpush1.msra.mxu0 %v61
  %1562 = vmatprep.subr.mxu0 0.0
  %1563 = vmatpush1.msra.mxu0 %v64
  %1564 = vmatprep.subr.mxu0 0.0
  %1565 = vmatpush1.msra.mxu0 %v67
  %1566 = vmatprep.subr.mxu0 0.0
  %1567 = vmatpush1.msra.mxu0 %v70
  %1568 = vmatprep.subr.mxu0 0.0
  %1569 = vmatpush1.msra.mxu0 0.0
  %1570 = vmatprep.subr.mxu0 0.0
  %1571 = vmatpush1.msra.mxu0 0.0
  %1572 = vmatprep.subr.mxu0 0.0
  %1573 = vmatpush1.msra.mxu0 0.0
  %1574 = vmatprep.subr.mxu0 0.0
  %1575 = vmatpush1.msra.mxu0 0.0
  %1576 = vmatprep.subr.mxu0 0.0
  %1577 = vmatpush1.msra.mxu0 0.0
  %1578 = vmatprep.subr.mxu0 0.0
  %1579 = vmatpush1.msra.mxu0 0.0
  %1580 = vmatprep.subr.mxu0 0.0
  %1581 = vmatpush1.msra.mxu0 0.0
  %1582 = vmatprep.subr.mxu0 0.0
  %1583 = vmatpush1.msra.mxu0 0.0
  %1584 = vmatprep.subr.mxu0 0.0
  %1585 = vmatpush1.msra.mxu0 0.0
  %1586 = vmatprep.subr.mxu0 0.0
  %1587 = vmatpush1.msra.mxu0 0.0
  %1588 = vmatprep.subr.mxu0 0.0
  %1589 = vmatpush1.msra.mxu0 0.0
  %1590 = vmatprep.subr.mxu0 0.0
  %1591 = vmatpush1.msra.mxu0 0.0
  %1592 = vmatprep.subr.mxu0 0.0
  %1593 = vmatpush1.msra.mxu0 0.0
  %1594 = vmatprep.subr.mxu0 0.0
  %1595 = vmatpush1.msra.mxu0 0.0
  %1596 = vmatprep.subr.mxu0 0.0
  %1597 = vmatpush1.msra.mxu0 0.0
  %1598 = vmatprep.subr.mxu0 0.0
  %1599 = vmatpush1.msra.mxu0 0.0
  %1600 = vmatprep.mubr.f32.mxu0 0.0
  %1601 = vmatmul.mubr.f32.gmra.mrb[0].mxu0 %v1157
  %v1602 = vpop.f32.mrb[0].mxu0
  %v1603 = vadd.f32 %v84, %v1602
  %v1604 = vpop.f32.mrb[0].mxu0
  %1605 = vdwg.mxu0
  %v1606 = vadd.f32 %v1462, %v1532
  %v1607 = vadd.f32 %v1463, %v1534
  %v1608 = vxor.u32 %v1606, 2147483648
  %v1609 = vxor.u32 %v1607, 2147483648
  %v1610 = vmul.f32 %v1608, 1.442695
  %v1611 = vpow.pop %v1610
  %v1612 = vmul.f32 %v1609, 1.442695
  %v1613 = vpow.pop %v1612
  %v1614 = vadd.f32 %v1611, 1.0
  %v1615 = vadd.f32 %v1613, 1.0
  %v1616 = vrcp.pop %v1614
  %v1617 = vmul.f32 1.0, %v1616
  %v1618 = vrcp.pop %v1615
  %v1619 = vmul.f32 1.0, %v1618
  %v1620 = vmul.f32 %v1617, %v1603
  %v1621 = vadd.f32 %v1464, %v1620
  %v1622 = vtanh.pop %v1621
  %v1623 = vsub.f32 1.0, %v1619
  %v1624 = vmul.f32 %v1623, %v1622
  %v1625 = vmul.f32 %v1619, %v1157
  %v1626 = vadd.f32 %v1624, %v1625
  %1627 = vmatprep.subr.mxu0 %v251
  %1628 = vmatpush1.msra.mxu0 %v250
  %1629 = vmatprep.subr.mxu0 %v254
  %1630 = vmatpush1.msra.mxu0 %v253
  %1631 = vmatprep.subr.mxu0 %v257
  %1632 = vmatpush1.msra.mxu0 %v256
  %1633 = vmatprep.subr.mxu0 %v260
  %1634 = vmatpush1.msra.mxu0 %v259
  %1635 = vmatprep.subr.mxu0 %v263
  %1636 = vmatpush1.msra.mxu0 %v262
  %1637 = vmatprep.subr.mxu0 %v266
  %1638 = vmatpush1.msra.mxu0 %v265
  %1639 = vmatprep.subr.mxu0 %v269
  %1640 = vmatpush1.msra.mxu0 %v268
  %1641 = vmatprep.subr.mxu0 %v272
  %1642 = vmatpush1.msra.mxu0 %v271
  %1643 = vmatprep.subr.mxu0 %v275
  %1644 = vmatpush1.msra.mxu0 %v274
  %1645 = vmatprep.subr.mxu0 %v278
  %1646 = vmatpush1.msra.mxu0 %v277
  %1647 = vmatprep.subr.mxu0 %v281
  %1648 = vmatpush1.msra.mxu0 %v280
  %1649 = vmatprep.subr.mxu0 %v284
  %1650 = vmatpush1.msra.mxu0 %v283
  %1651 = vmatprep.subr.mxu0 %v287
  %1652 = vmatpush1.msra.mxu0 %v286
  %1653 = vmatprep.subr.mxu0 %v290
  %1654 = vmatpush1.msra.mxu0 %v289
  %1655 = vmatprep.subr.mxu0 %v293
  %1656 = vmatpush1.msra.mxu0 %v292
  %1657 = vmatprep.subr.mxu0 %v296
  %1658 = vmatpush1.msra.mxu0 %v295
  %1659 = vmatprep.subr.mxu0 0.0
  %1660 = vmatpush1.msra.mxu0 0.0
  %1661 = vmatprep.subr.mxu0 0.0
  %1662 = vmatpush1.msra.mxu0 0.0
  %1663 = vmatprep.subr.mxu0 0.0
  %1664 = vmatpush1.msra.mxu0 0.0
  %1665 = vmatprep.subr.mxu0 0.0
  %1666 = vmatpush1.msra.mxu0 0.0
  %1667 = vmatprep.subr.mxu0 0.0
  %1668 = vmatpush1.msra.mxu0 0.0
  %1669 = vmatprep.subr.mxu0 0.0
  %1670 = vmatpush1.msra.mxu0 0.0
  %1671 = vmatprep.subr.mxu0 0.0
  %1672 = vmatpush1.msra.mxu0 0.0
  %1673 = vmatprep.subr.mxu0 0.0
  %1674 = vmatpush1.msra.mxu0 0.0
  %1675 = vmatprep.subr.mxu0 0.0
  %1676 = vmatpush1.msra.mxu0 0.0
  %1677 = vmatprep.subr.mxu0 0.0
  %1678 = vmatpush1.msra.mxu0 0.0
  %1679 = vmatprep.subr.mxu0 0.0
  %1680 = vmatpush1.msra.mxu0 0.0
  %1681 = vmatprep.subr.mxu0 0.0
  %1682 = vmatpush1.msra.mxu0 0.0
  %1683 = vmatprep.subr.mxu0 0.0
  %1684 = vmatpush1.msra.mxu0 0.0
  %1685 = vmatprep.subr.mxu0 0.0
  %1686 = vmatpush1.msra.mxu0 0.0
  %1687 = vmatprep.subr.mxu0 0.0
  %1688 = vmatpush1.msra.mxu0 0.0
  %1689 = vmatprep.subr.mxu0 0.0
  %1690 = vmatpush1.msra.mxu0 0.0
  %1691 = vmatprep.mubr.f32.mxu0 0.0
  %1692 = vmatmul.mubr.f32.gmra.mrb[0].mxu0 %v1626
  %v1693 = vpop.f32.mrb[0].mxu0
  %v1694 = vadd.f32 %v303, %v1693
  %v1695 = vpop.f32.mrb[0].mxu0
  %v1696 = vadd.f32 %v307, %v1695
  %1697 = vdwg.mxu0
  %1698 = vmatprep.subr.mxu0 0.0
  %1699 = vmatpush1.msra.mxu0 %v252
  %1700 = vmatprep.subr.mxu0 0.0
  %1701 = vmatpush1.msra.mxu0 %v255
  %1702 = vmatprep.subr.mxu0 0.0
  %1703 = vmatpush1.msra.mxu0 %v258
  %1704 = vmatprep.subr.mxu0 0.0
  %1705 = vmatpush1.msra.mxu0 %v261
  %1706 = vmatprep.subr.mxu0 0.0
  %1707 = vmatpush1.msra.mxu0 %v264
  %1708 = vmatprep.subr.mxu0 0.0
  %1709 = vmatpush1.msra.mxu0 %v267
  %1710 = vmatprep.subr.mxu0 0.0
  %1711 = vmatpush1.msra.mxu0 %v270
  %1712 = vmatprep.subr.mxu0 0.0
  %1713 = vmatpush1.msra.mxu0 %v273
  %1714 = vmatprep.subr.mxu0 0.0
  %1715 = vmatpush1.msra.mxu0 %v276
  %1716 = vmatprep.subr.mxu0 0.0
  %1717 = vmatpush1.msra.mxu0 %v279
  %1718 = vmatprep.subr.mxu0 0.0
  %1719 = vmatpush1.msra.mxu0 %v282
  %1720 = vmatprep.subr.mxu0 0.0
  %1721 = vmatpush1.msra.mxu0 %v285
  %1722 = vmatprep.subr.mxu0 0.0
  %1723 = vmatpush1.msra.mxu0 %v288
  %1724 = vmatprep.subr.mxu0 0.0
  %1725 = vmatpush1.msra.mxu0 %v291
  %1726 = vmatprep.subr.mxu0 0.0
  %1727 = vmatpush1.msra.mxu0 %v294
  %1728 = vmatprep.subr.mxu0 0.0
  %1729 = vmatpush1.msra.mxu0 %v297
  %1730 = vmatprep.subr.mxu0 0.0
  %1731 = vmatpush1.msra.mxu0 0.0
  %1732 = vmatprep.subr.mxu0 0.0
  %1733 = vmatpush1.msra.mxu0 0.0
  %1734 = vmatprep.subr.mxu0 0.0
  %1735 = vmatpush1.msra.mxu0 0.0
  %1736 = vmatprep.subr.mxu0 0.0
  %1737 = vmatpush1.msra.mxu0 0.0
  %1738 = vmatprep.subr.mxu0 0.0
  %1739 = vmatpush1.msra.mxu0 0.0
  %1740 = vmatprep.subr.mxu0 0.0
  %1741 = vmatpush1.msra.mxu0 0.0
  %1742 = vmatprep.subr.mxu0 0.0
  %1743 = vmatpush1.msra.mxu0 0.0
  %1744 = vmatprep.subr.mxu0 0.0
  %1745 = vmatpush1.msra.mxu0 0.0
  %1746 = vmatprep.subr.mxu0 0.0
  %1747 = vmatpush1.msra.mxu0 0.0
  %1748 = vmatprep.subr.mxu0 0.0
  %1749 = vmatpush1.msra.mxu0 0.0
  %1750 = vmatprep.subr.mxu0 0.0
  %1751 = vmatpush1.msra.mxu0 0.0
  %1752 = vmatprep.subr.mxu0 0.0
  %1753 = vmatpush1.msra.mxu0 0.0
  %1754 = vmatprep.subr.mxu0 0.0
  %1755 = vmatpush1.msra.mxu0 0.0
  %1756 = vmatprep.subr.mxu0 0.0
  %1757 = vmatpush1.msra.mxu0 0.0
  %1758 = vmatprep.subr.mxu0 0.0
  %1759 = vmatpush1.msra.mxu0 0.0
  %1760 = vmatprep.subr.mxu0 0.0
  %1761 = vmatpush1.msra.mxu0 0.0
  %1762 = vmatprep.mubr.f32.mxu0 0.0
  %1763 = vmatmul.mubr.f32.gmra.mrb[0].mxu0 %v1626
  %v1764 = vpop.f32.mrb[0].mxu0
  %v1765 = vadd.f32 %v311, %v1764
  %v1766 = vpop.f32.mrb[0].mxu0
  %1767 = vdwg.mxu0
  %1768 = vmatprep.subr.mxu0 %v765
  %1769 = vmatpush1.msra.mxu0 %v764
  %1770 = vmatprep.subr.mxu0 %v768
  %1771 = vmatpush1.msra.mxu0 %v767
  %1772 = vmatprep.subr.mxu0 %v771
  %1773 = vmatpush1.msra.mxu0 %v770
  %1774 = vmatprep.subr.mxu0 %v774
  %1775 = vmatpush1.msra.mxu0 %v773
  %1776 = vmatprep.subr.mxu0 %v777
  %1777 = vmatpush1.msra.mxu0 %v776
  %1778 = vmatprep.subr.mxu0 %v780
  %1779 = vmatpush1.msra.mxu0 %v779
  %1780 = vmatprep.subr.mxu0 %v783
  %1781 = vmatpush1.msra.mxu0 %v782
  %1782 = vmatprep.subr.mxu0 %v786
  %1783 = vmatpush1.msra.mxu0 %v785
  %1784 = vmatprep.subr.mxu0 %v789
  %1785 = vmatpush1.msra.mxu0 %v788
  %1786 = vmatprep.subr.mxu0 %v792
  %1787 = vmatpush1.msra.mxu0 %v791
  %1788 = vmatprep.subr.mxu0 %v795
  %1789 = vmatpush1.msra.mxu0 %v794
  %1790 = vmatprep.subr.mxu0 %v798
  %1791 = vmatpush1.msra.mxu0 %v797
  %1792 = vmatprep.subr.mxu0 %v801
  %1793 = vmatpush1.msra.mxu0 %v800
  %1794 = vmatprep.subr.mxu0 %v804
  %1795 = vmatpush1.msra.mxu0 %v803
  %1796 = vmatprep.subr.mxu0 %v807
  %1797 = vmatpush1.msra.mxu0 %v806
  %1798 = vmatprep.subr.mxu0 %v810
  %1799 = vmatpush1.msra.mxu0 %v809
  %1800 = vmatprep.subr.mxu0 0.0
  %1801 = vmatpush1.msra.mxu0 0.0
  %1802 = vmatprep.subr.mxu0 0.0
  %1803 = vmatpush1.msra.mxu0 0.0
  %1804 = vmatprep.subr.mxu0 0.0
  %1805 = vmatpush1.msra.mxu0 0.0
  %1806 = vmatprep.subr.mxu0 0.0
  %1807 = vmatpush1.msra.mxu0 0.0
  %1808 = vmatprep.subr.mxu0 0.0
  %1809 = vmatpush1.msra.mxu0 0.0
  %1810 = vmatprep.subr.mxu0 0.0
  %1811 = vmatpush1.msra.mxu0 0.0
  %1812 = vmatprep.subr.mxu0 0.0
  %1813 = vmatpush1.msra.mxu0 0.0
  %1814 = vmatprep.subr.mxu0 0.0
  %1815 = vmatpush1.msra.mxu0 0.0
  %1816 = vmatprep.subr.mxu0 0.0
  %1817 = vmatpush1.msra.mxu0 0.0
  %1818 = vmatprep.subr.mxu0 0.0
  %1819 = vmatpush1.msra.mxu0 0.0
  %1820 = vmatprep.subr.mxu0 0.0
  %1821 = vmatpush1.msra.mxu0 0.0
  %1822 = vmatprep.subr.mxu0 0.0
  %1823 = vmatpush1.msra.mxu0 0.0
  %1824 = vmatprep.subr.mxu0 0.0
  %1825 = vmatpush1.msra.mxu0 0.0
  %1826 = vmatprep.subr.mxu0 0.0
  %1827 = vmatpush1.msra.mxu0 0.0
  %1828 = vmatprep.subr.mxu0 0.0
  %1829 = vmatpush1.msra.mxu0 0.0
  %1830 = vmatprep.subr.mxu0 0.0
  %1831 = vmatpush1.msra.mxu0 0.0
  %1832 = vmatprep.mubr.f32.mxu0 0.0
  %1833 = vmatmul.mubr.f32.gmra.mrb[0].mxu0 %v1460
  %v1834 = vpop.f32.mrb[0].mxu0
  %v1835 = vadd.f32 %v818, %v1834
  %v1836 = vpop.f32.mrb[0].mxu0
  %v1837 = vadd.f32 %v822, %v1836
  %1838 = vdwg.mxu0
  %1839 = vmatprep.subr.mxu0 0.0
  %1840 = vmatpush1.msra.mxu0 %v766
  %1841 = vmatprep.subr.mxu0 0.0
  %1842 = vmatpush1.msra.mxu0 %v769
  %1843 = vmatprep.subr.mxu0 0.0
  %1844 = vmatpush1.msra.mxu0 %v772
  %1845 = vmatprep.subr.mxu0 0.0
  %1846 = vmatpush1.msra.mxu0 %v775
  %1847 = vmatprep.subr.mxu0 0.0
  %1848 = vmatpush1.msra.mxu0 %v778
  %1849 = vmatprep.subr.mxu0 0.0
  %1850 = vmatpush1.msra.mxu0 %v781
  %1851 = vmatprep.subr.mxu0 0.0
  %1852 = vmatpush1.msra.mxu0 %v784
  %1853 = vmatprep.subr.mxu0 0.0
  %1854 = vmatpush1.msra.mxu0 %v787
  %1855 = vmatprep.subr.mxu0 0.0
  %1856 = vmatpush1.msra.mxu0 %v790
  %1857 = vmatprep.subr.mxu0 0.0
  %1858 = vmatpush1.msra.mxu0 %v793
  %1859 = vmatprep.subr.mxu0 0.0
  %1860 = vmatpush1.msra.mxu0 %v796
  %1861 = vmatprep.subr.mxu0 0.0
  %1862 = vmatpush1.msra.mxu0 %v799
  %1863 = vmatprep.subr.mxu0 0.0
  %1864 = vmatpush1.msra.mxu0 %v802
  %1865 = vmatprep.subr.mxu0 0.0
  %1866 = vmatpush1.msra.mxu0 %v805
  %1867 = vmatprep.subr.mxu0 0.0
  %1868 = vmatpush1.msra.mxu0 %v808
  %1869 = vmatprep.subr.mxu0 0.0
  %1870 = vmatpush1.msra.mxu0 %v811
  %1871 = vmatprep.subr.mxu0 0.0
  %1872 = vmatpush1.msra.mxu0 0.0
  %1873 = vmatprep.subr.mxu0 0.0
  %1874 = vmatpush1.msra.mxu0 0.0
  %1875 = vmatprep.subr.mxu0 0.0
  %1876 = vmatpush1.msra.mxu0 0.0
  %1877 = vmatprep.subr.mxu0 0.0
  %1878 = vmatpush1.msra.mxu0 0.0
  %1879 = vmatprep.subr.mxu0 0.0
  %1880 = vmatpush1.msra.mxu0 0.0
  %1881 = vmatprep.subr.mxu0 0.0
  %1882 = vmatpush1.msra.mxu0 0.0
  %1883 = vmatprep.subr.mxu0 0.0
  %1884 = vmatpush1.msra.mxu0 0.0
  %1885 = vmatprep.subr.mxu0 0.0
  %1886 = vmatpush1.msra.mxu0 0.0
  %1887 = vmatprep.subr.mxu0 0.0
  %1888 = vmatpush1.msra.mxu0 0.0
  %1889 = vmatprep.subr.mxu0 0.0
  %1890 = vmatpush1.msra.mxu0 0.0
  %1891 = vmatprep.subr.mxu0 0.0
  %1892 = vmatpush1.msra.mxu0 0.0
  %1893 = vmatprep.subr.mxu0 0.0
  %1894 = vmatpush1.msra.mxu0 0.0
  %1895 = vmatprep.subr.mxu0 0.0
  %1896 = vmatpush1.msra.mxu0 0.0
  %1897 = vmatprep.subr.mxu0 0.0
  %1898 = vmatpush1.msra.mxu0 0.0
  %1899 = vmatprep.subr.mxu0 0.0
  %1900 = vmatpush1.msra.mxu0 0.0
  %1901 = vmatprep.subr.mxu0 0.0
  %1902 = vmatpush1.msra.mxu0 0.0
  %1903 = vmatprep.mubr.f32.mxu0 0.0
  %1904 = vmatmul.mubr.f32.gmra.mrb[0].mxu0 %v1460
  %v1905 = vpop.f32.mrb[0].mxu0
  %v1906 = vadd.f32 %v826, %v1905
  %v1907 = vpop.f32.mrb[0].mxu0
  %1908 = vdwg.mxu0
  %v1909 = vadd.f32 %v1225, %v1835
  %v1910 = vadd.f32 %v1227, %v1837
  %v1911 = vxor.u32 %v1909, 2147483648
  %v1912 = vxor.u32 %v1910, 2147483648
  %v1913 = vmul.f32 %v1911, 1.442695
  %v1914 = vpow.pop %v1913
  %v1915 = vmul.f32 %v1912, 1.442695
  %v1916 = vpow.pop %v1915
  %v1917 = vadd.f32 %v1914, 1.0
  %v1918 = vadd.f32 %v1916, 1.0
  %v1919 = vrcp.pop %v1917
  %v1920 = vmul.f32 1.0, %v1919
  %v1921 = vrcp.pop %v1918
  %v1922 = vmul.f32 1.0, %v1921
  %v1923 = vmul.f32 %v1920, %v1906
  %v1924 = vadd.f32 %v1296, %v1923
  %v1925 = vtanh.pop %v1924
  %v1926 = vsub.f32 1.0, %v1922
  %v1927 = vmul.f32 %v1926, %v1925
  %v1928 = vmul.f32 %v1922, %v1460
  %v1929 = vadd.f32 %v1927, %v1928
  %s1930 = scalar_lea.vmem %s0, 96
  %v1931 = vld [vmem:[%s1930] sm:$0xff]
  %v1932 = vld [vmem:[%s1930 + $0x8] sm:$0xff]
  %v1933 = vld [vmem:[%s1930 + $0x10] sm:$0xff]
  %1934 = vmatprep.subr.mxu0 %v24
  %1935 = vmatpush1.msra.mxu0 %v23
  %1936 = vmatprep.subr.mxu0 %v27
  %1937 = vmatpush1.msra.mxu0 %v26
  %1938 = vmatprep.subr.mxu0 %v30
  %1939 = vmatpush1.msra.mxu0 %v29
  %1940 = vmatprep.subr.mxu0 %v33
  %1941 = vmatpush1.msra.mxu0 %v32
  %1942 = vmatprep.subr.mxu0 %v36
  %1943 = vmatpush1.msra.mxu0 %v35
  %1944 = vmatprep.subr.mxu0 %v39
  %1945 = vmatpush1.msra.mxu0 %v38
  %1946 = vmatprep.subr.mxu0 %v42
  %1947 = vmatpush1.msra.mxu0 %v41
  %1948 = vmatprep.subr.mxu0 %v45
  %1949 = vmatpush1.msra.mxu0 %v44
  %1950 = vmatprep.subr.mxu0 %v48
  %1951 = vmatpush1.msra.mxu0 %v47
  %1952 = vmatprep.subr.mxu0 %v51
  %1953 = vmatpush1.msra.mxu0 %v50
  %1954 = vmatprep.subr.mxu0 %v54
  %1955 = vmatpush1.msra.mxu0 %v53
  %1956 = vmatprep.subr.mxu0 %v57
  %1957 = vmatpush1.msra.mxu0 %v56
  %1958 = vmatprep.subr.mxu0 %v60
  %1959 = vmatpush1.msra.mxu0 %v59
  %1960 = vmatprep.subr.mxu0 %v63
  %1961 = vmatpush1.msra.mxu0 %v62
  %1962 = vmatprep.subr.mxu0 %v66
  %1963 = vmatpush1.msra.mxu0 %v65
  %1964 = vmatprep.subr.mxu0 %v69
  %1965 = vmatpush1.msra.mxu0 %v68
  %1966 = vmatprep.subr.mxu0 0.0
  %1967 = vmatpush1.msra.mxu0 0.0
  %1968 = vmatprep.subr.mxu0 0.0
  %1969 = vmatpush1.msra.mxu0 0.0
  %1970 = vmatprep.subr.mxu0 0.0
  %1971 = vmatpush1.msra.mxu0 0.0
  %1972 = vmatprep.subr.mxu0 0.0
  %1973 = vmatpush1.msra.mxu0 0.0
  %1974 = vmatprep.subr.mxu0 0.0
  %1975 = vmatpush1.msra.mxu0 0.0
  %1976 = vmatprep.subr.mxu0 0.0
  %1977 = vmatpush1.msra.mxu0 0.0
  %1978 = vmatprep.subr.mxu0 0.0
  %1979 = vmatpush1.msra.mxu0 0.0
  %1980 = vmatprep.subr.mxu0 0.0
  %1981 = vmatpush1.msra.mxu0 0.0
  %1982 = vmatprep.subr.mxu0 0.0
  %1983 = vmatpush1.msra.mxu0 0.0
  %1984 = vmatprep.subr.mxu0 0.0
  %1985 = vmatpush1.msra.mxu0 0.0
  %1986 = vmatprep.subr.mxu0 0.0
  %1987 = vmatpush1.msra.mxu0 0.0
  %1988 = vmatprep.subr.mxu0 0.0
  %1989 = vmatpush1.msra.mxu0 0.0
  %1990 = vmatprep.subr.mxu0 0.0
  %1991 = vmatpush1.msra.mxu0 0.0
  %1992 = vmatprep.subr.mxu0 0.0
  %1993 = vmatpush1.msra.mxu0 0.0
  %1994 = vmatprep.subr.mxu0 0.0
  %1995 = vmatpush1.msra.mxu0 0.0
  %1996 = vmatprep.subr.mxu0 0.0
  %1997 = vmatpush1.msra.mxu0 0.0
  %1998 = vmatprep.mubr.f32.mxu0 0.0
  %1999 = vmatmul.mubr.f32.gmra.mrb[0].mxu0 %v1626
  %v2000 = vpop.f32.mrb[0].mxu0
  %v2001 = vadd.f32 %v76, %v2000
  %v2002 = vpop.f32.mrb[0].mxu0
  %v2003 = vadd.f32 %v80, %v2002
  %2004 = vdwg.mxu0
  %2005 = vmatprep.subr.mxu0 0.0
  %2006 = vmatpush1.msra.mxu0 %v25
  %2007 = vmatprep.subr.mxu0 0.0
  %2008 = vmatpush1.msra.mxu0 %v28
  %2009 = vmatprep.subr.mxu0 0.0
  %2010 = vmatpush1.msra.mxu0 %v31
  %2011 = vmatprep.subr.mxu0 0.0
  %2012 = vmatpush1.msra.mxu0 %v34
  %2013 = vmatprep.subr.mxu0 0.0
  %2014 = vmatpush1.msra.mxu0 %v37
  %2015 = vmatprep.subr.mxu0 0.0
  %2016 = vmatpush1.msra.mxu0 %v40
  %2017 = vmatprep.subr.mxu0 0.0
  %2018 = vmatpush1.msra.mxu0 %v43
  %2019 = vmatprep.subr.mxu0 0.0
  %2020 = vmatpush1.msra.mxu0 %v46
  %2021 = vmatprep.subr.mxu0 0.0
  %2022 = vmatpush1.msra.mxu0 %v49
  %2023 = vmatprep.subr.mxu0 0.0
  %2024 = vmatpush1.msra.mxu0 %v52
  %2025 = vmatprep.subr.mxu0 0.0
  %2026 = vmatpush1.msra.mxu0 %v55
  %2027 = vmatprep.subr.mxu0 0.0
  %2028 = vmatpush1.msra.mxu0 %v58
  %2029 = vmatprep.subr.mxu0 0.0
  %2030 = vmatpush1.msra.mxu0 %v61
  %2031 = vmatprep.subr.mxu0 0.0
  %2032 = vmatpush1.msra.mxu0 %v64
  %2033 = vmatprep.subr.mxu0 0.0
  %2034 = vmatpush1.msra.mxu0 %v67
  %2035 = vmatprep.subr.mxu0 0.0
  %2036 = vmatpush1.msra.mxu0 %v70
  %2037 = vmatprep.subr.mxu0 0.0
  %2038 = vmatpush1.msra.mxu0 0.0
  %2039 = vmatprep.subr.mxu0 0.0
  %2040 = vmatpush1.msra.mxu0 0.0
  %2041 = vmatprep.subr.mxu0 0.0
  %2042 = vmatpush1.msra.mxu0 0.0
  %2043 = vmatprep.subr.mxu0 0.0
  %2044 = vmatpush1.msra.mxu0 0.0
  %2045 = vmatprep.subr.mxu0 0.0
  %2046 = vmatpush1.msra.mxu0 0.0
  %2047 = vmatprep.subr.mxu0 0.0
  %2048 = vmatpush1.msra.mxu0 0.0
  %2049 = vmatprep.subr.mxu0 0.0
  %2050 = vmatpush1.msra.mxu0 0.0
  %2051 = vmatprep.subr.mxu0 0.0
  %2052 = vmatpush1.msra.mxu0 0.0
  %2053 = vmatprep.subr.mxu0 0.0
  %2054 = vmatpush1.msra.mxu0 0.0
  %2055 = vmatprep.subr.mxu0 0.0
  %2056 = vmatpush1.msra.mxu0 0.0
  %2057 = vmatprep.subr.mxu0 0.0
  %2058 = vmatpush1.msra.mxu0 0.0
  %2059 = vmatprep.subr.mxu0 0.0
  %2060 = vmatpush1.msra.mxu0 0.0
  %2061 = vmatprep.subr.mxu0 0.0
  %2062 = vmatpush1.msra.mxu0 0.0
  %2063 = vmatprep.subr.mxu0 0.0
  %2064 = vmatpush1.msra.mxu0 0.0
  %2065 = vmatprep.subr.mxu0 0.0
  %2066 = vmatpush1.msra.mxu0 0.0
  %2067 = vmatprep.subr.mxu0 0.0
  %2068 = vmatpush1.msra.mxu0 0.0
  %2069 = vmatprep.mubr.f32.mxu0 0.0
  %2070 = vmatmul.mubr.f32.gmra.mrb[0].mxu0 %v1626
  %v2071 = vpop.f32.mrb[0].mxu0
  %v2072 = vadd.f32 %v84, %v2071
  %v2073 = vpop.f32.mrb[0].mxu0
  %2074 = vdwg.mxu0
  %v2075 = vadd.f32 %v1931, %v2001
  %v2076 = vadd.f32 %v1932, %v2003
  %v2077 = vxor.u32 %v2075, 2147483648
  %v2078 = vxor.u32 %v2076, 2147483648
  %v2079 = vmul.f32 %v2077, 1.442695
  %v2080 = vpow.pop %v2079
  %v2081 = vmul.f32 %v2078, 1.442695
  %v2082 = vpow.pop %v2081
  %v2083 = vadd.f32 %v2080, 1.0
  %v2084 = vadd.f32 %v2082, 1.0
  %v2085 = vrcp.pop %v2083
  %v2086 = vmul.f32 1.0, %v2085
  %v2087 = vrcp.pop %v2084
  %v2088 = vmul.f32 1.0, %v2087
  %v2089 = vmul.f32 %v2086, %v2072
  %v2090 = vadd.f32 %v1933, %v2089
  %v2091 = vtanh.pop %v2090
  %v2092 = vsub.f32 1.0, %v2088
  %v2093 = vmul.f32 %v2092, %v2091
  %v2094 = vmul.f32 %v2088, %v1626
  %v2095 = vadd.f32 %v2093, %v2094
  %2096 = vmatprep.subr.mxu0 %v251
  %2097 = vmatpush1.msra.mxu0 %v250
  %2098 = vmatprep.subr.mxu0 %v254
  %2099 = vmatpush1.msra.mxu0 %v253
  %2100 = vmatprep.subr.mxu0 %v257
  %2101 = vmatpush1.msra.mxu0 %v256
  %2102 = vmatprep.subr.mxu0 %v260
  %2103 = vmatpush1.msra.mxu0 %v259
  %2104 = vmatprep.subr.mxu0 %v263
  %2105 = vmatpush1.msra.mxu0 %v262
  %2106 = vmatprep.subr.mxu0 %v266
  %2107 = vmatpush1.msra.mxu0 %v265
  %2108 = vmatprep.subr.mxu0 %v269
  %2109 = vmatpush1.msra.mxu0 %v268
  %2110 = vmatprep.subr.mxu0 %v272
  %2111 = vmatpush1.msra.mxu0 %v271
  %2112 = vmatprep.subr.mxu0 %v275
  %2113 = vmatpush1.msra.mxu0 %v274
  %2114 = vmatprep.subr.mxu0 %v278
  %2115 = vmatpush1.msra.mxu0 %v277
  %2116 = vmatprep.subr.mxu0 %v281
  %2117 = vmatpush1.msra.mxu0 %v280
  %2118 = vmatprep.subr.mxu0 %v284
  %2119 = vmatpush1.msra.mxu0 %v283
  %2120 = vmatprep.subr.mxu0 %v287
  %2121 = vmatpush1.msra.mxu0 %v286
  %2122 = vmatprep.subr.mxu0 %v290
  %2123 = vmatpush1.msra.mxu0 %v289
  %2124 = vmatprep.subr.mxu0 %v293
  %2125 = vmatpush1.msra.mxu0 %v292
  %2126 = vmatprep.subr.mxu0 %v296
  %2127 = vmatpush1.msra.mxu0 %v295
  %2128 = vmatprep.subr.mxu0 0.0
  %2129 = vmatpush1.msra.mxu0 0.0
  %2130 = vmatprep.subr.mxu0 0.0
  %2131 = vmatpush1.msra.mxu0 0.0
  %2132 = vmatprep.subr.mxu0 0.0
  %2133 = vmatpush1.msra.mxu0 0.0
  %2134 = vmatprep.subr.mxu0 0.0
  %2135 = vmatpush1.msra.mxu0 0.0
  %2136 = vmatprep.subr.mxu0 0.0
  %2137 = vmatpush1.msra.mxu0 0.0
  %2138 = vmatprep.subr.mxu0 0.0
  %2139 = vmatpush1.msra.mxu0 0.0
  %2140 = vmatprep.subr.mxu0 0.0
  %2141 = vmatpush1.msra.mxu0 0.0
  %2142 = vmatprep.subr.mxu0 0.0
  %2143 = vmatpush1.msra.mxu0 0.0
  %2144 = vmatprep.subr.mxu0 0.0
  %2145 = vmatpush1.msra.mxu0 0.0
  %2146 = vmatprep.subr.mxu0 0.0
  %2147 = vmatpush1.msra.mxu0 0.0
  %2148 = vmatprep.subr.mxu0 0.0
  %2149 = vmatpush1.msra.mxu0 0.0
  %2150 = vmatprep.subr.mxu0 0.0
  %2151 = vmatpush1.msra.mxu0 0.0
  %2152 = vmatprep.subr.mxu0 0.0
  %2153 = vmatpush1.msra.mxu0 0.0
  %2154 = vmatprep.subr.mxu0 0.0
  %2155 = vmatpush1.msra.mxu0 0.0
  %2156 = vmatprep.subr.mxu0 0.0
  %2157 = vmatpush1.msra.mxu0 0.0
  %2158 = vmatprep.subr.mxu0 0.0
  %2159 = vmatpush1.msra.mxu0 0.0
  %2160 = vmatprep.mubr.f32.mxu0 0.0
  %2161 = vmatmul.mubr.f32.gmra.mrb[0].mxu0 %v2095
  %v2162 = vpop.f32.mrb[0].mxu0
  %v2163 = vadd.f32 %v303, %v2162
  %v2164 = vpop.f32.mrb[0].mxu0
  %v2165 = vadd.f32 %v307, %v2164
  %2166 = vdwg.mxu0
  %2167 = vmatprep.subr.mxu0 0.0
  %2168 = vmatpush1.msra.mxu0 %v252
  %2169 = vmatprep.subr.mxu0 0.0
  %2170 = vmatpush1.msra.mxu0 %v255
  %2171 = vmatprep.subr.mxu0 0.0
  %2172 = vmatpush1.msra.mxu0 %v258
  %2173 = vmatprep.subr.mxu0 0.0
  %2174 = vmatpush1.msra.mxu0 %v261
  %2175 = vmatprep.subr.mxu0 0.0
  %2176 = vmatpush1.msra.mxu0 %v264
  %2177 = vmatprep.subr.mxu0 0.0
  %2178 = vmatpush1.msra.mxu0 %v267
  %2179 = vmatprep.subr.mxu0 0.0
  %2180 = vmatpush1.msra.mxu0 %v270
  %2181 = vmatprep.subr.mxu0 0.0
  %2182 = vmatpush1.msra.mxu0 %v273
  %2183 = vmatprep.subr.mxu0 0.0
  %2184 = vmatpush1.msra.mxu0 %v276
  %2185 = vmatprep.subr.mxu0 0.0
  %2186 = vmatpush1.msra.mxu0 %v279
  %2187 = vmatprep.subr.mxu0 0.0
  %2188 = vmatpush1.msra.mxu0 %v282
  %2189 = vmatprep.subr.mxu0 0.0
  %2190 = vmatpush1.msra.mxu0 %v285
  %2191 = vmatprep.subr.mxu0 0.0
  %2192 = vmatpush1.msra.mxu0 %v288
  %2193 = vmatprep.subr.mxu0 0.0
  %2194 = vmatpush1.msra.mxu0 %v291
  %2195 = vmatprep.subr.mxu0 0.0
  %2196 = vmatpush1.msra.mxu0 %v294
  %2197 = vmatprep.subr.mxu0 0.0
  %2198 = vmatpush1.msra.mxu0 %v297
  %2199 = vmatprep.subr.mxu0 0.0
  %2200 = vmatpush1.msra.mxu0 0.0
  %2201 = vmatprep.subr.mxu0 0.0
  %2202 = vmatpush1.msra.mxu0 0.0
  %2203 = vmatprep.subr.mxu0 0.0
  %2204 = vmatpush1.msra.mxu0 0.0
  %2205 = vmatprep.subr.mxu0 0.0
  %2206 = vmatpush1.msra.mxu0 0.0
  %2207 = vmatprep.subr.mxu0 0.0
  %2208 = vmatpush1.msra.mxu0 0.0
  %2209 = vmatprep.subr.mxu0 0.0
  %2210 = vmatpush1.msra.mxu0 0.0
  %2211 = vmatprep.subr.mxu0 0.0
  %2212 = vmatpush1.msra.mxu0 0.0
  %2213 = vmatprep.subr.mxu0 0.0
  %2214 = vmatpush1.msra.mxu0 0.0
  %2215 = vmatprep.subr.mxu0 0.0
  %2216 = vmatpush1.msra.mxu0 0.0
  %2217 = vmatprep.subr.mxu0 0.0
  %2218 = vmatpush1.msra.mxu0 0.0
  %2219 = vmatprep.subr.mxu0 0.0
  %2220 = vmatpush1.msra.mxu0 0.0
  %2221 = vmatprep.subr.mxu0 0.0
  %2222 = vmatpush1.msra.mxu0 0.0
  %2223 = vmatprep.subr.mxu0 0.0
  %2224 = vmatpush1.msra.mxu0 0.0
  %2225 = vmatprep.subr.mxu0 0.0
  %2226 = vmatpush1.msra.mxu0 0.0
  %2227 = vmatprep.subr.mxu0 0.0
  %2228 = vmatpush1.msra.mxu0 0.0
  %2229 = vmatprep.subr.mxu0 0.0
  %2230 = vmatpush1.msra.mxu0 0.0
  %2231 = vmatprep.mubr.f32.mxu0 0.0
  %2232 = vmatmul.mubr.f32.gmra.mrb[0].mxu0 %v2095
  %v2233 = vpop.f32.mrb[0].mxu0
  %v2234 = vadd.f32 %v311, %v2233
  %v2235 = vpop.f32.mrb[0].mxu0
  %2236 = vdwg.mxu0
  %2237 = vmatprep.subr.mxu0 %v765
  %2238 = vmatpush1.msra.mxu0 %v764
  %2239 = vmatprep.subr.mxu0 %v768
  %2240 = vmatpush1.msra.mxu0 %v767
  %2241 = vmatprep.subr.mxu0 %v771
  %2242 = vmatpush1.msra.mxu0 %v770
  %2243 = vmatprep.subr.mxu0 %v774
  %2244 = vmatpush1.msra.mxu0 %v773
  %2245 = vmatprep.subr.mxu0 %v777
  %2246 = vmatpush1.msra.mxu0 %v776
  %2247 = vmatprep.subr.mxu0 %v780
  %2248 = vmatpush1.msra.mxu0 %v779
  %2249 = vmatprep.subr.mxu0 %v783
  %2250 = vmatpush1.msra.mxu0 %v782
  %2251 = vmatprep.subr.mxu0 %v786
  %2252 = vmatpush1.msra.mxu0 %v785
  %2253 = vmatprep.subr.mxu0 %v789
  %2254 = vmatpush1.msra.mxu0 %v788
  %2255 = vmatprep.subr.mxu0 %v792
  %2256 = vmatpush1.msra.mxu0 %v791
  %2257 = vmatprep.subr.mxu0 %v795
  %2258 = vmatpush1.msra.mxu0 %v794
  %2259 = vmatprep.subr.mxu0 %v798
  %2260 = vmatpush1.msra.mxu0 %v797
  %2261 = vmatprep.subr.mxu0 %v801
  %2262 = vmatpush1.msra.mxu0 %v800
  %2263 = vmatprep.subr.mxu0 %v804
  %2264 = vmatpush1.msra.mxu0 %v803
  %2265 = vmatprep.subr.mxu0 %v807
  %2266 = vmatpush1.msra.mxu0 %v806
  %2267 = vmatprep.subr.mxu0 %v810
  %2268 = vmatpush1.msra.mxu0 %v809
  %2269 = vmatprep.subr.mxu0 0.0
  %2270 = vmatpush1.msra.mxu0 0.0
  %2271 = vmatprep.subr.mxu0 0.0
  %2272 = vmatpush1.msra.mxu0 0.0
  %2273 = vmatprep.subr.mxu0 0.0
  %2274 = vmatpush1.msra.mxu0 0.0
  %2275 = vmatprep.subr.mxu0 0.0
  %2276 = vmatpush1.msra.mxu0 0.0
  %2277 = vmatprep.subr.mxu0 0.0
  %2278 = vmatpush1.msra.mxu0 0.0
  %2279 = vmatprep.subr.mxu0 0.0
  %2280 = vmatpush1.msra.mxu0 0.0
  %2281 = vmatprep.subr.mxu0 0.0
  %2282 = vmatpush1.msra.mxu0 0.0
  %2283 = vmatprep.subr.mxu0 0.0
  %2284 = vmatpush1.msra.mxu0 0.0
  %2285 = vmatprep.subr.mxu0 0.0
  %2286 = vmatpush1.msra.mxu0 0.0
  %2287 = vmatprep.subr.mxu0 0.0
  %2288 = vmatpush1.msra.mxu0 0.0
  %2289 = vmatprep.subr.mxu0 0.0
  %2290 = vmatpush1.msra.mxu0 0.0
  %2291 = vmatprep.subr.mxu0 0.0
  %2292 = vmatpush1.msra.mxu0 0.0
  %2293 = vmatprep.subr.mxu0 0.0
  %2294 = vmatpush1.msra.mxu0 0.0
  %2295 = vmatprep.subr.mxu0 0.0
  %2296 = vmatpush1.msra.mxu0 0.0
  %2297 = vmatprep.subr.mxu0 0.0
  %2298 = vmatpush1.msra.mxu0 0.0
  %2299 = vmatprep.subr.mxu0 0.0
  %2300 = vmatpush1.msra.mxu0 0.0
  %2301 = vmatprep.mubr.f32.mxu0 0.0
  %2302 = vmatmul.mubr.f32.gmra.mrb[0].mxu0 %v1929
  %v2303 = vpop.f32.mrb[0].mxu0
  %v2304 = vadd.f32 %v818, %v2303
  %v2305 = vpop.f32.mrb[0].mxu0
  %v2306 = vadd.f32 %v822, %v2305
  %2307 = vdwg.mxu0
  %2308 = vmatprep.subr.mxu0 0.0
  %2309 = vmatpush1.msra.mxu0 %v766
  %2310 = vmatprep.subr.mxu0 0.0
  %2311 = vmatpush1.msra.mxu0 %v769
  %2312 = vmatprep.subr.mxu0 0.0
  %2313 = vmatpush1.msra.mxu0 %v772
  %2314 = vmatprep.subr.mxu0 0.0
  %2315 = vmatpush1.msra.mxu0 %v775
  %2316 = vmatprep.subr.mxu0 0.0
  %2317 = vmatpush1.msra.mxu0 %v778
  %2318 = vmatprep.subr.mxu0 0.0
  %2319 = vmatpush1.msra.mxu0 %v781
  %2320 = vmatprep.subr.mxu0 0.0
  %2321 = vmatpush1.msra.mxu0 %v784
  %2322 = vmatprep.subr.mxu0 0.0
  %2323 = vmatpush1.msra.mxu0 %v787
  %2324 = vmatprep.subr.mxu0 0.0
  %2325 = vmatpush1.msra.mxu0 %v790
  %2326 = vmatprep.subr.mxu0 0.0
  %2327 = vmatpush1.msra.mxu0 %v793
  %2328 = vmatprep.subr.mxu0 0.0
  %2329 = vmatpush1.msra.mxu0 %v796
  %2330 = vmatprep.subr.mxu0 0.0
  %2331 = vmatpush1.msra.mxu0 %v799
  %2332 = vmatprep.subr.mxu0 0.0
  %2333 = vmatpush1.msra.mxu0 %v802
  %2334 = vmatprep.subr.mxu0 0.0
  %2335 = vmatpush1.msra.mxu0 %v805
  %2336 = vmatprep.subr.mxu0 0.0
  %2337 = vmatpush1.msra.mxu0 %v808
  %2338 = vmatprep.subr.mxu0 0.0
  %2339 = vmatpush1.msra.mxu0 %v811
  %2340 = vmatprep.subr.mxu0 0.0
  %2341 = vmatpush1.msra.mxu0 0.0
  %2342 = vmatprep.subr.mxu0 0.0
  %2343 = vmatpush1.msra.mxu0 0.0
  %2344 = vmatprep.subr.mxu0 0.0
  %2345 = vmatpush1.msra.mxu0 0.0
  %2346 = vmatprep.subr.mxu0 0.0
  %2347 = vmatpush1.msra.mxu0 0.0
  %2348 = vmatprep.subr.mxu0 0.0
  %2349 = vmatpush1.msra.mxu0 0.0
  %2350 = vmatprep.subr.mxu0 0.0
  %2351 = vmatpush1.msra.mxu0 0.0
  %2352 = vmatprep.subr.mxu0 0.0
  %2353 = vmatpush1.msra.mxu0 0.0
  %2354 = vmatprep.subr.mxu0 0.0
  %2355 = vmatpush1.msra.mxu0 0.0
  %2356 = vmatprep.subr.mxu0 0.0
  %2357 = vmatpush1.msra.mxu0 0.0
  %2358 = vmatprep.subr.mxu0 0.0
  %2359 = vmatpush1.msra.mxu0 0.0
  %2360 = vmatprep.subr.mxu0 0.0
  %2361 = vmatpush1.msra.mxu0 0.0
  %2362 = vmatprep.subr.mxu0 0.0
  %2363 = vmatpush1.msra.mxu0 0.0
  %2364 = vmatprep.subr.mxu0 0.0
  %2365 = vmatpush1.msra.mxu0 0.0
  %2366 = vmatprep.subr.mxu0 0.0
  %2367 = vmatpush1.msra.mxu0 0.0
  %2368 = vmatprep.subr.mxu0 0.0
  %2369 = vmatpush1.msra.mxu0 0.0
  %2370 = vmatprep.subr.mxu0 0.0
  %2371 = vmatpush1.msra.mxu0 0.0
  %2372 = vmatprep.mubr.f32.mxu0 0.0
  %2373 = vmatmul.mubr.f32.gmra.mrb[0].mxu0 %v1929
  %v2374 = vpop.f32.mrb[0].mxu0
  %v2375 = vadd.f32 %v826, %v2374
  %v2376 = vpop.f32.mrb[0].mxu0
  %2377 = vdwg.mxu0
  %v2378 = vadd.f32 %v1694, %v2304
  %v2379 = vadd.f32 %v1696, %v2306
  %v2380 = vxor.u32 %v2378, 2147483648
  %v2381 = vxor.u32 %v2379, 2147483648
  %v2382 = vmul.f32 %v2380, 1.442695
  %v2383 = vpow.pop %v2382
  %v2384 = vmul.f32 %v2381, 1.442695
  %v2385 = vpow.pop %v2384
  %v2386 = vadd.f32 %v2383, 1.0
  %v2387 = vadd.f32 %v2385, 1.0
  %v2388 = vrcp.pop %v2386
  %v2389 = vmul.f32 1.0, %v2388
  %v2390 = vrcp.pop %v2387
  %v2391 = vmul.f32 1.0, %v2390
  %v2392 = vmul.f32 %v2389, %v2375
  %v2393 = vadd.f32 %v1765, %v2392
  %v2394 = vtanh.pop %v2393
  %v2395 = vsub.f32 1.0, %v2391
  %v2396 = vmul.f32 %v2395, %v2394
  %v2397 = vmul.f32 %v2391, %v1929
  %v2398 = vadd.f32 %v2396, %v2397
  %s2399 = scalar_lea.vmem %s0, 120
  %v2400 = vld [vmem:[%s2399] sm:$0xff]
  %v2401 = vld [vmem:[%s2399 + $0x8] sm:$0xff]
  %v2402 = vld [vmem:[%s2399 + $0x10] sm:$0xff]
  %2403 = vmatprep.subr.mxu0 %v24
  %2404 = vmatpush1.msra.mxu0 %v23
  %2405 = vmatprep.subr.mxu0 %v27
  %2406 = vmatpush1.msra.mxu0 %v26
  %2407 = vmatprep.subr.mxu0 %v30
  %2408 = vmatpush1.msra.mxu0 %v29
  %2409 = vmatprep.subr.mxu0 %v33
  %2410 = vmatpush1.msra.mxu0 %v32
  %2411 = vmatprep.subr.mxu0 %v36
  %2412 = vmatpush1.msra.mxu0 %v35
  %2413 = vmatprep.subr.mxu0 %v39
  %2414 = vmatpush1.msra.mxu0 %v38
  %2415 = vmatprep.subr.mxu0 %v42
  %2416 = vmatpush1.msra.mxu0 %v41
  %2417 = vmatprep.subr.mxu0 %v45
  %2418 = vmatpush1.msra.mxu0 %v44
  %2419 = vmatprep.subr.mxu0 %v48
  %2420 = vmatpush1.msra.mxu0 %v47
  %2421 = vmatprep.subr.mxu0 %v51
  %2422 = vmatpush1.msra.mxu0 %v50
  %2423 = vmatprep.subr.mxu0 %v54
  %2424 = vmatpush1.msra.mxu0 %v53
  %2425 = vmatprep.subr.mxu0 %v57
  %2426 = vmatpush1.msra.mxu0 %v56
  %2427 = vmatprep.subr.mxu0 %v60
  %2428 = vmatpush1.msra.mxu0 %v59
  %2429 = vmatprep.subr.mxu0 %v63
  %2430 = vmatpush1.msra.mxu0 %v62
  %2431 = vmatprep.subr.mxu0 %v66
  %2432 = vmatpush1.msra.mxu0 %v65
  %2433 = vmatprep.subr.mxu0 %v69
  %2434 = vmatpush1.msra.mxu0 %v68
  %2435 = vmatprep.subr.mxu0 0.0
  %2436 = vmatpush1.msra.mxu0 0.0
  %2437 = vmatprep.subr.mxu0 0.0
  %2438 = vmatpush1.msra.mxu0 0.0
  %2439 = vmatprep.subr.mxu0 0.0
  %2440 = vmatpush1.msra.mxu0 0.0
  %2441 = vmatprep.subr.mxu0 0.0
  %2442 = vmatpush1.msra.mxu0 0.0
  %2443 = vmatprep.subr.mxu0 0.0
  %2444 = vmatpush1.msra.mxu0 0.0
  %2445 = vmatprep.subr.mxu0 0.0
  %2446 = vmatpush1.msra.mxu0 0.0
  %2447 = vmatprep.subr.mxu0 0.0
  %2448 = vmatpush1.msra.mxu0 0.0
  %2449 = vmatprep.subr.mxu0 0.0
  %2450 = vmatpush1.msra.mxu0 0.0
  %2451 = vmatprep.subr.mxu0 0.0
  %2452 = vmatpush1.msra.mxu0 0.0
  %2453 = vmatprep.subr.mxu0 0.0
  %2454 = vmatpush1.msra.mxu0 0.0
  %2455 = vmatprep.subr.mxu0 0.0
  %2456 = vmatpush1.msra.mxu0 0.0
  %2457 = vmatprep.subr.mxu0 0.0
  %2458 = vmatpush1.msra.mxu0 0.0
  %2459 = vmatprep.subr.mxu0 0.0
  %2460 = vmatpush1.msra.mxu0 0.0
  %2461 = vmatprep.subr.mxu0 0.0
  %2462 = vmatpush1.msra.mxu0 0.0
  %2463 = vmatprep.subr.mxu0 0.0
  %2464 = vmatpush1.msra.mxu0 0.0
  %2465 = vmatprep.subr.mxu0 0.0
  %2466 = vmatpush1.msra.mxu0 0.0
  %2467 = vmatprep.mubr.f32.mxu0 0.0
  %2468 = vmatmul.mubr.f32.gmra.mrb[0].mxu0 %v2095
  %v2469 = vpop.f32.mrb[0].mxu0
  %v2470 = vadd.f32 %v76, %v2469
  %v2471 = vpop.f32.mrb[0].mxu0
  %v2472 = vadd.f32 %v80, %v2471
  %2473 = vdwg.mxu0
  %2474 = vmatprep.subr.mxu0 0.0
  %2475 = vmatpush1.msra.mxu0 %v25
  %2476 = vmatprep.subr.mxu0 0.0
  %2477 = vmatpush1.msra.mxu0 %v28
  %2478 = vmatprep.subr.mxu0 0.0
  %2479 = vmatpush1.msra.mxu0 %v31
  %2480 = vmatprep.subr.mxu0 0.0
  %2481 = vmatpush1.msra.mxu0 %v34
  %2482 = vmatprep.subr.mxu0 0.0
  %2483 = vmatpush1.msra.mxu0 %v37
  %2484 = vmatprep.subr.mxu0 0.0
  %2485 = vmatpush1.msra.mxu0 %v40
  %2486 = vmatprep.subr.mxu0 0.0
  %2487 = vmatpush1.msra.mxu0 %v43
  %2488 = vmatprep.subr.mxu0 0.0
  %2489 = vmatpush1.msra.mxu0 %v46
  %2490 = vmatprep.subr.mxu0 0.0
  %2491 = vmatpush1.msra.mxu0 %v49
  %2492 = vmatprep.subr.mxu0 0.0
  %2493 = vmatpush1.msra.mxu0 %v52
  %2494 = vmatprep.subr.mxu0 0.0
  %2495 = vmatpush1.msra.mxu0 %v55
  %2496 = vmatprep.subr.mxu0 0.0
  %2497 = vmatpush1.msra.mxu0 %v58
  %2498 = vmatprep.subr.mxu0 0.0
  %2499 = vmatpush1.msra.mxu0 %v61
  %2500 = vmatprep.subr.mxu0 0.0
  %2501 = vmatpush1.msra.mxu0 %v64
  %2502 = vmatprep.subr.mxu0 0.0
  %2503 = vmatpush1.msra.mxu0 %v67
  %2504 = vmatprep.subr.mxu0 0.0
  %2505 = vmatpush1.msra.mxu0 %v70
  %2506 = vmatprep.subr.mxu0 0.0
  %2507 = vmatpush1.msra.mxu0 0.0
  %2508 = vmatprep.subr.mxu0 0.0
  %2509 = vmatpush1.msra.mxu0 0.0
  %2510 = vmatprep.subr.mxu0 0.0
  %2511 = vmatpush1.msra.mxu0 0.0
  %2512 = vmatprep.subr.mxu0 0.0
  %2513 = vmatpush1.msra.mxu0 0.0
  %2514 = vmatprep.subr.mxu0 0.0
  %2515 = vmatpush1.msra.mxu0 0.0
  %2516 = vmatprep.subr.mxu0 0.0
  %2517 = vmatpush1.msra.mxu0 0.0
  %2518 = vmatprep.subr.mxu0 0.0
  %2519 = vmatpush1.msra.mxu0 0.0
  %2520 = vmatprep.subr.mxu0 0.0
  %2521 = vmatpush1.msra.mxu0 0.0
  %2522 = vmatprep.subr.mxu0 0.0
  %2523 = vmatpush1.msra.mxu0 0.0
  %2524 = vmatprep.subr.mxu0 0.0
  %2525 = vmatpush1.msra.mxu0 0.0
  %2526 = vmatprep.subr.mxu0 0.0
  %2527 = vmatpush1.msra.mxu0 0.0
  %2528 = vmatprep.subr.mxu0 0.0
  %2529 = vmatpush1.msra.mxu0 0.0
  %2530 = vmatprep.subr.mxu0 0.0
  %2531 = vmatpush1.msra.mxu0 0.0
  %2532 = vmatprep.subr.mxu0 0.0
  %2533 = vmatpush1.msra.mxu0 0.0
  %2534 = vmatprep.subr.mxu0 0.0
  %2535 = vmatpush1.msra.mxu0 0.0
  %2536 = vmatprep.subr.mxu0 0.0
  %2537 = vmatpush1.msra.mxu0 0.0
  %2538 = vmatprep.mubr.f32.mxu0 0.0
  %2539 = vmatmul.mubr.f32.gmra.mrb[0].mxu0 %v2095
  %v2540 = vpop.f32.mrb[0].mxu0
  %v2541 = vadd.f32 %v84, %v2540
  %v2542 = vpop.f32.mrb[0].mxu0
  %2543 = vdwg.mxu0
  %v2544 = vadd.f32 %v2400, %v2470
  %v2545 = vadd.f32 %v2401, %v2472
  %v2546 = vxor.u32 %v2544, 2147483648
  %v2547 = vxor.u32 %v2545, 2147483648
  %v2548 = vmul.f32 %v2546, 1.442695
  %v2549 = vpow.pop %v2548
  %v2550 = vmul.f32 %v2547, 1.442695
  %v2551 = vpow.pop %v2550
  %v2552 = vadd.f32 %v2549, 1.0
  %v2553 = vadd.f32 %v2551, 1.0
  %v2554 = vrcp.pop %v2552
  %v2555 = vmul.f32 1.0, %v2554
  %v2556 = vrcp.pop %v2553
  %v2557 = vmul.f32 1.0, %v2556
  %v2558 = vmul.f32 %v2555, %v2541
  %v2559 = vadd.f32 %v2402, %v2558
  %v2560 = vtanh.pop %v2559
  %v2561 = vsub.f32 1.0, %v2557
  %v2562 = vmul.f32 %v2561, %v2560
  %v2563 = vmul.f32 %v2557, %v2095
  %v2564 = vadd.f32 %v2562, %v2563
  %2565 = vmatprep.subr.mxu0 %v251
  %2566 = vmatpush1.msra.mxu0 %v250
  %2567 = vmatprep.subr.mxu0 %v254
  %2568 = vmatpush1.msra.mxu0 %v253
  %2569 = vmatprep.subr.mxu0 %v257
  %2570 = vmatpush1.msra.mxu0 %v256
  %2571 = vmatprep.subr.mxu0 %v260
  %2572 = vmatpush1.msra.mxu0 %v259
  %2573 = vmatprep.subr.mxu0 %v263
  %2574 = vmatpush1.msra.mxu0 %v262
  %2575 = vmatprep.subr.mxu0 %v266
  %2576 = vmatpush1.msra.mxu0 %v265
  %2577 = vmatprep.subr.mxu0 %v269
  %2578 = vmatpush1.msra.mxu0 %v268
  %2579 = vmatprep.subr.mxu0 %v272
  %2580 = vmatpush1.msra.mxu0 %v271
  %2581 = vmatprep.subr.mxu0 %v275
  %2582 = vmatpush1.msra.mxu0 %v274
  %2583 = vmatprep.subr.mxu0 %v278
  %2584 = vmatpush1.msra.mxu0 %v277
  %2585 = vmatprep.subr.mxu0 %v281
  %2586 = vmatpush1.msra.mxu0 %v280
  %2587 = vmatprep.subr.mxu0 %v284
  %2588 = vmatpush1.msra.mxu0 %v283
  %2589 = vmatprep.subr.mxu0 %v287
  %2590 = vmatpush1.msra.mxu0 %v286
  %2591 = vmatprep.subr.mxu0 %v290
  %2592 = vmatpush1.msra.mxu0 %v289
  %2593 = vmatprep.subr.mxu0 %v293
  %2594 = vmatpush1.msra.mxu0 %v292
  %2595 = vmatprep.subr.mxu0 %v296
  %2596 = vmatpush1.msra.mxu0 %v295
  %2597 = vmatprep.subr.mxu0 0.0
  %2598 = vmatpush1.msra.mxu0 0.0
  %2599 = vmatprep.subr.mxu0 0.0
  %2600 = vmatpush1.msra.mxu0 0.0
  %2601 = vmatprep.subr.mxu0 0.0
  %2602 = vmatpush1.msra.mxu0 0.0
  %2603 = vmatprep.subr.mxu0 0.0
  %2604 = vmatpush1.msra.mxu0 0.0
  %2605 = vmatprep.subr.mxu0 0.0
  %2606 = vmatpush1.msra.mxu0 0.0
  %2607 = vmatprep.subr.mxu0 0.0
  %2608 = vmatpush1.msra.mxu0 0.0
  %2609 = vmatprep.subr.mxu0 0.0
  %2610 = vmatpush1.msra.mxu0 0.0
  %2611 = vmatprep.subr.mxu0 0.0
  %2612 = vmatpush1.msra.mxu0 0.0
  %2613 = vmatprep.subr.mxu0 0.0
  %2614 = vmatpush1.msra.mxu0 0.0
  %2615 = vmatprep.subr.mxu0 0.0
  %2616 = vmatpush1.msra.mxu0 0.0
  %2617 = vmatprep.subr.mxu0 0.0
  %2618 = vmatpush1.msra.mxu0 0.0
  %2619 = vmatprep.subr.mxu0 0.0
  %2620 = vmatpush1.msra.mxu0 0.0
  %2621 = vmatprep.subr.mxu0 0.0
  %2622 = vmatpush1.msra.mxu0 0.0
  %2623 = vmatprep.subr.mxu0 0.0
  %2624 = vmatpush1.msra.mxu0 0.0
  %2625 = vmatprep.subr.mxu0 0.0
  %2626 = vmatpush1.msra.mxu0 0.0
  %2627 = vmatprep.subr.mxu0 0.0
  %2628 = vmatpush1.msra.mxu0 0.0
  %2629 = vmatprep.mubr.f32.mxu0 0.0
  %2630 = vmatmul.mubr.f32.gmra.mrb[0].mxu0 %v2564
  %v2631 = vpop.f32.mrb[0].mxu0
  %v2632 = vadd.f32 %v303, %v2631
  %v2633 = vpop.f32.mrb[0].mxu0
  %v2634 = vadd.f32 %v307, %v2633
  %2635 = vdwg.mxu0
  %2636 = vmatprep.subr.mxu0 0.0
  %2637 = vmatpush1.msra.mxu0 %v252
  %2638 = vmatprep.subr.mxu0 0.0
  %2639 = vmatpush1.msra.mxu0 %v255
  %2640 = vmatprep.subr.mxu0 0.0
  %2641 = vmatpush1.msra.mxu0 %v258
  %2642 = vmatprep.subr.mxu0 0.0
  %2643 = vmatpush1.msra.mxu0 %v261
  %2644 = vmatprep.subr.mxu0 0.0
  %2645 = vmatpush1.msra.mxu0 %v264
  %2646 = vmatprep.subr.mxu0 0.0
  %2647 = vmatpush1.msra.mxu0 %v267
  %2648 = vmatprep.subr.mxu0 0.0
  %2649 = vmatpush1.msra.mxu0 %v270
  %2650 = vmatprep.subr.mxu0 0.0
  %2651 = vmatpush1.msra.mxu0 %v273
  %2652 = vmatprep.subr.mxu0 0.0
  %2653 = vmatpush1.msra.mxu0 %v276
  %2654 = vmatprep.subr.mxu0 0.0
  %2655 = vmatpush1.msra.mxu0 %v279
  %2656 = vmatprep.subr.mxu0 0.0
  %2657 = vmatpush1.msra.mxu0 %v282
  %2658 = vmatprep.subr.mxu0 0.0
  %2659 = vmatpush1.msra.mxu0 %v285
  %2660 = vmatprep.subr.mxu0 0.0
  %2661 = vmatpush1.msra.mxu0 %v288
  %2662 = vmatprep.subr.mxu0 0.0
  %2663 = vmatpush1.msra.mxu0 %v291
  %2664 = vmatprep.subr.mxu0 0.0
  %2665 = vmatpush1.msra.mxu0 %v294
  %2666 = vmatprep.subr.mxu0 0.0
  %2667 = vmatpush1.msra.mxu0 %v297
  %2668 = vmatprep.subr.mxu0 0.0
  %2669 = vmatpush1.msra.mxu0 0.0
  %2670 = vmatprep.subr.mxu0 0.0
  %2671 = vmatpush1.msra.mxu0 0.0
  %2672 = vmatprep.subr.mxu0 0.0
  %2673 = vmatpush1.msra.mxu0 0.0
  %2674 = vmatprep.subr.mxu0 0.0
  %2675 = vmatpush1.msra.mxu0 0.0
  %2676 = vmatprep.subr.mxu0 0.0
  %2677 = vmatpush1.msra.mxu0 0.0
  %2678 = vmatprep.subr.mxu0 0.0
  %2679 = vmatpush1.msra.mxu0 0.0
  %2680 = vmatprep.subr.mxu0 0.0
  %2681 = vmatpush1.msra.mxu0 0.0
  %2682 = vmatprep.subr.mxu0 0.0
  %2683 = vmatpush1.msra.mxu0 0.0
  %2684 = vmatprep.subr.mxu0 0.0
  %2685 = vmatpush1.msra.mxu0 0.0
  %2686 = vmatprep.subr.mxu0 0.0
  %2687 = vmatpush1.msra.mxu0 0.0
  %2688 = vmatprep.subr.mxu0 0.0
  %2689 = vmatpush1.msra.mxu0 0.0
  %2690 = vmatprep.subr.mxu0 0.0
  %2691 = vmatpush1.msra.mxu0 0.0
  %2692 = vmatprep.subr.mxu0 0.0
  %2693 = vmatpush1.msra.mxu0 0.0
  %2694 = vmatprep.subr.mxu0 0.0
  %2695 = vmatpush1.msra.mxu0 0.0
  %2696 = vmatprep.subr.mxu0 0.0
  %2697 = vmatpush1.msra.mxu0 0.0
  %2698 = vmatprep.subr.mxu0 0.0
  %2699 = vmatpush1.msra.mxu0 0.0
  %2700 = vmatprep.mubr.f32.mxu0 0.0
  %2701 = vmatmul.mubr.f32.gmra.mrb[0].mxu0 %v2564
  %v2702 = vpop.f32.mrb[0].mxu0
  %v2703 = vadd.f32 %v311, %v2702
  %v2704 = vpop.f32.mrb[0].mxu0
  %2705 = vdwg.mxu0
  %2706 = vmatprep.subr.mxu0 %v765
  %2707 = vmatpush1.msra.mxu0 %v764
  %2708 = vmatprep.subr.mxu0 %v768
  %2709 = vmatpush1.msra.mxu0 %v767
  %2710 = vmatprep.subr.mxu0 %v771
  %2711 = vmatpush1.msra.mxu0 %v770
  %2712 = vmatprep.subr.mxu0 %v774
  %2713 = vmatpush1.msra.mxu0 %v773
  %2714 = vmatprep.subr.mxu0 %v777
  %2715 = vmatpush1.msra.mxu0 %v776
  %2716 = vmatprep.subr.mxu0 %v780
  %2717 = vmatpush1.msra.mxu0 %v779
  %2718 = vmatprep.subr.mxu0 %v783
  %2719 = vmatpush1.msra.mxu0 %v782
  %2720 = vmatprep.subr.mxu0 %v786
  %2721 = vmatpush1.msra.mxu0 %v785
  %2722 = vmatprep.subr.mxu0 %v789
  %2723 = vmatpush1.msra.mxu0 %v788
  %2724 = vmatprep.subr.mxu0 %v792
  %2725 = vmatpush1.msra.mxu0 %v791
  %2726 = vmatprep.subr.mxu0 %v795
  %2727 = vmatpush1.msra.mxu0 %v794
  %2728 = vmatprep.subr.mxu0 %v798
  %2729 = vmatpush1.msra.mxu0 %v797
  %2730 = vmatprep.subr.mxu0 %v801
  %2731 = vmatpush1.msra.mxu0 %v800
  %2732 = vmatprep.subr.mxu0 %v804
  %2733 = vmatpush1.msra.mxu0 %v803
  %2734 = vmatprep.subr.mxu0 %v807
  %2735 = vmatpush1.msra.mxu0 %v806
  %2736 = vmatprep.subr.mxu0 %v810
  %2737 = vmatpush1.msra.mxu0 %v809
  %2738 = vmatprep.subr.mxu0 0.0
  %2739 = vmatpush1.msra.mxu0 0.0
  %2740 = vmatprep.subr.mxu0 0.0
  %2741 = vmatpush1.msra.mxu0 0.0
  %2742 = vmatprep.subr.mxu0 0.0
  %2743 = vmatpush1.msra.mxu0 0.0
  %2744 = vmatprep.subr.mxu0 0.0
  %2745 = vmatpush1.msra.mxu0 0.0
  %2746 = vmatprep.subr.mxu0 0.0
  %2747 = vmatpush1.msra.mxu0 0.0
  %2748 = vmatprep.subr.mxu0 0.0
  %2749 = vmatpush1.msra.mxu0 0.0
  %2750 = vmatprep.subr.mxu0 0.0
  %2751 = vmatpush1.msra.mxu0 0.0
  %2752 = vmatprep.subr.mxu0 0.0
  %2753 = vmatpush1.msra.mxu0 0.0
  %2754 = vmatprep.subr.mxu0 0.0
  %2755 = vmatpush1.msra.mxu0 0.0
  %2756 = vmatprep.subr.mxu0 0.0
  %2757 = vmatpush1.msra.mxu0 0.0
  %2758 = vmatprep.subr.mxu0 0.0
  %2759 = vmatpush1.msra.mxu0 0.0
  %2760 = vmatprep.subr.mxu0 0.0
  %2761 = vmatpush1.msra.mxu0 0.0
  %2762 = vmatprep.subr.mxu0 0.0
  %2763 = vmatpush1.msra.mxu0 0.0
  %2764 = vmatprep.subr.mxu0 0.0
  %2765 = vmatpush1.msra.mxu0 0.0
  %2766 = vmatprep.subr.mxu0 0.0
  %2767 = vmatpush1.msra.mxu0 0.0
  %2768 = vmatprep.subr.mxu0 0.0
  %2769 = vmatpush1.msra.mxu0 0.0
  %2770 = vmatprep.mubr.f32.mxu0 0.0
  %2771 = vmatmul.mubr.f32.gmra.mrb[0].mxu0 %v2398
  %v2772 = vpop.f32.mrb[0].mxu0
  %v2773 = vadd.f32 %v818, %v2772
  %v2774 = vpop.f32.mrb[0].mxu0
  %v2775 = vadd.f32 %v822, %v2774
  %2776 = vdwg.mxu0
  %2777 = vmatprep.subr.mxu0 0.0
  %2778 = vmatpush1.msra.mxu0 %v766
  %2779 = vmatprep.subr.mxu0 0.0
  %2780 = vmatpush1.msra.mxu0 %v769
  %2781 = vmatprep.subr.mxu0 0.0
  %2782 = vmatpush1.msra.mxu0 %v772
  %2783 = vmatprep.subr.mxu0 0.0
  %2784 = vmatpush1.msra.mxu0 %v775
  %2785 = vmatprep.subr.mxu0 0.0
  %2786 = vmatpush1.msra.mxu0 %v778
  %2787 = vmatprep.subr.mxu0 0.0
  %2788 = vmatpush1.msra.mxu0 %v781
  %2789 = vmatprep.subr.mxu0 0.0
  %2790 = vmatpush1.msra.mxu0 %v784
  %2791 = vmatprep.subr.mxu0 0.0
  %2792 = vmatpush1.msra.mxu0 %v787
  %2793 = vmatprep.subr.mxu0 0.0
  %2794 = vmatpush1.msra.mxu0 %v790
  %2795 = vmatprep.subr.mxu0 0.0
  %2796 = vmatpush1.msra.mxu0 %v793
  %2797 = vmatprep.subr.mxu0 0.0
  %2798 = vmatpush1.msra.mxu0 %v796
  %2799 = vmatprep.subr.mxu0 0.0
  %2800 = vmatpush1.msra.mxu0 %v799
  %2801 = vmatprep.subr.mxu0 0.0
  %2802 = vmatpush1.msra.mxu0 %v802
  %2803 = vmatprep.subr.mxu0 0.0
  %2804 = vmatpush1.msra.mxu0 %v805
  %2805 = vmatprep.subr.mxu0 0.0
  %2806 = vmatpush1.msra.mxu0 %v808
  %2807 = vmatprep.subr.mxu0 0.0
  %2808 = vmatpush1.msra.mxu0 %v811
  %2809 = vmatprep.subr.mxu0 0.0
  %2810 = vmatpush1.msra.mxu0 0.0
  %2811 = vmatprep.subr.mxu0 0.0
  %2812 = vmatpush1.msra.mxu0 0.0
  %2813 = vmatprep.subr.mxu0 0.0
  %2814 = vmatpush1.msra.mxu0 0.0
  %2815 = vmatprep.subr.mxu0 0.0
  %2816 = vmatpush1.msra.mxu0 0.0
  %2817 = vmatprep.subr.mxu0 0.0
  %2818 = vmatpush1.msra.mxu0 0.0
  %2819 = vmatprep.subr.mxu0 0.0
  %2820 = vmatpush1.msra.mxu0 0.0
  %2821 = vmatprep.subr.mxu0 0.0
  %2822 = vmatpush1.msra.mxu0 0.0
  %2823 = vmatprep.subr.mxu0 0.0
  %2824 = vmatpush1.msra.mxu0 0.0
  %2825 = vmatprep.subr.mxu0 0.0
  %2826 = vmatpush1.msra.mxu0 0.0
  %2827 = vmatprep.subr.mxu0 0.0
  %2828 = vmatpush1.msra.mxu0 0.0
  %2829 = vmatprep.subr.mxu0 0.0
  %2830 = vmatpush1.msra.mxu0 0.0
  %2831 = vmatprep.subr.mxu0 0.0
  %2832 = vmatpush1.msra.mxu0 0.0
  %2833 = vmatprep.subr.mxu0 0.0
  %2834 = vmatpush1.msra.mxu0 0.0
  %2835 = vmatprep.subr.mxu0 0.0
  %2836 = vmatpush1.msra.mxu0 0.0
  %2837 = vmatprep.subr.mxu0 0.0
  %2838 = vmatpush1.msra.mxu0 0.0
  %2839 = vmatprep.subr.mxu0 0.0
  %2840 = vmatpush1.msra.mxu0 0.0
  %2841 = vmatprep.mubr.f32.mxu0 0.0
  %2842 = vmatmul.mubr.f32.gmra.mrb[0].mxu0 %v2398
  %v2843 = vpop.f32.mrb[0].mxu0
  %v2844 = vadd.f32 %v826, %v2843
  %v2845 = vpop.f32.mrb[0].mxu0
  %2846 = vdwg.mxu0
  %v2847 = vadd.f32 %v2163, %v2773
  %v2848 = vadd.f32 %v2165, %v2775
  %v2849 = vxor.u32 %v2847, 2147483648
  %v2850 = vxor.u32 %v2848, 2147483648
  %v2851 = vmul.f32 %v2849, 1.442695
  %v2852 = vpow.pop %v2851
  %v2853 = vmul.f32 %v2850, 1.442695
  %v2854 = vpow.pop %v2853
  %v2855 = vadd.f32 %v2852, 1.0
  %v2856 = vadd.f32 %v2854, 1.0
  %v2857 = vrcp.pop %v2855
  %v2858 = vmul.f32 1.0, %v2857
  %v2859 = vrcp.pop %v2856
  %v2860 = vmul.f32 1.0, %v2859
  %v2861 = vmul.f32 %v2858, %v2844
  %v2862 = vadd.f32 %v2234, %v2861
  %v2863 = vtanh.pop %v2862
  %v2864 = vsub.f32 1.0, %v2860
  %v2865 = vmul.f32 %v2864, %v2863
  %v2866 = vmul.f32 %v2860, %v2398
  %v2867 = vadd.f32 %v2865, %v2866
  %s2868 = scalar_lea.vmem %s0, 144
  %v2869 = vld [vmem:[%s2868] sm:$0xff]
  %v2870 = vld [vmem:[%s2868 + $0x8] sm:$0xff]
  %v2871 = vld [vmem:[%s2868 + $0x10] sm:$0xff]
  %2872 = vmatprep.subr.mxu0 %v24
  %2873 = vmatpush1.msra.mxu0 %v23
  %2874 = vmatprep.subr.mxu0 %v27
  %2875 = vmatpush1.msra.mxu0 %v26
  %2876 = vmatprep.subr.mxu0 %v30
  %2877 = vmatpush1.msra.mxu0 %v29
  %2878 = vmatprep.subr.mxu0 %v33
  %2879 = vmatpush1.msra.mxu0 %v32
  %2880 = vmatprep.subr.mxu0 %v36
  %2881 = vmatpush1.msra.mxu0 %v35
  %2882 = vmatprep.subr.mxu0 %v39
  %2883 = vmatpush1.msra.mxu0 %v38
  %2884 = vmatprep.subr.mxu0 %v42
  %2885 = vmatpush1.msra.mxu0 %v41
  %2886 = vmatprep.subr.mxu0 %v45
  %2887 = vmatpush1.msra.mxu0 %v44
  %2888 = vmatprep.subr.mxu0 %v48
  %2889 = vmatpush1.msra.mxu0 %v47
  %2890 = vmatprep.subr.mxu0 %v51
  %2891 = vmatpush1.msra.mxu0 %v50
  %2892 = vmatprep.subr.mxu0 %v54
  %2893 = vmatpush1.msra.mxu0 %v53
  %2894 = vmatprep.subr.mxu0 %v57
  %2895 = vmatpush1.msra.mxu0 %v56
  %2896 = vmatprep.subr.mxu0 %v60
  %2897 = vmatpush1.msra.mxu0 %v59
  %2898 = vmatprep.subr.mxu0 %v63
  %2899 = vmatpush1.msra.mxu0 %v62
  %2900 = vmatprep.subr.mxu0 %v66
  %2901 = vmatpush1.msra.mxu0 %v65
  %2902 = vmatprep.subr.mxu0 %v69
  %2903 = vmatpush1.msra.mxu0 %v68
  %2904 = vmatprep.subr.mxu0 0.0
  %2905 = vmatpush1.msra.mxu0 0.0
  %2906 = vmatprep.subr.mxu0 0.0
  %2907 = vmatpush1.msra.mxu0 0.0
  %2908 = vmatprep.subr.mxu0 0.0
  %2909 = vmatpush1.msra.mxu0 0.0
  %2910 = vmatprep.subr.mxu0 0.0
  %2911 = vmatpush1.msra.mxu0 0.0
  %2912 = vmatprep.subr.mxu0 0.0
  %2913 = vmatpush1.msra.mxu0 0.0
  %2914 = vmatprep.subr.mxu0 0.0
  %2915 = vmatpush1.msra.mxu0 0.0
  %2916 = vmatprep.subr.mxu0 0.0
  %2917 = vmatpush1.msra.mxu0 0.0
  %2918 = vmatprep.subr.mxu0 0.0
  %2919 = vmatpush1.msra.mxu0 0.0
  %2920 = vmatprep.subr.mxu0 0.0
  %2921 = vmatpush1.msra.mxu0 0.0
  %2922 = vmatprep.subr.mxu0 0.0
  %2923 = vmatpush1.msra.mxu0 0.0
  %2924 = vmatprep.subr.mxu0 0.0
  %2925 = vmatpush1.msra.mxu0 0.0
  %2926 = vmatprep.subr.mxu0 0.0
  %2927 = vmatpush1.msra.mxu0 0.0
  %2928 = vmatprep.subr.mxu0 0.0
  %2929 = vmatpush1.msra.mxu0 0.0
  %2930 = vmatprep.subr.mxu0 0.0
  %2931 = vmatpush1.msra.mxu0 0.0
  %2932 = vmatprep.subr.mxu0 0.0
  %2933 = vmatpush1.msra.mxu0 0.0
  %2934 = vmatprep.subr.mxu0 0.0
  %2935 = vmatpush1.msra.mxu0 0.0
  %2936 = vmatprep.mubr.f32.mxu0 0.0
  %2937 = vmatmul.mubr.f32.gmra.mrb[0].mxu0 %v2564
  %v2938 = vpop.f32.mrb[0].mxu0
  %v2939 = vadd.f32 %v76, %v2938
  %v2940 = vpop.f32.mrb[0].mxu0
  %v2941 = vadd.f32 %v80, %v2940
  %2942 = vdwg.mxu0
  %2943 = vmatprep.subr.mxu0 0.0
  %2944 = vmatpush1.msra.mxu0 %v25
  %2945 = vmatprep.subr.mxu0 0.0
  %2946 = vmatpush1.msra.mxu0 %v28
  %2947 = vmatprep.subr.mxu0 0.0
  %2948 = vmatpush1.msra.mxu0 %v31
  %2949 = vmatprep.subr.mxu0 0.0
  %2950 = vmatpush1.msra.mxu0 %v34
  %2951 = vmatprep.subr.mxu0 0.0
  %2952 = vmatpush1.msra.mxu0 %v37
  %2953 = vmatprep.subr.mxu0 0.0
  %2954 = vmatpush1.msra.mxu0 %v40
  %2955 = vmatprep.subr.mxu0 0.0
  %2956 = vmatpush1.msra.mxu0 %v43
  %2957 = vmatprep.subr.mxu0 0.0
  %2958 = vmatpush1.msra.mxu0 %v46
  %2959 = vmatprep.subr.mxu0 0.0
  %2960 = vmatpush1.msra.mxu0 %v49
  %2961 = vmatprep.subr.mxu0 0.0
  %2962 = vmatpush1.msra.mxu0 %v52
  %2963 = vmatprep.subr.mxu0 0.0
  %2964 = vmatpush1.msra.mxu0 %v55
  %2965 = vmatprep.subr.mxu0 0.0
  %2966 = vmatpush1.msra.mxu0 %v58
  %2967 = vmatprep.subr.mxu0 0.0
  %2968 = vmatpush1.msra.mxu0 %v61
  %2969 = vmatprep.subr.mxu0 0.0
  %2970 = vmatpush1.msra.mxu0 %v64
  %2971 = vmatprep.subr.mxu0 0.0
  %2972 = vmatpush1.msra.mxu0 %v67
  %2973 = vmatprep.subr.mxu0 0.0
  %2974 = vmatpush1.msra.mxu0 %v70
  %2975 = vmatprep.subr.mxu0 0.0
  %2976 = vmatpush1.msra.mxu0 0.0
  %2977 = vmatprep.subr.mxu0 0.0
  %2978 = vmatpush1.msra.mxu0 0.0
  %2979 = vmatprep.subr.mxu0 0.0
  %2980 = vmatpush1.msra.mxu0 0.0
  %2981 = vmatprep.subr.mxu0 0.0
  %2982 = vmatpush1.msra.mxu0 0.0
  %2983 = vmatprep.subr.mxu0 0.0
  %2984 = vmatpush1.msra.mxu0 0.0
  %2985 = vmatprep.subr.mxu0 0.0
  %2986 = vmatpush1.msra.mxu0 0.0
  %2987 = vmatprep.subr.mxu0 0.0
  %2988 = vmatpush1.msra.mxu0 0.0
  %2989 = vmatprep.subr.mxu0 0.0
  %2990 = vmatpush1.msra.mxu0 0.0
  %2991 = vmatprep.subr.mxu0 0.0
  %2992 = vmatpush1.msra.mxu0 0.0
  %2993 = vmatprep.subr.mxu0 0.0
  %2994 = vmatpush1.msra.mxu0 0.0
  %2995 = vmatprep.subr.mxu0 0.0
  %2996 = vmatpush1.msra.mxu0 0.0
  %2997 = vmatprep.subr.mxu0 0.0
  %2998 = vmatpush1.msra.mxu0 0.0
  %2999 = vmatprep.subr.mxu0 0.0
  %3000 = vmatpush1.msra.mxu0 0.0
  %3001 = vmatprep.subr.mxu0 0.0
  %3002 = vmatpush1.msra.mxu0 0.0
  %3003 = vmatprep.subr.mxu0 0.0
  %3004 = vmatpush1.msra.mxu0 0.0
  %3005 = vmatprep.subr.mxu0 0.0
  %3006 = vmatpush1.msra.mxu0 0.0
  %3007 = vmatprep.mubr.f32.mxu0 0.0
  %3008 = vmatmul.mubr.f32.gmra.mrb[0].mxu0 %v2564
  %v3009 = vpop.f32.mrb[0].mxu0
  %v3010 = vadd.f32 %v84, %v3009
  %v3011 = vpop.f32.mrb[0].mxu0
  %3012 = vdwg.mxu0
  %v3013 = vadd.f32 %v2869, %v2939
  %v3014 = vadd.f32 %v2870, %v2941
  %v3015 = vxor.u32 %v3013, 2147483648
  %v3016 = vxor.u32 %v3014, 2147483648
  %v3017 = vmul.f32 %v3015, 1.442695
  %v3018 = vpow.pop %v3017
  %v3019 = vmul.f32 %v3016, 1.442695
  %v3020 = vpow.pop %v3019
  %v3021 = vadd.f32 %v3018, 1.0
  %v3022 = vadd.f32 %v3020, 1.0
  %v3023 = vrcp.pop %v3021
  %v3024 = vmul.f32 1.0, %v3023
  %v3025 = vrcp.pop %v3022
  %v3026 = vmul.f32 1.0, %v3025
  %v3027 = vmul.f32 %v3024, %v3010
  %v3028 = vadd.f32 %v2871, %v3027
  %v3029 = vtanh.pop %v3028
  %v3030 = vsub.f32 1.0, %v3026
  %v3031 = vmul.f32 %v3030, %v3029
  %v3032 = vmul.f32 %v3026, %v2564
  %v3033 = vadd.f32 %v3031, %v3032
  %3034 = vmatprep.subr.mxu0 %v251
  %3035 = vmatpush1.msra.mxu0 %v250
  %3036 = vmatprep.subr.mxu0 %v254
  %3037 = vmatpush1.msra.mxu0 %v253
  %3038 = vmatprep.subr.mxu0 %v257
  %3039 = vmatpush1.msra.mxu0 %v256
  %3040 = vmatprep.subr.mxu0 %v260
  %3041 = vmatpush1.msra.mxu0 %v259
  %3042 = vmatprep.subr.mxu0 %v263
  %3043 = vmatpush1.msra.mxu0 %v262
  %3044 = vmatprep.subr.mxu0 %v266
  %3045 = vmatpush1.msra.mxu0 %v265
  %3046 = vmatprep.subr.mxu0 %v269
  %3047 = vmatpush1.msra.mxu0 %v268
  %3048 = vmatprep.subr.mxu0 %v272
  %3049 = vmatpush1.msra.mxu0 %v271
  %3050 = vmatprep.subr.mxu0 %v275
  %3051 = vmatpush1.msra.mxu0 %v274
  %3052 = vmatprep.subr.mxu0 %v278
  %3053 = vmatpush1.msra.mxu0 %v277
  %3054 = vmatprep.subr.mxu0 %v281
  %3055 = vmatpush1.msra.mxu0 %v280
  %3056 = vmatprep.subr.mxu0 %v284
  %3057 = vmatpush1.msra.mxu0 %v283
  %3058 = vmatprep.subr.mxu0 %v287
  %3059 = vmatpush1.msra.mxu0 %v286
  %3060 = vmatprep.subr.mxu0 %v290
  %3061 = vmatpush1.msra.mxu0 %v289
  %3062 = vmatprep.subr.mxu0 %v293
  %3063 = vmatpush1.msra.mxu0 %v292
  %3064 = vmatprep.subr.mxu0 %v296
  %3065 = vmatpush1.msra.mxu0 %v295
  %3066 = vmatprep.subr.mxu0 0.0
  %3067 = vmatpush1.msra.mxu0 0.0
  %3068 = vmatprep.subr.mxu0 0.0
  %3069 = vmatpush1.msra.mxu0 0.0
  %3070 = vmatprep.subr.mxu0 0.0
  %3071 = vmatpush1.msra.mxu0 0.0
  %3072 = vmatprep.subr.mxu0 0.0
  %3073 = vmatpush1.msra.mxu0 0.0
  %3074 = vmatprep.subr.mxu0 0.0
  %3075 = vmatpush1.msra.mxu0 0.0
  %3076 = vmatprep.subr.mxu0 0.0
  %3077 = vmatpush1.msra.mxu0 0.0
  %3078 = vmatprep.subr.mxu0 0.0
  %3079 = vmatpush1.msra.mxu0 0.0
  %3080 = vmatprep.subr.mxu0 0.0
  %3081 = vmatpush1.msra.mxu0 0.0
  %3082 = vmatprep.subr.mxu0 0.0
  %3083 = vmatpush1.msra.mxu0 0.0
  %3084 = vmatprep.subr.mxu0 0.0
  %3085 = vmatpush1.msra.mxu0 0.0
  %3086 = vmatprep.subr.mxu0 0.0
  %3087 = vmatpush1.msra.mxu0 0.0
  %3088 = vmatprep.subr.mxu0 0.0
  %3089 = vmatpush1.msra.mxu0 0.0
  %3090 = vmatprep.subr.mxu0 0.0
  %3091 = vmatpush1.msra.mxu0 0.0
  %3092 = vmatprep.subr.mxu0 0.0
  %3093 = vmatpush1.msra.mxu0 0.0
  %3094 = vmatprep.subr.mxu0 0.0
  %3095 = vmatpush1.msra.mxu0 0.0
  %3096 = vmatprep.subr.mxu0 0.0
  %3097 = vmatpush1.msra.mxu0 0.0
  %3098 = vmatprep.mubr.f32.mxu0 0.0
  %3099 = vmatmul.mubr.f32.gmra.mrb[0].mxu0 %v3033
  %v3100 = vpop.f32.mrb[0].mxu0
  %v3101 = vadd.f32 %v303, %v3100
  %v3102 = vpop.f32.mrb[0].mxu0
  %v3103 = vadd.f32 %v307, %v3102
  %3104 = vdwg.mxu0
  %3105 = vmatprep.subr.mxu0 0.0
  %3106 = vmatpush1.msra.mxu0 %v252
  %3107 = vmatprep.subr.mxu0 0.0
  %3108 = vmatpush1.msra.mxu0 %v255
  %3109 = vmatprep.subr.mxu0 0.0
  %3110 = vmatpush1.msra.mxu0 %v258
  %3111 = vmatprep.subr.mxu0 0.0
  %3112 = vmatpush1.msra.mxu0 %v261
  %3113 = vmatprep.subr.mxu0 0.0
  %3114 = vmatpush1.msra.mxu0 %v264
  %3115 = vmatprep.subr.mxu0 0.0
  %3116 = vmatpush1.msra.mxu0 %v267
  %3117 = vmatprep.subr.mxu0 0.0
  %3118 = vmatpush1.msra.mxu0 %v270
  %3119 = vmatprep.subr.mxu0 0.0
  %3120 = vmatpush1.msra.mxu0 %v273
  %3121 = vmatprep.subr.mxu0 0.0
  %3122 = vmatpush1.msra.mxu0 %v276
  %3123 = vmatprep.subr.mxu0 0.0
  %3124 = vmatpush1.msra.mxu0 %v279
  %3125 = vmatprep.subr.mxu0 0.0
  %3126 = vmatpush1.msra.mxu0 %v282
  %3127 = vmatprep.subr.mxu0 0.0
  %3128 = vmatpush1.msra.mxu0 %v285
  %3129 = vmatprep.subr.mxu0 0.0
  %3130 = vmatpush1.msra.mxu0 %v288
  %3131 = vmatprep.subr.mxu0 0.0
  %3132 = vmatpush1.msra.mxu0 %v291
  %3133 = vmatprep.subr.mxu0 0.0
  %3134 = vmatpush1.msra.mxu0 %v294
  %3135 = vmatprep.subr.mxu0 0.0
  %3136 = vmatpush1.msra.mxu0 %v297
  %3137 = vmatprep.subr.mxu0 0.0
  %3138 = vmatpush1.msra.mxu0 0.0
  %3139 = vmatprep.subr.mxu0 0.0
  %3140 = vmatpush1.msra.mxu0 0.0
  %3141 = vmatprep.subr.mxu0 0.0
  %3142 = vmatpush1.msra.mxu0 0.0
  %3143 = vmatprep.subr.mxu0 0.0
  %3144 = vmatpush1.msra.mxu0 0.0
  %3145 = vmatprep.subr.mxu0 0.0
  %3146 = vmatpush1.msra.mxu0 0.0
  %3147 = vmatprep.subr.mxu0 0.0
  %3148 = vmatpush1.msra.mxu0 0.0
  %3149 = vmatprep.subr.mxu0 0.0
  %3150 = vmatpush1.msra.mxu0 0.0
  %3151 = vmatprep.subr.mxu0 0.0
  %3152 = vmatpush1.msra.mxu0 0.0
  %3153 = vmatprep.subr.mxu0 0.0
  %3154 = vmatpush1.msra.mxu0 0.0
  %3155 = vmatprep.subr.mxu0 0.0
  %3156 = vmatpush1.msra.mxu0 0.0
  %3157 = vmatprep.subr.mxu0 0.0
  %3158 = vmatpush1.msra.mxu0 0.0
  %3159 = vmatprep.subr.mxu0 0.0
  %3160 = vmatpush1.msra.mxu0 0.0
  %3161 = vmatprep.subr.mxu0 0.0
  %3162 = vmatpush1.msra.mxu0 0.0
  %3163 = vmatprep.subr.mxu0 0.0
  %3164 = vmatpush1.msra.mxu0 0.0
  %3165 = vmatprep.subr.mxu0 0.0
  %3166 = vmatpush1.msra.mxu0 0.0
  %3167 = vmatprep.subr.mxu0 0.0
  %3168 = vmatpush1.msra.mxu0 0.0
  %3169 = vmatprep.mubr.f32.mxu0 0.0
  %3170 = vmatmul.mubr.f32.gmra.mrb[0].mxu0 %v3033
  %v3171 = vpop.f32.mrb[0].mxu0
  %v3172 = vadd.f32 %v311, %v3171
  %v3173 = vpop.f32.mrb[0].mxu0
  %3174 = vdwg.mxu0
  %3175 = vmatprep.subr.mxu0 %v765
  %3176 = vmatpush1.msra.mxu0 %v764
  %3177 = vmatprep.subr.mxu0 %v768
  %3178 = vmatpush1.msra.mxu0 %v767
  %3179 = vmatprep.subr.mxu0 %v771
  %3180 = vmatpush1.msra.mxu0 %v770
  %3181 = vmatprep.subr.mxu0 %v774
  %3182 = vmatpush1.msra.mxu0 %v773
  %3183 = vmatprep.subr.mxu0 %v777
  %3184 = vmatpush1.msra.mxu0 %v776
  %3185 = vmatprep.subr.mxu0 %v780
  %3186 = vmatpush1.msra.mxu0 %v779
  %3187 = vmatprep.subr.mxu0 %v783
  %3188 = vmatpush1.msra.mxu0 %v782
  %3189 = vmatprep.subr.mxu0 %v786
  %3190 = vmatpush1.msra.mxu0 %v785
  %3191 = vmatprep.subr.mxu0 %v789
  %3192 = vmatpush1.msra.mxu0 %v788
  %3193 = vmatprep.subr.mxu0 %v792
  %3194 = vmatpush1.msra.mxu0 %v791
  %3195 = vmatprep.subr.mxu0 %v795
  %3196 = vmatpush1.msra.mxu0 %v794
  %3197 = vmatprep.subr.mxu0 %v798
  %3198 = vmatpush1.msra.mxu0 %v797
  %3199 = vmatprep.subr.mxu0 %v801
  %3200 = vmatpush1.msra.mxu0 %v800
  %3201 = vmatprep.subr.mxu0 %v804
  %3202 = vmatpush1.msra.mxu0 %v803
  %3203 = vmatprep.subr.mxu0 %v807
  %3204 = vmatpush1.msra.mxu0 %v806
  %3205 = vmatprep.subr.mxu0 %v810
  %3206 = vmatpush1.msra.mxu0 %v809
  %3207 = vmatprep.subr.mxu0 0.0
  %3208 = vmatpush1.msra.mxu0 0.0
  %3209 = vmatprep.subr.mxu0 0.0
  %3210 = vmatpush1.msra.mxu0 0.0
  %3211 = vmatprep.subr.mxu0 0.0
  %3212 = vmatpush1.msra.mxu0 0.0
  %3213 = vmatprep.subr.mxu0 0.0
  %3214 = vmatpush1.msra.mxu0 0.0
  %3215 = vmatprep.subr.mxu0 0.0
  %3216 = vmatpush1.msra.mxu0 0.0
  %3217 = vmatprep.subr.mxu0 0.0
  %3218 = vmatpush1.msra.mxu0 0.0
  %3219 = vmatprep.subr.mxu0 0.0
  %3220 = vmatpush1.msra.mxu0 0.0
  %3221 = vmatprep.subr.mxu0 0.0
  %3222 = vmatpush1.msra.mxu0 0.0
  %3223 = vmatprep.subr.mxu0 0.0
  %3224 = vmatpush1.msra.mxu0 0.0
  %3225 = vmatprep.subr.mxu0 0.0
  %3226 = vmatpush1.msra.mxu0 0.0
  %3227 = vmatprep.subr.mxu0 0.0
  %3228 = vmatpush1.msra.mxu0 0.0
  %3229 = vmatprep.subr.mxu0 0.0
  %3230 = vmatpush1.msra.mxu0 0.0
  %3231 = vmatprep.subr.mxu0 0.0
  %3232 = vmatpush1.msra.mxu0 0.0
  %3233 = vmatprep.subr.mxu0 0.0
  %3234 = vmatpush1.msra.mxu0 0.0
  %3235 = vmatprep.subr.mxu0 0.0
  %3236 = vmatpush1.msra.mxu0 0.0
  %3237 = vmatprep.subr.mxu0 0.0
  %3238 = vmatpush1.msra.mxu0 0.0
  %3239 = vmatprep.mubr.f32.mxu0 0.0
  %3240 = vmatmul.mubr.f32.gmra.mrb[0].mxu0 %v2867
  %v3241 = vpop.f32.mrb[0].mxu0
  %v3242 = vadd.f32 %v818, %v3241
  %v3243 = vpop.f32.mrb[0].mxu0
  %v3244 = vadd.f32 %v822, %v3243
  %3245 = vdwg.mxu0
  %3246 = vmatprep.subr.mxu0 0.0
  %3247 = vmatpush1.msra.mxu0 %v766
  %3248 = vmatprep.subr.mxu0 0.0
  %3249 = vmatpush1.msra.mxu0 %v769
  %3250 = vmatprep.subr.mxu0 0.0
  %3251 = vmatpush1.msra.mxu0 %v772
  %3252 = vmatprep.subr.mxu0 0.0
  %3253 = vmatpush1.msra.mxu0 %v775
  %3254 = vmatprep.subr.mxu0 0.0
  %3255 = vmatpush1.msra.mxu0 %v778
  %3256 = vmatprep.subr.mxu0 0.0
  %3257 = vmatpush1.msra.mxu0 %v781
  %3258 = vmatprep.subr.mxu0 0.0
  %3259 = vmatpush1.msra.mxu0 %v784
  %3260 = vmatprep.subr.mxu0 0.0
  %3261 = vmatpush1.msra.mxu0 %v787
  %3262 = vmatprep.subr.mxu0 0.0
  %3263 = vmatpush1.msra.mxu0 %v790
  %3264 = vmatprep.subr.mxu0 0.0
  %3265 = vmatpush1.msra.mxu0 %v793
  %3266 = vmatprep.subr.mxu0 0.0
  %3267 = vmatpush1.msra.mxu0 %v796
  %3268 = vmatprep.subr.mxu0 0.0
  %3269 = vmatpush1.msra.mxu0 %v799
  %3270 = vmatprep.subr.mxu0 0.0
  %3271 = vmatpush1.msra.mxu0 %v802
  %3272 = vmatprep.subr.mxu0 0.0
  %3273 = vmatpush1.msra.mxu0 %v805
  %3274 = vmatprep.subr.mxu0 0.0
  %3275 = vmatpush1.msra.mxu0 %v808
  %3276 = vmatprep.subr.mxu0 0.0
  %3277 = vmatpush1.msra.mxu0 %v811
  %3278 = vmatprep.subr.mxu0 0.0
  %3279 = vmatpush1.msra.mxu0 0.0
  %3280 = vmatprep.subr.mxu0 0.0
  %3281 = vmatpush1.msra.mxu0 0.0
  %3282 = vmatprep.subr.mxu0 0.0
  %3283 = vmatpush1.msra.mxu0 0.0
  %3284 = vmatprep.subr.mxu0 0.0
  %3285 = vmatpush1.msra.mxu0 0.0
  %3286 = vmatprep.subr.mxu0 0.0
  %3287 = vmatpush1.msra.mxu0 0.0
  %3288 = vmatprep.subr.mxu0 0.0
  %3289 = vmatpush1.msra.mxu0 0.0
  %3290 = vmatprep.subr.mxu0 0.0
  %3291 = vmatpush1.msra.mxu0 0.0
  %3292 = vmatprep.subr.mxu0 0.0
  %3293 = vmatpush1.msra.mxu0 0.0
  %3294 = vmatprep.subr.mxu0 0.0
  %3295 = vmatpush1.msra.mxu0 0.0
  %3296 = vmatprep.subr.mxu0 0.0
  %3297 = vmatpush1.msra.mxu0 0.0
  %3298 = vmatprep.subr.mxu0 0.0
  %3299 = vmatpush1.msra.mxu0 0.0
  %3300 = vmatprep.subr.mxu0 0.0
  %3301 = vmatpush1.msra.mxu0 0.0
  %3302 = vmatprep.subr.mxu0 0.0
  %3303 = vmatpush1.msra.mxu0 0.0
  %3304 = vmatprep.subr.mxu0 0.0
  %3305 = vmatpush1.msra.mxu0 0.0
  %3306 = vmatprep.subr.mxu0 0.0
  %3307 = vmatpush1.msra.mxu0 0.0
  %3308 = vmatprep.subr.mxu0 0.0
  %3309 = vmatpush1.msra.mxu0 0.0
  %3310 = vmatprep.mubr.f32.mxu0 0.0
  %3311 = vmatmul.mubr.f32.gmra.mrb[0].mxu0 %v2867
  %v3312 = vpop.f32.mrb[0].mxu0
  %v3313 = vadd.f32 %v826, %v3312
  %v3314 = vpop.f32.mrb[0].mxu0
  %3315 = vdwg.mxu0
  %v3316 = vadd.f32 %v2632, %v3242
  %v3317 = vadd.f32 %v2634, %v3244
  %v3318 = vxor.u32 %v3316, 2147483648
  %v3319 = vxor.u32 %v3317, 2147483648
  %v3320 = vmul.f32 %v3318, 1.442695
  %v3321 = vpow.pop %v3320
  %v3322 = vmul.f32 %v3319, 1.442695
  %v3323 = vpow.pop %v3322
  %v3324 = vadd.f32 %v3321, 1.0
  %v3325 = vadd.f32 %v3323, 1.0
  %v3326 = vrcp.pop %v3324
  %v3327 = vmul.f32 1.0, %v3326
  %v3328 = vrcp.pop %v3325
  %v3329 = vmul.f32 1.0, %v3328
  %v3330 = vmul.f32 %v3327, %v3313
  %v3331 = vadd.f32 %v2703, %v3330
  %v3332 = vtanh.pop %v3331
  %v3333 = vsub.f32 1.0, %v3329
  %v3334 = vmul.f32 %v3333, %v3332
  %v3335 = vmul.f32 %v3329, %v2867
  %v3336 = vadd.f32 %v3334, %v3335
  %s3337 = scalar_lea.vmem %s0, 168
  %v3338 = vld [vmem:[%s3337] sm:$0xff]
  %v3339 = vld [vmem:[%s3337 + $0x8] sm:$0xff]
  %v3340 = vld [vmem:[%s3337 + $0x10] sm:$0xff]
  %3341 = vmatprep.subr.mxu0 %v24
  %3342 = vmatpush1.msra.mxu0 %v23
  %3343 = vmatprep.subr.mxu0 %v27
  %3344 = vmatpush1.msra.mxu0 %v26
  %3345 = vmatprep.subr.mxu0 %v30
  %3346 = vmatpush1.msra.mxu0 %v29
  %3347 = vmatprep.subr.mxu0 %v33
  %3348 = vmatpush1.msra.mxu0 %v32
  %3349 = vmatprep.subr.mxu0 %v36
  %3350 = vmatpush1.msra.mxu0 %v35
  %3351 = vmatprep.subr.mxu0 %v39
  %3352 = vmatpush1.msra.mxu0 %v38
  %3353 = vmatprep.subr.mxu0 %v42
  %3354 = vmatpush1.msra.mxu0 %v41
  %3355 = vmatprep.subr.mxu0 %v45
  %3356 = vmatpush1.msra.mxu0 %v44
  %3357 = vmatprep.subr.mxu0 %v48
  %3358 = vmatpush1.msra.mxu0 %v47
  %3359 = vmatprep.subr.mxu0 %v51
  %3360 = vmatpush1.msra.mxu0 %v50
  %3361 = vmatprep.subr.mxu0 %v54
  %3362 = vmatpush1.msra.mxu0 %v53
  %3363 = vmatprep.subr.mxu0 %v57
  %3364 = vmatpush1.msra.mxu0 %v56
  %3365 = vmatprep.subr.mxu0 %v60
  %3366 = vmatpush1.msra.mxu0 %v59
  %3367 = vmatprep.subr.mxu0 %v63
  %3368 = vmatpush1.msra.mxu0 %v62
  %3369 = vmatprep.subr.mxu0 %v66
  %3370 = vmatpush1.msra.mxu0 %v65
  %3371 = vmatprep.subr.mxu0 %v69
  %3372 = vmatpush1.msra.mxu0 %v68
  %3373 = vmatprep.subr.mxu0 0.0
  %3374 = vmatpush1.msra.mxu0 0.0
  %3375 = vmatprep.subr.mxu0 0.0
  %3376 = vmatpush1.msra.mxu0 0.0
  %3377 = vmatprep.subr.mxu0 0.0
  %3378 = vmatpush1.msra.mxu0 0.0
  %3379 = vmatprep.subr.mxu0 0.0
  %3380 = vmatpush1.msra.mxu0 0.0
  %3381 = vmatprep.subr.mxu0 0.0
  %3382 = vmatpush1.msra.mxu0 0.0
  %3383 = vmatprep.subr.mxu0 0.0
  %3384 = vmatpush1.msra.mxu0 0.0
  %3385 = vmatprep.subr.mxu0 0.0
  %3386 = vmatpush1.msra.mxu0 0.0
  %3387 = vmatprep.subr.mxu0 0.0
  %3388 = vmatpush1.msra.mxu0 0.0
  %3389 = vmatprep.subr.mxu0 0.0
  %3390 = vmatpush1.msra.mxu0 0.0
  %3391 = vmatprep.subr.mxu0 0.0
  %3392 = vmatpush1.msra.mxu0 0.0
  %3393 = vmatprep.subr.mxu0 0.0
  %3394 = vmatpush1.msra.mxu0 0.0
  %3395 = vmatprep.subr.mxu0 0.0
  %3396 = vmatpush1.msra.mxu0 0.0
  %3397 = vmatprep.subr.mxu0 0.0
  %3398 = vmatpush1.msra.mxu0 0.0
  %3399 = vmatprep.subr.mxu0 0.0
  %3400 = vmatpush1.msra.mxu0 0.0
  %3401 = vmatprep.subr.mxu0 0.0
  %3402 = vmatpush1.msra.mxu0 0.0
  %3403 = vmatprep.subr.mxu0 0.0
  %3404 = vmatpush1.msra.mxu0 0.0
  %3405 = vmatprep.mubr.f32.mxu0 0.0
  %3406 = vmatmul.mubr.f32.gmra.mrb[0].mxu0 %v3033
  %v3407 = vpop.f32.mrb[0].mxu0
  %v3408 = vadd.f32 %v76, %v3407
  %v3409 = vpop.f32.mrb[0].mxu0
  %v3410 = vadd.f32 %v80, %v3409
  %3411 = vdwg.mxu0
  %3412 = vmatprep.subr.mxu0 0.0
  %3413 = vmatpush1.msra.mxu0 %v25
  %3414 = vmatprep.subr.mxu0 0.0
  %3415 = vmatpush1.msra.mxu0 %v28
  %3416 = vmatprep.subr.mxu0 0.0
  %3417 = vmatpush1.msra.mxu0 %v31
  %3418 = vmatprep.subr.mxu0 0.0
  %3419 = vmatpush1.msra.mxu0 %v34
  %3420 = vmatprep.subr.mxu0 0.0
  %3421 = vmatpush1.msra.mxu0 %v37
  %3422 = vmatprep.subr.mxu0 0.0
  %3423 = vmatpush1.msra.mxu0 %v40
  %3424 = vmatprep.subr.mxu0 0.0
  %3425 = vmatpush1.msra.mxu0 %v43
  %3426 = vmatprep.subr.mxu0 0.0
  %3427 = vmatpush1.msra.mxu0 %v46
  %3428 = vmatprep.subr.mxu0 0.0
  %3429 = vmatpush1.msra.mxu0 %v49
  %3430 = vmatprep.subr.mxu0 0.0
  %3431 = vmatpush1.msra.mxu0 %v52
  %3432 = vmatprep.subr.mxu0 0.0
  %3433 = vmatpush1.msra.mxu0 %v55
  %3434 = vmatprep.subr.mxu0 0.0
  %3435 = vmatpush1.msra.mxu0 %v58
  %3436 = vmatprep.subr.mxu0 0.0
  %3437 = vmatpush1.msra.mxu0 %v61
  %3438 = vmatprep.subr.mxu0 0.0
  %3439 = vmatpush1.msra.mxu0 %v64
  %3440 = vmatprep.subr.mxu0 0.0
  %3441 = vmatpush1.msra.mxu0 %v67
  %3442 = vmatprep.subr.mxu0 0.0
  %3443 = vmatpush1.msra.mxu0 %v70
  %3444 = vmatprep.subr.mxu0 0.0
  %3445 = vmatpush1.msra.mxu0 0.0
  %3446 = vmatprep.subr.mxu0 0.0
  %3447 = vmatpush1.msra.mxu0 0.0
  %3448 = vmatprep.subr.mxu0 0.0
  %3449 = vmatpush1.msra.mxu0 0.0
  %3450 = vmatprep.subr.mxu0 0.0
  %3451 = vmatpush1.msra.mxu0 0.0
  %3452 = vmatprep.subr.mxu0 0.0
  %3453 = vmatpush1.msra.mxu0 0.0
  %3454 = vmatprep.subr.mxu0 0.0
  %3455 = vmatpush1.msra.mxu0 0.0
  %3456 = vmatprep.subr.mxu0 0.0
  %3457 = vmatpush1.msra.mxu0 0.0
  %3458 = vmatprep.subr.mxu0 0.0
  %3459 = vmatpush1.msra.mxu0 0.0
  %3460 = vmatprep.subr.mxu0 0.0
  %3461 = vmatpush1.msra.mxu0 0.0
  %3462 = vmatprep.subr.mxu0 0.0
  %3463 = vmatpush1.msra.mxu0 0.0
  %3464 = vmatprep.subr.mxu0 0.0
  %3465 = vmatpush1.msra.mxu0 0.0
  %3466 = vmatprep.subr.mxu0 0.0
  %3467 = vmatpush1.msra.mxu0 0.0
  %3468 = vmatprep.subr.mxu0 0.0
  %3469 = vmatpush1.msra.mxu0 0.0
  %3470 = vmatprep.subr.mxu0 0.0
  %3471 = vmatpush1.msra.mxu0 0.0
  %3472 = vmatprep.subr.mxu0 0.0
  %3473 = vmatpush1.msra.mxu0 0.0
  %3474 = vmatprep.subr.mxu0 0.0
  %3475 = vmatpush1.msra.mxu0 0.0
  %3476 = vmatprep.mubr.f32.mxu0 0.0
  %3477 = vmatmul.mubr.f32.gmra.mrb[0].mxu0 %v3033
  %v3478 = vpop.f32.mrb[0].mxu0
  %v3479 = vadd.f32 %v84, %v3478
  %v3480 = vpop.f32.mrb[0].mxu0
  %3481 = vdwg.mxu0
  %v3482 = vadd.f32 %v3338, %v3408
  %v3483 = vadd.f32 %v3339, %v3410
  %v3484 = vxor.u32 %v3482, 2147483648
  %v3485 = vxor.u32 %v3483, 2147483648
  %v3486 = vmul.f32 %v3484, 1.442695
  %v3487 = vpow.pop %v3486
  %v3488 = vmul.f32 %v3485, 1.442695
  %v3489 = vpow.pop %v3488
  %v3490 = vadd.f32 %v3487, 1.0
  %v3491 = vadd.f32 %v3489, 1.0
  %v3492 = vrcp.pop %v3490
  %v3493 = vmul.f32 1.0, %v3492
  %v3494 = vrcp.pop %v3491
  %v3495 = vmul.f32 1.0, %v3494
  %v3496 = vmul.f32 %v3493, %v3479
  %v3497 = vadd.f32 %v3340, %v3496
  %v3498 = vtanh.pop %v3497
  %v3499 = vsub.f32 1.0, %v3495
  %v3500 = vmul.f32 %v3499, %v3498
  %v3501 = vmul.f32 %v3495, %v3033
  %v3502 = vadd.f32 %v3500, %v3501
  %3503 = vmatprep.subr.mxu0 %v251
  %3504 = vmatpush1.msra.mxu0 %v250
  %3505 = vmatprep.subr.mxu0 %v254
  %3506 = vmatpush1.msra.mxu0 %v253
  %3507 = vmatprep.subr.mxu0 %v257
  %3508 = vmatpush1.msra.mxu0 %v256
  %3509 = vmatprep.subr.mxu0 %v260
  %3510 = vmatpush1.msra.mxu0 %v259
  %3511 = vmatprep.subr.mxu0 %v263
  %3512 = vmatpush1.msra.mxu0 %v262
  %3513 = vmatprep.subr.mxu0 %v266
  %3514 = vmatpush1.msra.mxu0 %v265
  %3515 = vmatprep.subr.mxu0 %v269
  %3516 = vmatpush1.msra.mxu0 %v268
  %3517 = vmatprep.subr.mxu0 %v272
  %3518 = vmatpush1.msra.mxu0 %v271
  %3519 = vmatprep.subr.mxu0 %v275
  %3520 = vmatpush1.msra.mxu0 %v274
  %3521 = vmatprep.subr.mxu0 %v278
  %3522 = vmatpush1.msra.mxu0 %v277
  %3523 = vmatprep.subr.mxu0 %v281
  %3524 = vmatpush1.msra.mxu0 %v280
  %3525 = vmatprep.subr.mxu0 %v284
  %3526 = vmatpush1.msra.mxu0 %v283
  %3527 = vmatprep.subr.mxu0 %v287
  %3528 = vmatpush1.msra.mxu0 %v286
  %3529 = vmatprep.subr.mxu0 %v290
  %3530 = vmatpush1.msra.mxu0 %v289
  %3531 = vmatprep.subr.mxu0 %v293
  %3532 = vmatpush1.msra.mxu0 %v292
  %3533 = vmatprep.subr.mxu0 %v296
  %3534 = vmatpush1.msra.mxu0 %v295
  %3535 = vmatprep.subr.mxu0 0.0
  %3536 = vmatpush1.msra.mxu0 0.0
  %3537 = vmatprep.subr.mxu0 0.0
  %3538 = vmatpush1.msra.mxu0 0.0
  %3539 = vmatprep.subr.mxu0 0.0
  %3540 = vmatpush1.msra.mxu0 0.0
  %3541 = vmatprep.subr.mxu0 0.0
  %3542 = vmatpush1.msra.mxu0 0.0
  %3543 = vmatprep.subr.mxu0 0.0
  %3544 = vmatpush1.msra.mxu0 0.0
  %3545 = vmatprep.subr.mxu0 0.0
  %3546 = vmatpush1.msra.mxu0 0.0
  %3547 = vmatprep.subr.mxu0 0.0
  %3548 = vmatpush1.msra.mxu0 0.0
  %3549 = vmatprep.subr.mxu0 0.0
  %3550 = vmatpush1.msra.mxu0 0.0
  %3551 = vmatprep.subr.mxu0 0.0
  %3552 = vmatpush1.msra.mxu0 0.0
  %3553 = vmatprep.subr.mxu0 0.0
  %3554 = vmatpush1.msra.mxu0 0.0
  %3555 = vmatprep.subr.mxu0 0.0
  %3556 = vmatpush1.msra.mxu0 0.0
  %3557 = vmatprep.subr.mxu0 0.0
  %3558 = vmatpush1.msra.mxu0 0.0
  %3559 = vmatprep.subr.mxu0 0.0
  %3560 = vmatpush1.msra.mxu0 0.0
  %3561 = vmatprep.subr.mxu0 0.0
  %3562 = vmatpush1.msra.mxu0 0.0
  %3563 = vmatprep.subr.mxu0 0.0
  %3564 = vmatpush1.msra.mxu0 0.0
  %3565 = vmatprep.subr.mxu0 0.0
  %3566 = vmatpush1.msra.mxu0 0.0
  %3567 = vmatprep.mubr.f32.mxu0 0.0
  %3568 = vmatmul.mubr.f32.gmra.mrb[0].mxu0 %v3502
  %v3569 = vpop.f32.mrb[0].mxu0
  %v3570 = vadd.f32 %v303, %v3569
  %v3571 = vpop.f32.mrb[0].mxu0
  %v3572 = vadd.f32 %v307, %v3571
  %3573 = vdwg.mxu0
  %3574 = vmatprep.subr.mxu0 0.0
  %3575 = vmatpush1.msra.mxu0 %v252
  %3576 = vmatprep.subr.mxu0 0.0
  %3577 = vmatpush1.msra.mxu0 %v255
  %3578 = vmatprep.subr.mxu0 0.0
  %3579 = vmatpush1.msra.mxu0 %v258
  %3580 = vmatprep.subr.mxu0 0.0
  %3581 = vmatpush1.msra.mxu0 %v261
  %3582 = vmatprep.subr.mxu0 0.0
  %3583 = vmatpush1.msra.mxu0 %v264
  %3584 = vmatprep.subr.mxu0 0.0
  %3585 = vmatpush1.msra.mxu0 %v267
  %3586 = vmatprep.subr.mxu0 0.0
  %3587 = vmatpush1.msra.mxu0 %v270
  %3588 = vmatprep.subr.mxu0 0.0
  %3589 = vmatpush1.msra.mxu0 %v273
  %3590 = vmatprep.subr.mxu0 0.0
  %3591 = vmatpush1.msra.mxu0 %v276
  %3592 = vmatprep.subr.mxu0 0.0
  %3593 = vmatpush1.msra.mxu0 %v279
  %3594 = vmatprep.subr.mxu0 0.0
  %3595 = vmatpush1.msra.mxu0 %v282
  %3596 = vmatprep.subr.mxu0 0.0
  %3597 = vmatpush1.msra.mxu0 %v285
  %3598 = vmatprep.subr.mxu0 0.0
  %3599 = vmatpush1.msra.mxu0 %v288
  %3600 = vmatprep.subr.mxu0 0.0
  %3601 = vmatpush1.msra.mxu0 %v291
  %3602 = vmatprep.subr.mxu0 0.0
  %3603 = vmatpush1.msra.mxu0 %v294
  %3604 = vmatprep.subr.mxu0 0.0
  %3605 = vmatpush1.msra.mxu0 %v297
  %3606 = vmatprep.subr.mxu0 0.0
  %3607 = vmatpush1.msra.mxu0 0.0
  %3608 = vmatprep.subr.mxu0 0.0
  %3609 = vmatpush1.msra.mxu0 0.0
  %3610 = vmatprep.subr.mxu0 0.0
  %3611 = vmatpush1.msra.mxu0 0.0
  %3612 = vmatprep.subr.mxu0 0.0
  %3613 = vmatpush1.msra.mxu0 0.0
  %3614 = vmatprep.subr.mxu0 0.0
  %3615 = vmatpush1.msra.mxu0 0.0
  %3616 = vmatprep.subr.mxu0 0.0
  %3617 = vmatpush1.msra.mxu0 0.0
  %3618 = vmatprep.subr.mxu0 0.0
  %3619 = vmatpush1.msra.mxu0 0.0
  %3620 = vmatprep.subr.mxu0 0.0
  %3621 = vmatpush1.msra.mxu0 0.0
  %3622 = vmatprep.subr.mxu0 0.0
  %3623 = vmatpush1.msra.mxu0 0.0
  %3624 = vmatprep.subr.mxu0 0.0
  %3625 = vmatpush1.msra.mxu0 0.0
  %3626 = vmatprep.subr.mxu0 0.0
  %3627 = vmatpush1.msra.mxu0 0.0
  %3628 = vmatprep.subr.mxu0 0.0
  %3629 = vmatpush1.msra.mxu0 0.0
  %3630 = vmatprep.subr.mxu0 0.0
  %3631 = vmatpush1.msra.mxu0 0.0
  %3632 = vmatprep.subr.mxu0 0.0
  %3633 = vmatpush1.msra.mxu0 0.0
  %3634 = vmatprep.subr.mxu0 0.0
  %3635 = vmatpush1.msra.mxu0 0.0
  %3636 = vmatprep.subr.mxu0 0.0
  %3637 = vmatpush1.msra.mxu0 0.0
  %3638 = vmatprep.mubr.f32.mxu0 0.0
  %3639 = vmatmul.mubr.f32.gmra.mrb[0].mxu0 %v3502
  %v3640 = vpop.f32.mrb[0].mxu0
  %v3641 = vadd.f32 %v311, %v3640
  %v3642 = vpop.f32.mrb[0].mxu0
  %3643 = vdwg.mxu0
  %3644 = vmatprep.subr.mxu0 %v765
  %3645 = vmatpush1.msra.mxu0 %v764
  %3646 = vmatprep.subr.mxu0 %v768
  %3647 = vmatpush1.msra.mxu0 %v767
  %3648 = vmatprep.subr.mxu0 %v771
  %3649 = vmatpush1.msra.mxu0 %v770
  %3650 = vmatprep.subr.mxu0 %v774
  %3651 = vmatpush1.msra.mxu0 %v773
  %3652 = vmatprep.subr.mxu0 %v777
  %3653 = vmatpush1.msra.mxu0 %v776
  %3654 = vmatprep.subr.mxu0 %v780
  %3655 = vmatpush1.msra.mxu0 %v779
  %3656 = vmatprep.subr.mxu0 %v783
  %3657 = vmatpush1.msra.mxu0 %v782
  %3658 = vmatprep.subr.mxu0 %v786
  %3659 = vmatpush1.msra.mxu0 %v785
  %3660 = vmatprep.subr.mxu0 %v789
  %3661 = vmatpush1.msra.mxu0 %v788
  %3662 = vmatprep.subr.mxu0 %v792
  %3663 = vmatpush1.msra.mxu0 %v791
  %3664 = vmatprep.subr.mxu0 %v795
  %3665 = vmatpush1.msra.mxu0 %v794
  %3666 = vmatprep.subr.mxu0 %v798
  %3667 = vmatpush1.msra.mxu0 %v797
  %3668 = vmatprep.subr.mxu0 %v801
  %3669 = vmatpush1.msra.mxu0 %v800
  %3670 = vmatprep.subr.mxu0 %v804
  %3671 = vmatpush1.msra.mxu0 %v803
  %3672 = vmatprep.subr.mxu0 %v807
  %3673 = vmatpush1.msra.mxu0 %v806
  %3674 = vmatprep.subr.mxu0 %v810
  %3675 = vmatpush1.msra.mxu0 %v809
  %3676 = vmatprep.subr.mxu0 0.0
  %3677 = vmatpush1.msra.mxu0 0.0
  %3678 = vmatprep.subr.mxu0 0.0
  %3679 = vmatpush1.msra.mxu0 0.0
  %3680 = vmatprep.subr.mxu0 0.0
  %3681 = vmatpush1.msra.mxu0 0.0
  %3682 = vmatprep.subr.mxu0 0.0
  %3683 = vmatpush1.msra.mxu0 0.0
  %3684 = vmatprep.subr.mxu0 0.0
  %3685 = vmatpush1.msra.mxu0 0.0
  %3686 = vmatprep.subr.mxu0 0.0
  %3687 = vmatpush1.msra.mxu0 0.0
  %3688 = vmatprep.subr.mxu0 0.0
  %3689 = vmatpush1.msra.mxu0 0.0
  %3690 = vmatprep.subr.mxu0 0.0
  %3691 = vmatpush1.msra.mxu0 0.0
  %3692 = vmatprep.subr.mxu0 0.0
  %3693 = vmatpush1.msra.mxu0 0.0
  %3694 = vmatprep.subr.mxu0 0.0
  %3695 = vmatpush1.msra.mxu0 0.0
  %3696 = vmatprep.subr.mxu0 0.0
  %3697 = vmatpush1.msra.mxu0 0.0
  %3698 = vmatprep.subr.mxu0 0.0
  %3699 = vmatpush1.msra.mxu0 0.0
  %3700 = vmatprep.subr.mxu0 0.0
  %3701 = vmatpush1.msra.mxu0 0.0
  %3702 = vmatprep.subr.mxu0 0.0
  %3703 = vmatpush1.msra.mxu0 0.0
  %3704 = vmatprep.subr.mxu0 0.0
  %3705 = vmatpush1.msra.mxu0 0.0
  %3706 = vmatprep.subr.mxu0 0.0
  %3707 = vmatpush1.msra.mxu0 0.0
  %3708 = vmatprep.mubr.f32.mxu0 0.0
  %3709 = vmatmul.mubr.f32.gmra.mrb[0].mxu0 %v3336
  %v3710 = vpop.f32.mrb[0].mxu0
  %v3711 = vadd.f32 %v818, %v3710
  %v3712 = vpop.f32.mrb[0].mxu0
  %v3713 = vadd.f32 %v822, %v3712
  %3714 = vdwg.mxu0
  %3715 = vmatprep.subr.mxu0 0.0
  %3716 = vmatpush1.msra.mxu0 %v766
  %3717 = vmatprep.subr.mxu0 0.0
  %3718 = vmatpush1.msra.mxu0 %v769
  %3719 = vmatprep.subr.mxu0 0.0
  %3720 = vmatpush1.msra.mxu0 %v772
  %3721 = vmatprep.subr.mxu0 0.0
  %3722 = vmatpush1.msra.mxu0 %v775
  %3723 = vmatprep.subr.mxu0 0.0
  %3724 = vmatpush1.msra.mxu0 %v778
  %3725 = vmatprep.subr.mxu0 0.0
  %3726 = vmatpush1.msra.mxu0 %v781
  %3727 = vmatprep.subr.mxu0 0.0
  %3728 = vmatpush1.msra.mxu0 %v784
  %3729 = vmatprep.subr.mxu0 0.0
  %3730 = vmatpush1.msra.mxu0 %v787
  %3731 = vmatprep.subr.mxu0 0.0
  %3732 = vmatpush1.msra.mxu0 %v790
  %3733 = vmatprep.subr.mxu0 0.0
  %3734 = vmatpush1.msra.mxu0 %v793
  %3735 = vmatprep.subr.mxu0 0.0
  %3736 = vmatpush1.msra.mxu0 %v796
  %3737 = vmatprep.subr.mxu0 0.0
  %3738 = vmatpush1.msra.mxu0 %v799
  %3739 = vmatprep.subr.mxu0 0.0
  %3740 = vmatpush1.msra.mxu0 %v802
  %3741 = vmatprep.subr.mxu0 0.0
  %3742 = vmatpush1.msra.mxu0 %v805
  %3743 = vmatprep.subr.mxu0 0.0
  %3744 = vmatpush1.msra.mxu0 %v808
  %3745 = vmatprep.subr.mxu0 0.0
  %3746 = vmatpush1.msra.mxu0 %v811
  %3747 = vmatprep.subr.mxu0 0.0
  %3748 = vmatpush1.msra.mxu0 0.0
  %3749 = vmatprep.subr.mxu0 0.0
  %3750 = vmatpush1.msra.mxu0 0.0
  %3751 = vmatprep.subr.mxu0 0.0
  %3752 = vmatpush1.msra.mxu0 0.0
  %3753 = vmatprep.subr.mxu0 0.0
  %3754 = vmatpush1.msra.mxu0 0.0
  %3755 = vmatprep.subr.mxu0 0.0
  %3756 = vmatpush1.msra.mxu0 0.0
  %3757 = vmatprep.subr.mxu0 0.0
  %3758 = vmatpush1.msra.mxu0 0.0
  %3759 = vmatprep.subr.mxu0 0.0
  %3760 = vmatpush1.msra.mxu0 0.0
  %3761 = vmatprep.subr.mxu0 0.0
  %3762 = vmatpush1.msra.mxu0 0.0
  %3763 = vmatprep.subr.mxu0 0.0
  %3764 = vmatpush1.msra.mxu0 0.0
  %3765 = vmatprep.subr.mxu0 0.0
  %3766 = vmatpush1.msra.mxu0 0.0
  %3767 = vmatprep.subr.mxu0 0.0
  %3768 = vmatpush1.msra.mxu0 0.0
  %3769 = vmatprep.subr.mxu0 0.0
  %3770 = vmatpush1.msra.mxu0 0.0
  %3771 = vmatprep.subr.mxu0 0.0
  %3772 = vmatpush1.msra.mxu0 0.0
  %3773 = vmatprep.subr.mxu0 0.0
  %3774 = vmatpush1.msra.mxu0 0.0
  %3775 = vmatprep.subr.mxu0 0.0
  %3776 = vmatpush1.msra.mxu0 0.0
  %3777 = vmatprep.subr.mxu0 0.0
  %3778 = vmatpush1.msra.mxu0 0.0
  %3779 = vmatprep.mubr.f32.mxu0 0.0
  %3780 = vmatmul.mubr.f32.gmra.mrb[0].mxu0 %v3336
  %v3781 = vpop.f32.mrb[0].mxu0
  %v3782 = vadd.f32 %v826, %v3781
  %v3783 = vpop.f32.mrb[0].mxu0
  %3784 = vdwg.mxu0
  %v3785 = vadd.f32 %v3101, %v3711
  %v3786 = vadd.f32 %v3103, %v3713
  %v3787 = vxor.u32 %v3785, 2147483648
  %v3788 = vxor.u32 %v3786, 2147483648
  %v3789 = vmul.f32 %v3787, 1.442695
  %v3790 = vpow.pop %v3789
  %v3791 = vmul.f32 %v3788, 1.442695
  %v3792 = vpow.pop %v3791
  %v3793 = vadd.f32 %v3790, 1.0
  %v3794 = vadd.f32 %v3792, 1.0
  %v3795 = vrcp.pop %v3793
  %v3796 = vmul.f32 1.0, %v3795
  %v3797 = vrcp.pop %v3794
  %v3798 = vmul.f32 1.0, %v3797
  %v3799 = vmul.f32 %v3796, %v3782
  %v3800 = vadd.f32 %v3172, %v3799
  %v3801 = vtanh.pop %v3800
  %v3802 = vsub.f32 1.0, %v3798
  %v3803 = vmul.f32 %v3802, %v3801
  %v3804 = vmul.f32 %v3798, %v3336
  %v3805 = vadd.f32 %v3803, %v3804
  %3806 = vmatprep.subr.mxu0 %v765
  %3807 = vmatpush1.msra.mxu0 %v764
  %3808 = vmatprep.subr.mxu0 %v768
  %3809 = vmatpush1.msra.mxu0 %v767
  %3810 = vmatprep.subr.mxu0 %v771
  %3811 = vmatpush1.msra.mxu0 %v770
  %3812 = vmatprep.subr.mxu0 %v774
  %3813 = vmatpush1.msra.mxu0 %v773
  %3814 = vmatprep.subr.mxu0 %v777
  %3815 = vmatpush1.msra.mxu0 %v776
  %3816 = vmatprep.subr.mxu0 %v780
  %3817 = vmatpush1.msra.mxu0 %v779
  %3818 = vmatprep.subr.mxu0 %v783
  %3819 = vmatpush1.msra.mxu0 %v782
  %3820 = vmatprep.subr.mxu0 %v786
  %3821 = vmatpush1.msra.mxu0 %v785
  %3822 = vmatprep.subr.mxu0 %v789
  %3823 = vmatpush1.msra.mxu0 %v788
  %3824 = vmatprep.subr.mxu0 %v792
  %3825 = vmatpush1.msra.mxu0 %v791
  %3826 = vmatprep.subr.mxu0 %v795
  %3827 = vmatpush1.msra.mxu0 %v794
  %3828 = vmatprep.subr.mxu0 %v798
  %3829 = vmatpush1.msra.mxu0 %v797
  %3830 = vmatprep.subr.mxu0 %v801
  %3831 = vmatpush1.msra.mxu0 %v800
  %3832 = vmatprep.subr.mxu0 %v804
  %3833 = vmatpush1.msra.mxu0 %v803
  %3834 = vmatprep.subr.mxu0 %v807
  %3835 = vmatpush1.msra.mxu0 %v806
  %3836 = vmatprep.subr.mxu0 %v810
  %3837 = vmatpush1.msra.mxu0 %v809
  %3838 = vmatprep.subr.mxu0 0.0
  %3839 = vmatpush1.msra.mxu0 0.0
  %3840 = vmatprep.subr.mxu0 0.0
  %3841 = vmatpush1.msra.mxu0 0.0
  %3842 = vmatprep.subr.mxu0 0.0
  %3843 = vmatpush1.msra.mxu0 0.0
  %3844 = vmatprep.subr.mxu0 0.0
  %3845 = vmatpush1.msra.mxu0 0.0
  %3846 = vmatprep.subr.mxu0 0.0
  %3847 = vmatpush1.msra.mxu0 0.0
  %3848 = vmatprep.subr.mxu0 0.0
  %3849 = vmatpush1.msra.mxu0 0.0
  %3850 = vmatprep.subr.mxu0 0.0
  %3851 = vmatpush1.msra.mxu0 0.0
  %3852 = vmatprep.subr.mxu0 0.0
  %3853 = vmatpush1.msra.mxu0 0.0
  %3854 = vmatprep.subr.mxu0 0.0
  %3855 = vmatpush1.msra.mxu0 0.0
  %3856 = vmatprep.subr.mxu0 0.0
  %3857 = vmatpush1.msra.mxu0 0.0
  %3858 = vmatprep.subr.mxu0 0.0
  %3859 = vmatpush1.msra.mxu0 0.0
  %3860 = vmatprep.subr.mxu0 0.0
  %3861 = vmatpush1.msra.mxu0 0.0
  %3862 = vmatprep.subr.mxu0 0.0
  %3863 = vmatpush1.msra.mxu0 0.0
  %3864 = vmatprep.subr.mxu0 0.0
  %3865 = vmatpush1.msra.mxu0 0.0
  %3866 = vmatprep.subr.mxu0 0.0
  %3867 = vmatpush1.msra.mxu0 0.0
  %3868 = vmatprep.subr.mxu0 0.0
  %3869 = vmatpush1.msra.mxu0 0.0
  %3870 = vmatprep.mubr.f32.mxu0 0.0
  %3871 = vmatmul.mubr.f32.gmra.mrb[0].mxu0 %v3805
  %v3872 = vpop.f32.mrb[0].mxu0
  %v3873 = vadd.f32 %v818, %v3872
  %v3874 = vpop.f32.mrb[0].mxu0
  %v3875 = vadd.f32 %v822, %v3874
  %3876 = vdwg.mxu0
  %3877 = vmatprep.subr.mxu0 0.0
  %3878 = vmatpush1.msra.mxu0 %v766
  %3879 = vmatprep.subr.mxu0 0.0
  %3880 = vmatpush1.msra.mxu0 %v769
  %3881 = vmatprep.subr.mxu0 0.0
  %3882 = vmatpush1.msra.mxu0 %v772
  %3883 = vmatprep.subr.mxu0 0.0
  %3884 = vmatpush1.msra.mxu0 %v775
  %3885 = vmatprep.subr.mxu0 0.0
  %3886 = vmatpush1.msra.mxu0 %v778
  %3887 = vmatprep.subr.mxu0 0.0
  %3888 = vmatpush1.msra.mxu0 %v781
  %3889 = vmatprep.subr.mxu0 0.0
  %3890 = vmatpush1.msra.mxu0 %v784
  %3891 = vmatprep.subr.mxu0 0.0
  %3892 = vmatpush1.msra.mxu0 %v787
  %3893 = vmatprep.subr.mxu0 0.0
  %3894 = vmatpush1.msra.mxu0 %v790
  %3895 = vmatprep.subr.mxu0 0.0
  %3896 = vmatpush1.msra.mxu0 %v793
  %3897 = vmatprep.subr.mxu0 0.0
  %3898 = vmatpush1.msra.mxu0 %v796
  %3899 = vmatprep.subr.mxu0 0.0
  %3900 = vmatpush1.msra.mxu0 %v799
  %3901 = vmatprep.subr.mxu0 0.0
  %3902 = vmatpush1.msra.mxu0 %v802
  %3903 = vmatprep.subr.mxu0 0.0
  %3904 = vmatpush1.msra.mxu0 %v805
  %3905 = vmatprep.subr.mxu0 0.0
  %3906 = vmatpush1.msra.mxu0 %v808
  %3907 = vmatprep.subr.mxu0 0.0
  %3908 = vmatpush1.msra.mxu0 %v811
  %3909 = vmatprep.subr.mxu0 0.0
  %3910 = vmatpush1.msra.mxu0 0.0
  %3911 = vmatprep.subr.mxu0 0.0
  %3912 = vmatpush1.msra.mxu0 0.0
  %3913 = vmatprep.subr.mxu0 0.0
  %3914 = vmatpush1.msra.mxu0 0.0
  %3915 = vmatprep.subr.mxu0 0.0
  %3916 = vmatpush1.msra.mxu0 0.0
  %3917 = vmatprep.subr.mxu0 0.0
  %3918 = vmatpush1.msra.mxu0 0.0
  %3919 = vmatprep.subr.mxu0 0.0
  %3920 = vmatpush1.msra.mxu0 0.0
  %3921 = vmatprep.subr.mxu0 0.0
  %3922 = vmatpush1.msra.mxu0 0.0
  %3923 = vmatprep.subr.mxu0 0.0
  %3924 = vmatpush1.msra.mxu0 0.0
  %3925 = vmatprep.subr.mxu0 0.0
  %3926 = vmatpush1.msra.mxu0 0.0
  %3927 = vmatprep.subr.mxu0 0.0
  %3928 = vmatpush1.msra.mxu0 0.0
  %3929 = vmatprep.subr.mxu0 0.0
  %3930 = vmatpush1.msra.mxu0 0.0
  %3931 = vmatprep.subr.mxu0 0.0
  %3932 = vmatpush1.msra.mxu0 0.0
  %3933 = vmatprep.subr.mxu0 0.0
  %3934 = vmatpush1.msra.mxu0 0.0
  %3935 = vmatprep.subr.mxu0 0.0
  %3936 = vmatpush1.msra.mxu0 0.0
  %3937 = vmatprep.subr.mxu0 0.0
  %3938 = vmatpush1.msra.mxu0 0.0
  %3939 = vmatprep.subr.mxu0 0.0
  %3940 = vmatpush1.msra.mxu0 0.0
  %3941 = vmatprep.mubr.f32.mxu0 0.0
  %3942 = vmatmul.mubr.f32.gmra.mrb[0].mxu0 %v3805
  %v3943 = vpop.f32.mrb[0].mxu0
  %v3944 = vadd.f32 %v826, %v3943
  %v3945 = vpop.f32.mrb[0].mxu0
  %3946 = vdwg.mxu0
  %v3947 = vadd.f32 %v3570, %v3873
  %v3948 = vadd.f32 %v3572, %v3875
  %v3949 = vxor.u32 %v3947, 2147483648
  %v3950 = vxor.u32 %v3948, 2147483648
  %v3951 = vmul.f32 %v3949, 1.442695
  %v3952 = vpow.pop %v3951
  %v3953 = vmul.f32 %v3950, 1.442695
  %v3954 = vpow.pop %v3953
  %v3955 = vadd.f32 %v3952, 1.0
  %v3956 = vadd.f32 %v3954, 1.0
  %v3957 = vrcp.pop %v3955
  %v3958 = vmul.f32 1.0, %v3957
  %v3959 = vrcp.pop %v3956
  %v3960 = vmul.f32 1.0, %v3959
  %v3961 = vmul.f32 %v3958, %v3944
  %v3962 = vadd.f32 %v3641, %v3961
  %v3963 = vtanh.pop %v3962
  %v3964 = vsub.f32 1.0, %v3960
  %v3965 = vmul.f32 %v3964, %v3963
  %v3966 = vmul.f32 %v3960, %v3805
  %v3967 = vadd.f32 %v3965, %v3966
  %3968 = vst [vmem:[%s5] sm:$0xff] %v3967
  // Predicated region
  $region22: #{net_forward.1} parent=0 // pred_check
    _
  $region23: #{net_forward.1} parent=0 // pred_check_branch
    %3970 = sbr.rel (0) target = $region25
  $region24: #{net_forward.1} parent=0 // pred_region
    _
  $region25: #{net_forward.1} parent=0 // pred_fallthru
    _
  // Predicated region
  $region26: #{net_forward.1} parent=0 // pred_check
    _
  $region27: #{net_forward.1} parent=0 // pred_check_branch
    %3972 = sbr.rel (0) target = $region29
  $region28: #{net_forward.1} parent=0 // pred_region
    _
  $region29: #{net_forward.1} parent=0 // pred_fallthru
    _

</llo_original>
